<compile_context>
chip_gen: v7x
topology: tpu7x:2x2x1
jax: 0.10.0
libtpu: 0.0.40
codegen_flags: <defaults>
</compile_context>

<pallas_src>
import functools

import jax
import jax.numpy as jnp
from jax.experimental import pallas as pl
from jax.experimental.pallas import tpu as pltpu

POOL_K = 5            # MaxPool2d kernel_size (stride=1, padding=POOL_K//2)
POOL_R = POOL_K // 2


def _w1x1(w, cdt):
    # (Cout, Cin, 1, 1) -> (Cout, Cin)
    return w.reshape(w.shape[0], w.shape[1]).astype(cdt)


def _w3x3(w, cdt):
    # (Cout, Cin, 3, 3) -> (9, Cout, Cin), tap index t = ky*3 + kx.
    co, ci = w.shape[0], w.shape[1]
    return jnp.transpose(w, (2, 3, 0, 1)).reshape(9, co, ci).astype(cdt)


def _w1x1_split(w, parts, cdt):
    # (Cout, parts*Cin, 1, 1) -> (parts, Cout, Cin); part k = input channels
    # [k*Cin, (k+1)*Cin)  (matches the channel-concat order).
    co, ci = w.shape[0], w.shape[1] // parts
    return jnp.transpose(w.reshape(co, parts, ci), (1, 0, 2)).astype(cdt)


def _pick_batch_block(n, max_nb=8):
    # Largest divisor of n (capped) that keeps the grid >= 2 programs so both
    # v7x TensorCores get work; NB=1 for tiny batches.
    best = 1
    for nb in range(1, min(n, max_nb) + 1):
        if n % nb == 0 and n // nb >= 2:
            best = nb
    return best


def sppfcspc_forward(x_nchw, params, compute_dtype=jnp.bfloat16):
    N, C1, H, W = x_nchw.shape
    HW = H * W
    R = POOL_R
    cdt = jnp.dtype(compute_dtype)

    w1 = _w1x1(params["cv1"], cdt)              # (C_, C1)
    w2 = _w1x1(params["cv2"], cdt)              # (C_, C1)
    w3 = _w3x3(params["cv3"], cdt)              # (9, C_, C_)
    w4 = _w1x1(params["cv4"], cdt)              # (C_, C_)
    w5 = _w1x1_split(params["cv5"], 4, cdt)     # (4, C_, C_)
    w6 = _w3x3(params["cv6"], cdt)              # (9, C_, C_)
    w7 = _w1x1_split(params["cv7"], 2, cdt)     # (2, C2, C_)
    C_ = w1.shape[0]
    C2 = w7.shape[1]

    NB = _pick_batch_block(N)
    grid = (N // NB,)

    # Tiny (1, HW) row / column index vectors (replaces the old (C_, HW)
    # broadcast input: ~C_/1 less DMA and mask footprint).
    lane = jnp.arange(HW, dtype=jnp.int32)
    col_idx = (lane % W)[None, :]
    row_idx = (lane // W)[None, :]

    x_flat = x_nchw.reshape(N, C1, HW).astype(cdt)

    def kernel(col_ref, row_ref, x_ref, w1_ref, w2_ref, w3_ref, w4_ref,
               w5_ref, w6_ref, w7_ref, o_ref):
        neg_inf = jnp.float32(-jnp.inf)
        col = col_ref[...]                      # (1, HW) int32
        row = row_ref[...]                      # (1, HW) int32

        # Row-shaped validity masks, hoisted once per grid step.
        col_ok = {dx: jnp.logical_and(col >= -dx, col < W - dx)
                  for dx in range(-R, R + 1)}
        row_ok = {dy: jnp.logical_and(row >= -dy, row < H - dy)
                  for dy in range(-R, R + 1)}
        conv_ok = {(dy, dx): jnp.logical_and(row_ok[dy], col_ok[dx])
                   for dy in (-1, 0, 1) for dx in (-1, 0, 1)}

        def shift(a, s):
            # tap[p] = a[p + s] (circular roll on the XLU; wrap-around pixels
            # are exactly the mask-invalid ones, so masks restore padding).
            return a if s == 0 else pltpu.roll(a, shift=(-s) % HW, axis=1)

        def mm(w, act):
            # (Cout, Cin) @ (Cin, HW) on the MXU, f32 accumulation; matmul
            # operands cast to compute dtype, elementwise math stays f32.
            return jnp.dot(w, act.astype(cdt),
                           preferred_element_type=jnp.float32)

        def conv3x3(w9_ref, act):
            # 3x3 / pad 1 conv as 9 accumulated per-tap matmuls (no im2col).
            acc = None
            for ky in range(3):
                for kx in range(3):
                    dy, dx = ky - 1, kx - 1
                    tap = shift(act, dy * W + dx)
                    if (dy, dx) != (0, 0):
                        tap = jnp.where(conv_ok[(dy, dx)], tap, 0.0)
                    part = mm(w9_ref[ky * 3 + kx], tap)
                    acc = part if acc is None else acc + part
            return acc

        def maxpool5(act):
            # Separable 5x5 / stride 1 / pad 2 max pool, f32 elementwise.
            hmax = act
            for dx in range(-R, R + 1):
                if dx == 0:
                    continue
                tap = jnp.where(col_ok[dx], shift(act, dx), neg_inf)
                hmax = jnp.maximum(hmax, tap)
            vmax = hmax
            for dy in range(-R, R + 1):
                if dy == 0:
                    continue
                tap = jnp.where(row_ok[dy], shift(hmax, dy * W), neg_inf)
                vmax = jnp.maximum(vmax, tap)
            return vmax

        # Unrolled loop over the NB images of this batch block: weights stay
        # resident across images and per-grid-step overhead is amortized.
        for i in range(NB):
            x = x_ref[i]                                          # (C1, HW)
            x1 = mm(w4_ref[...], conv3x3(w3_ref, mm(w1_ref[...], x)))
            # cv5 (1x1 over cat([x1,x2,x3,x4])) as 4 partial matmuls: the
            # concat never materializes and only one pooled activation is
            # live at a time.
            y = mm(w5_ref[0], x1)
            x2 = maxpool5(x1)
            y = y + mm(w5_ref[1], x2)
            x3 = maxpool5(x2)
            y = y + mm(w5_ref[2], x3)
            x4 = maxpool5(x3)
            y = y + mm(w5_ref[3], x4)
            y1 = conv3x3(w6_ref, y)
            y2 = mm(w2_ref[...], x)
            # cv7 (1x1 over cat([y1, y2])) as 2 partial matmuls.
            out = mm(w7_ref[0], y1) + mm(w7_ref[1], y2)           # (C2, HW)
            o_ref[i] = out.astype(o_ref.dtype)

    # Scoped-VMEM budget: weights + double-buffered I/O blocks + live f32
    # intermediates (default 16/32 MiB scoped limit is too small at real
    # SPPFCSPC channel counts).
    weight_bytes = sum(int(w.size) * cdt.itemsize
                       for w in (w1, w2, w3, w4, w5, w6, w7))
    io_bytes = 2 * (NB * C1 * HW * cdt.itemsize + NB * C2 * HW * 4)
    live_bytes = 16 * C_ * HW * 4
    est = weight_bytes + io_bytes + live_bytes + (2 << 20)
    vmem_limit = int(min(128 * 2 ** 20, max(32 * 2 ** 20, 2 * est)))

    def wspec(w):
        nd = w.ndim
        return pl.BlockSpec(w.shape, lambda n: (0,) * nd)

    out_flat = pl.pallas_call(
        kernel,
        out_shape=jax.ShapeDtypeStruct((N, C2, HW), x_nchw.dtype),
        grid_spec=pltpu.PrefetchScalarGridSpec(
            num_scalar_prefetch=0,
            grid=grid,
            in_specs=[
                pl.BlockSpec((1, HW), lambda n: (0, 0)),          # col_idx
                pl.BlockSpec((1, HW), lambda n: (0, 0)),          # row_idx
                pl.BlockSpec((NB, C1, HW), lambda n: (n, 0, 0)),  # x block
                wspec(w1), wspec(w2), wspec(w3), wspec(w4),
                wspec(w5), wspec(w6), wspec(w7),
            ],
            out_specs=pl.BlockSpec((NB, C2, HW), lambda n: (n, 0, 0)),
        ),
        compiler_params=pltpu.CompilerParams(
            dimension_semantics=("parallel",),
            vmem_limit_bytes=vmem_limit),
    )(col_idx, row_idx, x_flat, w1, w2, w3, w4, w5, w6, w7)

    return out_flat.reshape(N, C2, H, W)


def init_sppfcspc_params(key, c1, c2, e=0.5):
    """Deterministic init mirroring the PyTorch module's conv shapes (OIHW)."""
    c_ = int(2 * c2 * e)
    shapes = {"cv1": (c_, c1, 1, 1), "cv2": (c_, c1, 1, 1),
              "cv3": (c_, c_, 3, 3), "cv4": (c_, c_, 1, 1),
              "cv5": (c_, 4 * c_, 1, 1), "cv6": (c_, c_, 3, 3),
              "cv7": (c2, 2 * c_, 1, 1)}
    params = {}
    for name in sorted(shapes):
        shp = shapes[name]
        key, sub = jax.random.split(key)
        fan_in = shp[1] * shp[2] * shp[3]
        bound = 1.0 / (fan_in ** 0.5)
        params[name] = jax.random.uniform(sub, shp, jnp.float32,
                                          minval=-bound, maxval=bound)
    return params


def sppfcspc_reference(x, params):
    """Pure-JAX (XLA) reference of the PyTorch forward, for verification."""
    dn = ("NCHW", "OIHW", "NCHW")

    def conv(v, w, pad):
        return jax.lax.conv_general_dilated(
            v, w, window_strides=(1, 1),
            padding=[(pad, pad), (pad, pad)], dimension_numbers=dn)

    def pool(v):
        p = POOL_K // 2
        return jax.lax.reduce_window(
            v, -jnp.inf, jax.lax.max,
            window_dimensions=(1, 1, POOL_K, POOL_K),
            window_strides=(1, 1, 1, 1),
            padding=((0, 0), (0, 0), (p, p), (p, p)))

    x1 = conv(conv(conv(x, params["cv1"], 0), params["cv3"], 1),
              params["cv4"], 0)
    x2 = pool(x1)
    x3 = pool(x2)
    x4 = pool(x3)
    y1 = conv(conv(jnp.concatenate([x1, x2, x3, x4], axis=1),
                   params["cv5"], 0), params["cv6"], 1)
    y2 = conv(x, params["cv2"], 0)
    return conv(jnp.concatenate([y1, y2], axis=1), params["cv7"], 0)


if __name__ == "__main__":
    c1, c2 = 4, 4
    H, W = 16, 16

    key = jax.random.PRNGKey(0)
    kx, kp = jax.random.split(key)
    params = init_sppfcspc_params(kp, c1, c2)

    # Test batch 2 (NB=1, grid=2) and batch 4 (NB=2, grid=2), in both the
    # exact f32 path and the bf16-MXU fast path (f32 accumulation).
    for n_batch in (2, 4):
        x = jax.random.normal(jax.random.fold_in(kx, n_batch),
                              (n_batch, c1, H, W), jnp.float32)
        ref = sppfcspc_reference(x, params)
        scale = float(jnp.max(jnp.abs(ref)))
        for cdt, rel in ((jnp.float32, 1e-2), (jnp.bfloat16, 2e-2)):
            fwd = jax.jit(functools.partial(sppfcspc_forward,
                                            compute_dtype=cdt))
            out = jax.block_until_ready(fwd(x, params))
            assert out.shape == (n_batch, c2, H, W), out.shape
            assert bool(jnp.all(jnp.isfinite(out)))
            err = float(jnp.max(jnp.abs(out - ref)))
            assert err <= rel * scale + 1e-3, (n_batch, str(cdt), err, scale)

    print("KERNEL_OK")
</pallas_src>

<mosaic_0001>
module attributes {stable_mosaic.version = 11 : i64} {
  func.func @kernel(%arg0: i32, %arg1: memref<1x256xi32, #tpu.memory_space<vmem>>, %arg2: memref<1x256xi32, #tpu.memory_space<vmem>>, %arg3: memref<1x4x256xf32, #tpu.memory_space<vmem>>, %arg4: memref<4x4xf32, #tpu.memory_space<vmem>>, %arg5: memref<4x4xf32, #tpu.memory_space<vmem>>, %arg6: memref<9x4x4xf32, #tpu.memory_space<vmem>>, %arg7: memref<4x4xf32, #tpu.memory_space<vmem>>, %arg8: memref<4x4x4xf32, #tpu.memory_space<vmem>>, %arg9: memref<9x4x4xf32, #tpu.memory_space<vmem>>, %arg10: memref<2x4x4xf32, #tpu.memory_space<vmem>>, %arg11: memref<1x4x256xf32, #tpu.memory_space<vmem>>) attributes {dimension_semantics = [#tpu.dimension_semantics<parallel>], iteration_bounds = array<i64: 2>, scalar_prefetch = 0 : i64, scratch_operands = 0 : i64, tpu.core_type = #tpu.core_type<tc>, window_params = [{pipeline_mode = #tpu.pipeline_mode<synchronous>, transform_indices = @transform_0, window_bounds = array<i64: 1, 256>}, {pipeline_mode = #tpu.pipeline_mode<synchronous>, transform_indices = @transform_1, window_bounds = array<i64: 1, 256>}, {transform_indices = @transform_2, window_bounds = array<i64: 1, 4, 256>}, {pipeline_mode = #tpu.pipeline_mode<synchronous>, transform_indices = @transform_3, window_bounds = array<i64: 4, 4>}, {pipeline_mode = #tpu.pipeline_mode<synchronous>, transform_indices = @transform_4, window_bounds = array<i64: 4, 4>}, {pipeline_mode = #tpu.pipeline_mode<synchronous>, transform_indices = @transform_5, window_bounds = array<i64: 9, 4, 4>}, {pipeline_mode = #tpu.pipeline_mode<synchronous>, transform_indices = @transform_6, window_bounds = array<i64: 4, 4>}, {pipeline_mode = #tpu.pipeline_mode<synchronous>, transform_indices = @transform_7, window_bounds = array<i64: 4, 4, 4>}, {pipeline_mode = #tpu.pipeline_mode<synchronous>, transform_indices = @transform_8, window_bounds = array<i64: 9, 4, 4>}, {pipeline_mode = #tpu.pipeline_mode<synchronous>, transform_indices = @transform_9, window_bounds = array<i64: 2, 4, 4>}, {transform_indices = @transform_10, window_bounds = array<i64: 1, 4, 256>}]} {
    %c0 = arith.constant 0 : index
    %c0_0 = arith.constant 0 : index
    %0 = vector.load %arg1[%c0, %c0_0] : memref<1x256xi32, #tpu.memory_space<vmem>>, vector<1x256xi32>
    %c0_1 = arith.constant 0 : index
    %c0_2 = arith.constant 0 : index
    %1 = vector.load %arg2[%c0_1, %c0_2] : memref<1x256xi32, #tpu.memory_space<vmem>>, vector<1x256xi32>
    %c2_i32 = arith.constant 2 : i32
    %2 = vector.broadcast %c2_i32 : i32 to vector<1x256xi32>
    %3 = arith.cmpi sge, %0, %2 : vector<1x256xi32>
    %c18_i32 = arith.constant 18 : i32
    %4 = vector.broadcast %c18_i32 : i32 to vector<1x256xi32>
    %5 = arith.cmpi slt, %0, %4 : vector<1x256xi32>
    %6 = arith.andi %3, %5 : vector<1x256xi1>
    %c1_i32 = arith.constant 1 : i32
    %7 = vector.broadcast %c1_i32 : i32 to vector<1x256xi32>
    %8 = arith.cmpi sge, %0, %7 : vector<1x256xi32>
    %c17_i32 = arith.constant 17 : i32
    %9 = vector.broadcast %c17_i32 : i32 to vector<1x256xi32>
    %10 = arith.cmpi slt, %0, %9 : vector<1x256xi32>
    %11 = arith.andi %8, %10 : vector<1x256xi1>
    %c0_i32 = arith.constant 0 : i32
    %12 = vector.broadcast %c0_i32 : i32 to vector<1x256xi32>
    %13 = arith.cmpi sge, %0, %12 : vector<1x256xi32>
    %c16_i32 = arith.constant 16 : i32
    %14 = vector.broadcast %c16_i32 : i32 to vector<1x256xi32>
    %15 = arith.cmpi slt, %0, %14 : vector<1x256xi32>
    %16 = arith.andi %13, %15 : vector<1x256xi1>
    %c-1_i32 = arith.constant -1 : i32
    %17 = vector.broadcast %c-1_i32 : i32 to vector<1x256xi32>
    %18 = arith.cmpi sge, %0, %17 : vector<1x256xi32>
    %c15_i32 = arith.constant 15 : i32
    %19 = vector.broadcast %c15_i32 : i32 to vector<1x256xi32>
    %20 = arith.cmpi slt, %0, %19 : vector<1x256xi32>
    %21 = arith.andi %18, %20 : vector<1x256xi1>
    %c-2_i32 = arith.constant -2 : i32
    %22 = vector.broadcast %c-2_i32 : i32 to vector<1x256xi32>
    %23 = arith.cmpi sge, %0, %22 : vector<1x256xi32>
    %c14_i32 = arith.constant 14 : i32
    %24 = vector.broadcast %c14_i32 : i32 to vector<1x256xi32>
    %25 = arith.cmpi slt, %0, %24 : vector<1x256xi32>
    %26 = arith.andi %23, %25 : vector<1x256xi1>
    %c2_i32_3 = arith.constant 2 : i32
    %27 = vector.broadcast %c2_i32_3 : i32 to vector<1x256xi32>
    %28 = arith.cmpi sge, %1, %27 : vector<1x256xi32>
    %c18_i32_4 = arith.constant 18 : i32
    %29 = vector.broadcast %c18_i32_4 : i32 to vector<1x256xi32>
    %30 = arith.cmpi slt, %1, %29 : vector<1x256xi32>
    %31 = arith.andi %28, %30 : vector<1x256xi1>
    %c1_i32_5 = arith.constant 1 : i32
    %32 = vector.broadcast %c1_i32_5 : i32 to vector<1x256xi32>
    %33 = arith.cmpi sge, %1, %32 : vector<1x256xi32>
    %c17_i32_6 = arith.constant 17 : i32
    %34 = vector.broadcast %c17_i32_6 : i32 to vector<1x256xi32>
    %35 = arith.cmpi slt, %1, %34 : vector<1x256xi32>
    %36 = arith.andi %33, %35 : vector<1x256xi1>
    %c0_i32_7 = arith.constant 0 : i32
    %37 = vector.broadcast %c0_i32_7 : i32 to vector<1x256xi32>
    %38 = arith.cmpi sge, %1, %37 : vector<1x256xi32>
    %c16_i32_8 = arith.constant 16 : i32
    %39 = vector.broadcast %c16_i32_8 : i32 to vector<1x256xi32>
    %40 = arith.cmpi slt, %1, %39 : vector<1x256xi32>
    %41 = arith.andi %38, %40 : vector<1x256xi1>
    %c-1_i32_9 = arith.constant -1 : i32
    %42 = vector.broadcast %c-1_i32_9 : i32 to vector<1x256xi32>
    %43 = arith.cmpi sge, %1, %42 : vector<1x256xi32>
    %c15_i32_10 = arith.constant 15 : i32
    %44 = vector.broadcast %c15_i32_10 : i32 to vector<1x256xi32>
    %45 = arith.cmpi slt, %1, %44 : vector<1x256xi32>
    %46 = arith.andi %43, %45 : vector<1x256xi1>
    %c-2_i32_11 = arith.constant -2 : i32
    %47 = vector.broadcast %c-2_i32_11 : i32 to vector<1x256xi32>
    %48 = arith.cmpi sge, %1, %47 : vector<1x256xi32>
    %c14_i32_12 = arith.constant 14 : i32
    %49 = vector.broadcast %c14_i32_12 : i32 to vector<1x256xi32>
    %50 = arith.cmpi slt, %1, %49 : vector<1x256xi32>
    %51 = arith.andi %48, %50 : vector<1x256xi1>
    %52 = arith.andi %36, %11 : vector<1x256xi1>
    %53 = arith.andi %36, %16 : vector<1x256xi1>
    %54 = arith.andi %36, %21 : vector<1x256xi1>
    %55 = arith.andi %41, %11 : vector<1x256xi1>
    %56 = arith.andi %41, %21 : vector<1x256xi1>
    %57 = arith.andi %46, %11 : vector<1x256xi1>
    %58 = arith.andi %46, %16 : vector<1x256xi1>
    %59 = arith.andi %46, %21 : vector<1x256xi1>
    %c0_13 = arith.constant 0 : index
    %c0_14 = arith.constant 0 : index
    %c0_15 = arith.constant 0 : index
    %60 = vector.load %arg3[%c0_13, %c0_14, %c0_15] : memref<1x4x256xf32, #tpu.memory_space<vmem>>, vector<1x4x256xf32>
    %61 = vector.shape_cast %60 : vector<1x4x256xf32> to vector<4x256xf32>
    %c0_16 = arith.constant 0 : index
    %c0_17 = arith.constant 0 : index
    %62 = vector.load %arg7[%c0_16, %c0_17] : memref<4x4xf32, #tpu.memory_space<vmem>>, vector<4x4xf32>
    %c0_18 = arith.constant 0 : index
    %c0_19 = arith.constant 0 : index
    %63 = vector.load %arg4[%c0_18, %c0_19] : memref<4x4xf32, #tpu.memory_space<vmem>>, vector<4x4xf32>
    %cst = arith.constant dense<0.000000e+00> : vector<4x256xf32>
    %64 = tpu.matmul %63, %61, %cst {dimension_numbers = #tpu.dot_dimension_numbers<[1], [0], [0], [1], [0, 0, 1, 1], [], []>} : vector<4x4xf32>, vector<4x256xf32>, vector<4x256xf32> -> vector<4x256xf32>
    %c17_i32_20 = arith.constant 17 : i32
    %65 = tpu.dynamic_rotate %64 by %c17_i32_20 dim 1 : vector<4x256xf32>, i32 -> vector<4x256xf32>
    %cst_21 = arith.constant 0.000000e+00 : f32
    %66 = vector.shape_cast %52 : vector<1x256xi1> to vector<1x256xi1>
    %67 = vector.broadcast %66 : vector<1x256xi1> to vector<4x256xi1>
    %68 = vector.broadcast %cst_21 : f32 to vector<4x256xf32>
    %69 = arith.select %67, %65, %68 : vector<4x256xi1>, vector<4x256xf32>
    %c0_22 = arith.constant 0 : index
    %c0_23 = arith.constant 0 : index
    %c0_24 = arith.constant 0 : index
    %70 = vector.load %arg6[%c0_22, %c0_23, %c0_24] : memref<9x4x4xf32, #tpu.memory_space<vmem>>, vector<1x4x4xf32>
    %71 = vector.shape_cast %70 : vector<1x4x4xf32> to vector<4x4xf32>
    %cst_25 = arith.constant dense<0.000000e+00> : vector<4x256xf32>
    %72 = tpu.matmul %71, %69, %cst_25 {dimension_numbers = #tpu.dot_dimension_numbers<[1], [0], [0], [1], [0, 0, 1, 1], [], []>} : vector<4x4xf32>, vector<4x256xf32>, vector<4x256xf32> -> vector<4x256xf32>
    %c16_i32_26 = arith.constant 16 : i32
    %73 = tpu.dynamic_rotate %64 by %c16_i32_26 dim 1 : vector<4x256xf32>, i32 -> vector<4x256xf32>
    %cst_27 = arith.constant 0.000000e+00 : f32
    %74 = vector.shape_cast %53 : vector<1x256xi1> to vector<1x256xi1>
    %75 = vector.broadcast %74 : vector<1x256xi1> to vector<4x256xi1>
    %76 = vector.broadcast %cst_27 : f32 to vector<4x256xf32>
    %77 = arith.select %75, %73, %76 : vector<4x256xi1>, vector<4x256xf32>
    %c1 = arith.constant 1 : index
    %c0_28 = arith.constant 0 : index
    %c0_29 = arith.constant 0 : index
    %78 = vector.load %arg6[%c1, %c0_28, %c0_29] : memref<9x4x4xf32, #tpu.memory_space<vmem>>, vector<1x4x4xf32>
    %79 = vector.shape_cast %78 : vector<1x4x4xf32> to vector<4x4xf32>
    %cst_30 = arith.constant dense<0.000000e+00> : vector<4x256xf32>
    %80 = tpu.matmul %79, %77, %cst_30 {dimension_numbers = #tpu.dot_dimension_numbers<[1], [0], [0], [1], [0, 0, 1, 1], [], []>} : vector<4x4xf32>, vector<4x256xf32>, vector<4x256xf32> -> vector<4x256xf32>
    %81 = arith.addf %72, %80 : vector<4x256xf32>
    %c15_i32_31 = arith.constant 15 : i32
    %82 = tpu.dynamic_rotate %64 by %c15_i32_31 dim 1 : vector<4x256xf32>, i32 -> vector<4x256xf32>
    %cst_32 = arith.constant 0.000000e+00 : f32
    %83 = vector.shape_cast %54 : vector<1x256xi1> to vector<1x256xi1>
    %84 = vector.broadcast %83 : vector<1x256xi1> to vector<4x256xi1>
    %85 = vector.broadcast %cst_32 : f32 to vector<4x256xf32>
    %86 = arith.select %84, %82, %85 : vector<4x256xi1>, vector<4x256xf32>
    %c2 = arith.constant 2 : index
    %c0_33 = arith.constant 0 : index
    %c0_34 = arith.constant 0 : index
    %87 = vector.load %arg6[%c2, %c0_33, %c0_34] : memref<9x4x4xf32, #tpu.memory_space<vmem>>, vector<1x4x4xf32>
    %88 = vector.shape_cast %87 : vector<1x4x4xf32> to vector<4x4xf32>
    %cst_35 = arith.constant dense<0.000000e+00> : vector<4x256xf32>
    %89 = tpu.matmul %88, %86, %cst_35 {dimension_numbers = #tpu.dot_dimension_numbers<[1], [0], [0], [1], [0, 0, 1, 1], [], []>} : vector<4x4xf32>, vector<4x256xf32>, vector<4x256xf32> -> vector<4x256xf32>
    %90 = arith.addf %81, %89 : vector<4x256xf32>
    %c1_i32_36 = arith.constant 1 : i32
    %91 = tpu.dynamic_rotate %64 by %c1_i32_36 dim 1 : vector<4x256xf32>, i32 -> vector<4x256xf32>
    %cst_37 = arith.constant 0.000000e+00 : f32
    %92 = vector.shape_cast %55 : vector<1x256xi1> to vector<1x256xi1>
    %93 = vector.broadcast %92 : vector<1x256xi1> to vector<4x256xi1>
    %94 = vector.broadcast %cst_37 : f32 to vector<4x256xf32>
    %95 = arith.select %93, %91, %94 : vector<4x256xi1>, vector<4x256xf32>
    %c3 = arith.constant 3 : index
    %c0_38 = arith.constant 0 : index
    %c0_39 = arith.constant 0 : index
    %96 = vector.load %arg6[%c3, %c0_38, %c0_39] : memref<9x4x4xf32, #tpu.memory_space<vmem>>, vector<1x4x4xf32>
    %97 = vector.shape_cast %96 : vector<1x4x4xf32> to vector<4x4xf32>
    %cst_40 = arith.constant dense<0.000000e+00> : vector<4x256xf32>
    %98 = tpu.matmul %97, %95, %cst_40 {dimension_numbers = #tpu.dot_dimension_numbers<[1], [0], [0], [1], [0, 0, 1, 1], [], []>} : vector<4x4xf32>, vector<4x256xf32>, vector<4x256xf32> -> vector<4x256xf32>
    %99 = arith.addf %90, %98 : vector<4x256xf32>
    %c4 = arith.constant 4 : index
    %c0_41 = arith.constant 0 : index
    %c0_42 = arith.constant 0 : index
    %100 = vector.load %arg6[%c4, %c0_41, %c0_42] : memref<9x4x4xf32, #tpu.memory_space<vmem>>, vector<1x4x4xf32>
    %101 = vector.shape_cast %100 : vector<1x4x4xf32> to vector<4x4xf32>
    %cst_43 = arith.constant dense<0.000000e+00> : vector<4x256xf32>
    %102 = tpu.matmul %101, %64, %cst_43 {dimension_numbers = #tpu.dot_dimension_numbers<[1], [0], [0], [1], [0, 0, 1, 1], [], []>} : vector<4x4xf32>, vector<4x256xf32>, vector<4x256xf32> -> vector<4x256xf32>
    %103 = arith.addf %99, %102 : vector<4x256xf32>
    %c255_i32 = arith.constant 255 : i32
    %104 = tpu.dynamic_rotate %64 by %c255_i32 dim 1 : vector<4x256xf32>, i32 -> vector<4x256xf32>
    %cst_44 = arith.constant 0.000000e+00 : f32
    %105 = vector.shape_cast %56 : vector<1x256xi1> to vector<1x256xi1>
    %106 = vector.broadcast %105 : vector<1x256xi1> to vector<4x256xi1>
    %107 = vector.broadcast %cst_44 : f32 to vector<4x256xf32>
    %108 = arith.select %106, %104, %107 : vector<4x256xi1>, vector<4x256xf32>
    %c5 = arith.constant 5 : index
    %c0_45 = arith.constant 0 : index
    %c0_46 = arith.constant 0 : index
    %109 = vector.load %arg6[%c5, %c0_45, %c0_46] : memref<9x4x4xf32, #tpu.memory_space<vmem>>, vector<1x4x4xf32>
    %110 = vector.shape_cast %109 : vector<1x4x4xf32> to vector<4x4xf32>
    %cst_47 = arith.constant dense<0.000000e+00> : vector<4x256xf32>
    %111 = tpu.matmul %110, %108, %cst_47 {dimension_numbers = #tpu.dot_dimension_numbers<[1], [0], [0], [1], [0, 0, 1, 1], [], []>} : vector<4x4xf32>, vector<4x256xf32>, vector<4x256xf32> -> vector<4x256xf32>
    %112 = arith.addf %103, %111 : vector<4x256xf32>
    %c241_i32 = arith.constant 241 : i32
    %113 = tpu.dynamic_rotate %64 by %c241_i32 dim 1 : vector<4x256xf32>, i32 -> vector<4x256xf32>
    %cst_48 = arith.constant 0.000000e+00 : f32
    %114 = vector.shape_cast %57 : vector<1x256xi1> to vector<1x256xi1>
    %115 = vector.broadcast %114 : vector<1x256xi1> to vector<4x256xi1>
    %116 = vector.broadcast %cst_48 : f32 to vector<4x256xf32>
    %117 = arith.select %115, %113, %116 : vector<4x256xi1>, vector<4x256xf32>
    %c6 = arith.constant 6 : index
    %c0_49 = arith.constant 0 : index
    %c0_50 = arith.constant 0 : index
    %118 = vector.load %arg6[%c6, %c0_49, %c0_50] : memref<9x4x4xf32, #tpu.memory_space<vmem>>, vector<1x4x4xf32>
    %119 = vector.shape_cast %118 : vector<1x4x4xf32> to vector<4x4xf32>
    %cst_51 = arith.constant dense<0.000000e+00> : vector<4x256xf32>
    %120 = tpu.matmul %119, %117, %cst_51 {dimension_numbers = #tpu.dot_dimension_numbers<[1], [0], [0], [1], [0, 0, 1, 1], [], []>} : vector<4x4xf32>, vector<4x256xf32>, vector<4x256xf32> -> vector<4x256xf32>
    %121 = arith.addf %112, %120 : vector<4x256xf32>
    %c240_i32 = arith.constant 240 : i32
    %122 = tpu.dynamic_rotate %64 by %c240_i32 dim 1 : vector<4x256xf32>, i32 -> vector<4x256xf32>
    %cst_52 = arith.constant 0.000000e+00 : f32
    %123 = vector.shape_cast %58 : vector<1x256xi1> to vector<1x256xi1>
    %124 = vector.broadcast %123 : vector<1x256xi1> to vector<4x256xi1>
    %125 = vector.broadcast %cst_52 : f32 to vector<4x256xf32>
    %126 = arith.select %124, %122, %125 : vector<4x256xi1>, vector<4x256xf32>
    %c7 = arith.constant 7 : index
    %c0_53 = arith.constant 0 : index
    %c0_54 = arith.constant 0 : index
    %127 = vector.load %arg6[%c7, %c0_53, %c0_54] : memref<9x4x4xf32, #tpu.memory_space<vmem>>, vector<1x4x4xf32>
    %128 = vector.shape_cast %127 : vector<1x4x4xf32> to vector<4x4xf32>
    %cst_55 = arith.constant dense<0.000000e+00> : vector<4x256xf32>
    %129 = tpu.matmul %128, %126, %cst_55 {dimension_numbers = #tpu.dot_dimension_numbers<[1], [0], [0], [1], [0, 0, 1, 1], [], []>} : vector<4x4xf32>, vector<4x256xf32>, vector<4x256xf32> -> vector<4x256xf32>
    %130 = arith.addf %121, %129 : vector<4x256xf32>
    %c239_i32 = arith.constant 239 : i32
    %131 = tpu.dynamic_rotate %64 by %c239_i32 dim 1 : vector<4x256xf32>, i32 -> vector<4x256xf32>
    %cst_56 = arith.constant 0.000000e+00 : f32
    %132 = vector.shape_cast %59 : vector<1x256xi1> to vector<1x256xi1>
    %133 = vector.broadcast %132 : vector<1x256xi1> to vector<4x256xi1>
    %134 = vector.broadcast %cst_56 : f32 to vector<4x256xf32>
    %135 = arith.select %133, %131, %134 : vector<4x256xi1>, vector<4x256xf32>
    %c8 = arith.constant 8 : index
    %c0_57 = arith.constant 0 : index
    %c0_58 = arith.constant 0 : index
    %136 = vector.load %arg6[%c8, %c0_57, %c0_58] : memref<9x4x4xf32, #tpu.memory_space<vmem>>, vector<1x4x4xf32>
    %137 = vector.shape_cast %136 : vector<1x4x4xf32> to vector<4x4xf32>
    %cst_59 = arith.constant dense<0.000000e+00> : vector<4x256xf32>
    %138 = tpu.matmul %137, %135, %cst_59 {dimension_numbers = #tpu.dot_dimension_numbers<[1], [0], [0], [1], [0, 0, 1, 1], [], []>} : vector<4x4xf32>, vector<4x256xf32>, vector<4x256xf32> -> vector<4x256xf32>
    %139 = arith.addf %130, %138 : vector<4x256xf32>
    %cst_60 = arith.constant dense<0.000000e+00> : vector<4x256xf32>
    %140 = tpu.matmul %62, %139, %cst_60 {dimension_numbers = #tpu.dot_dimension_numbers<[1], [0], [0], [1], [0, 0, 1, 1], [], []>} : vector<4x4xf32>, vector<4x256xf32>, vector<4x256xf32> -> vector<4x256xf32>
    %c0_61 = arith.constant 0 : index
    %c0_62 = arith.constant 0 : index
    %c0_63 = arith.constant 0 : index
    %141 = vector.load %arg8[%c0_61, %c0_62, %c0_63] : memref<4x4x4xf32, #tpu.memory_space<vmem>>, vector<1x4x4xf32>
    %142 = vector.shape_cast %141 : vector<1x4x4xf32> to vector<4x4xf32>
    %cst_64 = arith.constant dense<0.000000e+00> : vector<4x256xf32>
    %143 = tpu.matmul %142, %140, %cst_64 {dimension_numbers = #tpu.dot_dimension_numbers<[1], [0], [0], [1], [0, 0, 1, 1], [], []>} : vector<4x4xf32>, vector<4x256xf32>, vector<4x256xf32> -> vector<4x256xf32>
    %c2_i32_65 = arith.constant 2 : i32
    %144 = tpu.dynamic_rotate %140 by %c2_i32_65 dim 1 : vector<4x256xf32>, i32 -> vector<4x256xf32>
    %cst_66 = arith.constant 0xFF800000 : f32
    %145 = vector.shape_cast %6 : vector<1x256xi1> to vector<1x256xi1>
    %146 = vector.broadcast %145 : vector<1x256xi1> to vector<4x256xi1>
    %147 = vector.broadcast %cst_66 : f32 to vector<4x256xf32>
    %148 = arith.select %146, %144, %147 : vector<4x256xi1>, vector<4x256xf32>
    %149 = arith.maximumf %140, %148 : vector<4x256xf32>
    %c1_i32_67 = arith.constant 1 : i32
    %150 = tpu.dynamic_rotate %140 by %c1_i32_67 dim 1 : vector<4x256xf32>, i32 -> vector<4x256xf32>
    %cst_68 = arith.constant 0xFF800000 : f32
    %151 = vector.shape_cast %11 : vector<1x256xi1> to vector<1x256xi1>
    %152 = vector.broadcast %151 : vector<1x256xi1> to vector<4x256xi1>
    %153 = vector.broadcast %cst_68 : f32 to vector<4x256xf32>
    %154 = arith.select %152, %150, %153 : vector<4x256xi1>, vector<4x256xf32>
    %155 = arith.maximumf %149, %154 : vector<4x256xf32>
    %c255_i32_69 = arith.constant 255 : i32
    %156 = tpu.dynamic_rotate %140 by %c255_i32_69 dim 1 : vector<4x256xf32>, i32 -> vector<4x256xf32>
    %cst_70 = arith.constant 0xFF800000 : f32
    %157 = vector.shape_cast %21 : vector<1x256xi1> to vector<1x256xi1>
    %158 = vector.broadcast %157 : vector<1x256xi1> to vector<4x256xi1>
    %159 = vector.broadcast %cst_70 : f32 to vector<4x256xf32>
    %160 = arith.select %158, %156, %159 : vector<4x256xi1>, vector<4x256xf32>
    %161 = arith.maximumf %155, %160 : vector<4x256xf32>
    %c254_i32 = arith.constant 254 : i32
    %162 = tpu.dynamic_rotate %140 by %c254_i32 dim 1 : vector<4x256xf32>, i32 -> vector<4x256xf32>
    %cst_71 = arith.constant 0xFF800000 : f32
    %163 = vector.shape_cast %26 : vector<1x256xi1> to vector<1x256xi1>
    %164 = vector.broadcast %163 : vector<1x256xi1> to vector<4x256xi1>
    %165 = vector.broadcast %cst_71 : f32 to vector<4x256xf32>
    %166 = arith.select %164, %162, %165 : vector<4x256xi1>, vector<4x256xf32>
    %167 = arith.maximumf %161, %166 : vector<4x256xf32>
    %c32_i32 = arith.constant 32 : i32
    %168 = tpu.dynamic_rotate %167 by %c32_i32 dim 1 : vector<4x256xf32>, i32 -> vector<4x256xf32>
    %cst_72 = arith.constant 0xFF800000 : f32
    %169 = vector.shape_cast %31 : vector<1x256xi1> to vector<1x256xi1>
    %170 = vector.broadcast %169 : vector<1x256xi1> to vector<4x256xi1>
    %171 = vector.broadcast %cst_72 : f32 to vector<4x256xf32>
    %172 = arith.select %170, %168, %171 : vector<4x256xi1>, vector<4x256xf32>
    %173 = arith.maximumf %167, %172 : vector<4x256xf32>
    %c16_i32_73 = arith.constant 16 : i32
    %174 = tpu.dynamic_rotate %167 by %c16_i32_73 dim 1 : vector<4x256xf32>, i32 -> vector<4x256xf32>
    %cst_74 = arith.constant 0xFF800000 : f32
    %175 = vector.shape_cast %36 : vector<1x256xi1> to vector<1x256xi1>
    %176 = vector.broadcast %175 : vector<1x256xi1> to vector<4x256xi1>
    %177 = vector.broadcast %cst_74 : f32 to vector<4x256xf32>
    %178 = arith.select %176, %174, %177 : vector<4x256xi1>, vector<4x256xf32>
    %179 = arith.maximumf %173, %178 : vector<4x256xf32>
    %c240_i32_75 = arith.constant 240 : i32
    %180 = tpu.dynamic_rotate %167 by %c240_i32_75 dim 1 : vector<4x256xf32>, i32 -> vector<4x256xf32>
    %cst_76 = arith.constant 0xFF800000 : f32
    %181 = vector.shape_cast %46 : vector<1x256xi1> to vector<1x256xi1>
    %182 = vector.broadcast %181 : vector<1x256xi1> to vector<4x256xi1>
    %183 = vector.broadcast %cst_76 : f32 to vector<4x256xf32>
    %184 = arith.select %182, %180, %183 : vector<4x256xi1>, vector<4x256xf32>
    %185 = arith.maximumf %179, %184 : vector<4x256xf32>
    %c224_i32 = arith.constant 224 : i32
    %186 = tpu.dynamic_rotate %167 by %c224_i32 dim 1 : vector<4x256xf32>, i32 -> vector<4x256xf32>
    %cst_77 = arith.constant 0xFF800000 : f32
    %187 = vector.shape_cast %51 : vector<1x256xi1> to vector<1x256xi1>
    %188 = vector.broadcast %187 : vector<1x256xi1> to vector<4x256xi1>
    %189 = vector.broadcast %cst_77 : f32 to vector<4x256xf32>
    %190 = arith.select %188, %186, %189 : vector<4x256xi1>, vector<4x256xf32>
    %191 = arith.maximumf %185, %190 : vector<4x256xf32>
    %c1_78 = arith.constant 1 : index
    %c0_79 = arith.constant 0 : index
    %c0_80 = arith.constant 0 : index
    %192 = vector.load %arg8[%c1_78, %c0_79, %c0_80] : memref<4x4x4xf32, #tpu.memory_space<vmem>>, vector<1x4x4xf32>
    %193 = vector.shape_cast %192 : vector<1x4x4xf32> to vector<4x4xf32>
    %cst_81 = arith.constant dense<0.000000e+00> : vector<4x256xf32>
    %194 = tpu.matmul %193, %191, %cst_81 {dimension_numbers = #tpu.dot_dimension_numbers<[1], [0], [0], [1], [0, 0, 1, 1], [], []>} : vector<4x4xf32>, vector<4x256xf32>, vector<4x256xf32> -> vector<4x256xf32>
    %195 = arith.addf %143, %194 : vector<4x256xf32>
    %c2_i32_82 = arith.constant 2 : i32
    %196 = tpu.dynamic_rotate %191 by %c2_i32_82 dim 1 : vector<4x256xf32>, i32 -> vector<4x256xf32>
    %cst_83 = arith.constant 0xFF800000 : f32
    %197 = vector.shape_cast %6 : vector<1x256xi1> to vector<1x256xi1>
    %198 = vector.broadcast %197 : vector<1x256xi1> to vector<4x256xi1>
    %199 = vector.broadcast %cst_83 : f32 to vector<4x256xf32>
    %200 = arith.select %198, %196, %199 : vector<4x256xi1>, vector<4x256xf32>
    %201 = arith.maximumf %191, %200 : vector<4x256xf32>
    %c1_i32_84 = arith.constant 1 : i32
    %202 = tpu.dynamic_rotate %191 by %c1_i32_84 dim 1 : vector<4x256xf32>, i32 -> vector<4x256xf32>
    %cst_85 = arith.constant 0xFF800000 : f32
    %203 = vector.shape_cast %11 : vector<1x256xi1> to vector<1x256xi1>
    %204 = vector.broadcast %203 : vector<1x256xi1> to vector<4x256xi1>
    %205 = vector.broadcast %cst_85 : f32 to vector<4x256xf32>
    %206 = arith.select %204, %202, %205 : vector<4x256xi1>, vector<4x256xf32>
    %207 = arith.maximumf %201, %206 : vector<4x256xf32>
    %c255_i32_86 = arith.constant 255 : i32
    %208 = tpu.dynamic_rotate %191 by %c255_i32_86 dim 1 : vector<4x256xf32>, i32 -> vector<4x256xf32>
    %cst_87 = arith.constant 0xFF800000 : f32
    %209 = vector.shape_cast %21 : vector<1x256xi1> to vector<1x256xi1>
    %210 = vector.broadcast %209 : vector<1x256xi1> to vector<4x256xi1>
    %211 = vector.broadcast %cst_87 : f32 to vector<4x256xf32>
    %212 = arith.select %210, %208, %211 : vector<4x256xi1>, vector<4x256xf32>
    %213 = arith.maximumf %207, %212 : vector<4x256xf32>
    %c254_i32_88 = arith.constant 254 : i32
    %214 = tpu.dynamic_rotate %191 by %c254_i32_88 dim 1 : vector<4x256xf32>, i32 -> vector<4x256xf32>
    %cst_89 = arith.constant 0xFF800000 : f32
    %215 = vector.shape_cast %26 : vector<1x256xi1> to vector<1x256xi1>
    %216 = vector.broadcast %215 : vector<1x256xi1> to vector<4x256xi1>
    %217 = vector.broadcast %cst_89 : f32 to vector<4x256xf32>
    %218 = arith.select %216, %214, %217 : vector<4x256xi1>, vector<4x256xf32>
    %219 = arith.maximumf %213, %218 : vector<4x256xf32>
    %c32_i32_90 = arith.constant 32 : i32
    %220 = tpu.dynamic_rotate %219 by %c32_i32_90 dim 1 : vector<4x256xf32>, i32 -> vector<4x256xf32>
    %cst_91 = arith.constant 0xFF800000 : f32
    %221 = vector.shape_cast %31 : vector<1x256xi1> to vector<1x256xi1>
    %222 = vector.broadcast %221 : vector<1x256xi1> to vector<4x256xi1>
    %223 = vector.broadcast %cst_91 : f32 to vector<4x256xf32>
    %224 = arith.select %222, %220, %223 : vector<4x256xi1>, vector<4x256xf32>
    %225 = arith.maximumf %219, %224 : vector<4x256xf32>
    %c16_i32_92 = arith.constant 16 : i32
    %226 = tpu.dynamic_rotate %219 by %c16_i32_92 dim 1 : vector<4x256xf32>, i32 -> vector<4x256xf32>
    %cst_93 = arith.constant 0xFF800000 : f32
    %227 = vector.shape_cast %36 : vector<1x256xi1> to vector<1x256xi1>
    %228 = vector.broadcast %227 : vector<1x256xi1> to vector<4x256xi1>
    %229 = vector.broadcast %cst_93 : f32 to vector<4x256xf32>
    %230 = arith.select %228, %226, %229 : vector<4x256xi1>, vector<4x256xf32>
    %231 = arith.maximumf %225, %230 : vector<4x256xf32>
    %c240_i32_94 = arith.constant 240 : i32
    %232 = tpu.dynamic_rotate %219 by %c240_i32_94 dim 1 : vector<4x256xf32>, i32 -> vector<4x256xf32>
    %cst_95 = arith.constant 0xFF800000 : f32
    %233 = vector.shape_cast %46 : vector<1x256xi1> to vector<1x256xi1>
    %234 = vector.broadcast %233 : vector<1x256xi1> to vector<4x256xi1>
    %235 = vector.broadcast %cst_95 : f32 to vector<4x256xf32>
    %236 = arith.select %234, %232, %235 : vector<4x256xi1>, vector<4x256xf32>
    %237 = arith.maximumf %231, %236 : vector<4x256xf32>
    %c224_i32_96 = arith.constant 224 : i32
    %238 = tpu.dynamic_rotate %219 by %c224_i32_96 dim 1 : vector<4x256xf32>, i32 -> vector<4x256xf32>
    %cst_97 = arith.constant 0xFF800000 : f32
    %239 = vector.shape_cast %51 : vector<1x256xi1> to vector<1x256xi1>
    %240 = vector.broadcast %239 : vector<1x256xi1> to vector<4x256xi1>
    %241 = vector.broadcast %cst_97 : f32 to vector<4x256xf32>
    %242 = arith.select %240, %238, %241 : vector<4x256xi1>, vector<4x256xf32>
    %243 = arith.maximumf %237, %242 : vector<4x256xf32>
    %c2_98 = arith.constant 2 : index
    %c0_99 = arith.constant 0 : index
    %c0_100 = arith.constant 0 : index
    %244 = vector.load %arg8[%c2_98, %c0_99, %c0_100] : memref<4x4x4xf32, #tpu.memory_space<vmem>>, vector<1x4x4xf32>
    %245 = vector.shape_cast %244 : vector<1x4x4xf32> to vector<4x4xf32>
    %cst_101 = arith.constant dense<0.000000e+00> : vector<4x256xf32>
    %246 = tpu.matmul %245, %243, %cst_101 {dimension_numbers = #tpu.dot_dimension_numbers<[1], [0], [0], [1], [0, 0, 1, 1], [], []>} : vector<4x4xf32>, vector<4x256xf32>, vector<4x256xf32> -> vector<4x256xf32>
    %247 = arith.addf %195, %246 : vector<4x256xf32>
    %c2_i32_102 = arith.constant 2 : i32
    %248 = tpu.dynamic_rotate %243 by %c2_i32_102 dim 1 : vector<4x256xf32>, i32 -> vector<4x256xf32>
    %cst_103 = arith.constant 0xFF800000 : f32
    %249 = vector.shape_cast %6 : vector<1x256xi1> to vector<1x256xi1>
    %250 = vector.broadcast %249 : vector<1x256xi1> to vector<4x256xi1>
    %251 = vector.broadcast %cst_103 : f32 to vector<4x256xf32>
    %252 = arith.select %250, %248, %251 : vector<4x256xi1>, vector<4x256xf32>
    %253 = arith.maximumf %243, %252 : vector<4x256xf32>
    %c1_i32_104 = arith.constant 1 : i32
    %254 = tpu.dynamic_rotate %243 by %c1_i32_104 dim 1 : vector<4x256xf32>, i32 -> vector<4x256xf32>
    %cst_105 = arith.constant 0xFF800000 : f32
    %255 = vector.shape_cast %11 : vector<1x256xi1> to vector<1x256xi1>
    %256 = vector.broadcast %255 : vector<1x256xi1> to vector<4x256xi1>
    %257 = vector.broadcast %cst_105 : f32 to vector<4x256xf32>
    %258 = arith.select %256, %254, %257 : vector<4x256xi1>, vector<4x256xf32>
    %259 = arith.maximumf %253, %258 : vector<4x256xf32>
    %c255_i32_106 = arith.constant 255 : i32
    %260 = tpu.dynamic_rotate %243 by %c255_i32_106 dim 1 : vector<4x256xf32>, i32 -> vector<4x256xf32>
    %cst_107 = arith.constant 0xFF800000 : f32
    %261 = vector.shape_cast %21 : vector<1x256xi1> to vector<1x256xi1>
    %262 = vector.broadcast %261 : vector<1x256xi1> to vector<4x256xi1>
    %263 = vector.broadcast %cst_107 : f32 to vector<4x256xf32>
    %264 = arith.select %262, %260, %263 : vector<4x256xi1>, vector<4x256xf32>
    %265 = arith.maximumf %259, %264 : vector<4x256xf32>
    %c254_i32_108 = arith.constant 254 : i32
    %266 = tpu.dynamic_rotate %243 by %c254_i32_108 dim 1 : vector<4x256xf32>, i32 -> vector<4x256xf32>
    %cst_109 = arith.constant 0xFF800000 : f32
    %267 = vector.shape_cast %26 : vector<1x256xi1> to vector<1x256xi1>
    %268 = vector.broadcast %267 : vector<1x256xi1> to vector<4x256xi1>
    %269 = vector.broadcast %cst_109 : f32 to vector<4x256xf32>
    %270 = arith.select %268, %266, %269 : vector<4x256xi1>, vector<4x256xf32>
    %271 = arith.maximumf %265, %270 : vector<4x256xf32>
    %c32_i32_110 = arith.constant 32 : i32
    %272 = tpu.dynamic_rotate %271 by %c32_i32_110 dim 1 : vector<4x256xf32>, i32 -> vector<4x256xf32>
    %cst_111 = arith.constant 0xFF800000 : f32
    %273 = vector.shape_cast %31 : vector<1x256xi1> to vector<1x256xi1>
    %274 = vector.broadcast %273 : vector<1x256xi1> to vector<4x256xi1>
    %275 = vector.broadcast %cst_111 : f32 to vector<4x256xf32>
    %276 = arith.select %274, %272, %275 : vector<4x256xi1>, vector<4x256xf32>
    %277 = arith.maximumf %271, %276 : vector<4x256xf32>
    %c16_i32_112 = arith.constant 16 : i32
    %278 = tpu.dynamic_rotate %271 by %c16_i32_112 dim 1 : vector<4x256xf32>, i32 -> vector<4x256xf32>
    %cst_113 = arith.constant 0xFF800000 : f32
    %279 = vector.shape_cast %36 : vector<1x256xi1> to vector<1x256xi1>
    %280 = vector.broadcast %279 : vector<1x256xi1> to vector<4x256xi1>
    %281 = vector.broadcast %cst_113 : f32 to vector<4x256xf32>
    %282 = arith.select %280, %278, %281 : vector<4x256xi1>, vector<4x256xf32>
    %283 = arith.maximumf %277, %282 : vector<4x256xf32>
    %c240_i32_114 = arith.constant 240 : i32
    %284 = tpu.dynamic_rotate %271 by %c240_i32_114 dim 1 : vector<4x256xf32>, i32 -> vector<4x256xf32>
    %cst_115 = arith.constant 0xFF800000 : f32
    %285 = vector.shape_cast %46 : vector<1x256xi1> to vector<1x256xi1>
    %286 = vector.broadcast %285 : vector<1x256xi1> to vector<4x256xi1>
    %287 = vector.broadcast %cst_115 : f32 to vector<4x256xf32>
    %288 = arith.select %286, %284, %287 : vector<4x256xi1>, vector<4x256xf32>
    %289 = arith.maximumf %283, %288 : vector<4x256xf32>
    %c224_i32_116 = arith.constant 224 : i32
    %290 = tpu.dynamic_rotate %271 by %c224_i32_116 dim 1 : vector<4x256xf32>, i32 -> vector<4x256xf32>
    %cst_117 = arith.constant 0xFF800000 : f32
    %291 = vector.shape_cast %51 : vector<1x256xi1> to vector<1x256xi1>
    %292 = vector.broadcast %291 : vector<1x256xi1> to vector<4x256xi1>
    %293 = vector.broadcast %cst_117 : f32 to vector<4x256xf32>
    %294 = arith.select %292, %290, %293 : vector<4x256xi1>, vector<4x256xf32>
    %295 = arith.maximumf %289, %294 : vector<4x256xf32>
    %c3_118 = arith.constant 3 : index
    %c0_119 = arith.constant 0 : index
    %c0_120 = arith.constant 0 : index
    %296 = vector.load %arg8[%c3_118, %c0_119, %c0_120] : memref<4x4x4xf32, #tpu.memory_space<vmem>>, vector<1x4x4xf32>
    %297 = vector.shape_cast %296 : vector<1x4x4xf32> to vector<4x4xf32>
    %cst_121 = arith.constant dense<0.000000e+00> : vector<4x256xf32>
    %298 = tpu.matmul %297, %295, %cst_121 {dimension_numbers = #tpu.dot_dimension_numbers<[1], [0], [0], [1], [0, 0, 1, 1], [], []>} : vector<4x4xf32>, vector<4x256xf32>, vector<4x256xf32> -> vector<4x256xf32>
    %299 = arith.addf %247, %298 : vector<4x256xf32>
    %c17_i32_122 = arith.constant 17 : i32
    %300 = tpu.dynamic_rotate %299 by %c17_i32_122 dim 1 : vector<4x256xf32>, i32 -> vector<4x256xf32>
    %cst_123 = arith.constant 0.000000e+00 : f32
    %301 = vector.shape_cast %52 : vector<1x256xi1> to vector<1x256xi1>
    %302 = vector.broadcast %301 : vector<1x256xi1> to vector<4x256xi1>
    %303 = vector.broadcast %cst_123 : f32 to vector<4x256xf32>
    %304 = arith.select %302, %300, %303 : vector<4x256xi1>, vector<4x256xf32>
    %c0_124 = arith.constant 0 : index
    %c0_125 = arith.constant 0 : index
    %c0_126 = arith.constant 0 : index
    %305 = vector.load %arg9[%c0_124, %c0_125, %c0_126] : memref<9x4x4xf32, #tpu.memory_space<vmem>>, vector<1x4x4xf32>
    %306 = vector.shape_cast %305 : vector<1x4x4xf32> to vector<4x4xf32>
    %cst_127 = arith.constant dense<0.000000e+00> : vector<4x256xf32>
    %307 = tpu.matmul %306, %304, %cst_127 {dimension_numbers = #tpu.dot_dimension_numbers<[1], [0], [0], [1], [0, 0, 1, 1], [], []>} : vector<4x4xf32>, vector<4x256xf32>, vector<4x256xf32> -> vector<4x256xf32>
    %c16_i32_128 = arith.constant 16 : i32
    %308 = tpu.dynamic_rotate %299 by %c16_i32_128 dim 1 : vector<4x256xf32>, i32 -> vector<4x256xf32>
    %cst_129 = arith.constant 0.000000e+00 : f32
    %309 = vector.shape_cast %53 : vector<1x256xi1> to vector<1x256xi1>
    %310 = vector.broadcast %309 : vector<1x256xi1> to vector<4x256xi1>
    %311 = vector.broadcast %cst_129 : f32 to vector<4x256xf32>
    %312 = arith.select %310, %308, %311 : vector<4x256xi1>, vector<4x256xf32>
    %c1_130 = arith.constant 1 : index
    %c0_131 = arith.constant 0 : index
    %c0_132 = arith.constant 0 : index
    %313 = vector.load %arg9[%c1_130, %c0_131, %c0_132] : memref<9x4x4xf32, #tpu.memory_space<vmem>>, vector<1x4x4xf32>
    %314 = vector.shape_cast %313 : vector<1x4x4xf32> to vector<4x4xf32>
    %cst_133 = arith.constant dense<0.000000e+00> : vector<4x256xf32>
    %315 = tpu.matmul %314, %312, %cst_133 {dimension_numbers = #tpu.dot_dimension_numbers<[1], [0], [0], [1], [0, 0, 1, 1], [], []>} : vector<4x4xf32>, vector<4x256xf32>, vector<4x256xf32> -> vector<4x256xf32>
    %316 = arith.addf %307, %315 : vector<4x256xf32>
    %c15_i32_134 = arith.constant 15 : i32
    %317 = tpu.dynamic_rotate %299 by %c15_i32_134 dim 1 : vector<4x256xf32>, i32 -> vector<4x256xf32>
    %cst_135 = arith.constant 0.000000e+00 : f32
    %318 = vector.shape_cast %54 : vector<1x256xi1> to vector<1x256xi1>
    %319 = vector.broadcast %318 : vector<1x256xi1> to vector<4x256xi1>
    %320 = vector.broadcast %cst_135 : f32 to vector<4x256xf32>
    %321 = arith.select %319, %317, %320 : vector<4x256xi1>, vector<4x256xf32>
    %c2_136 = arith.constant 2 : index
    %c0_137 = arith.constant 0 : index
    %c0_138 = arith.constant 0 : index
    %322 = vector.load %arg9[%c2_136, %c0_137, %c0_138] : memref<9x4x4xf32, #tpu.memory_space<vmem>>, vector<1x4x4xf32>
    %323 = vector.shape_cast %322 : vector<1x4x4xf32> to vector<4x4xf32>
    %cst_139 = arith.constant dense<0.000000e+00> : vector<4x256xf32>
    %324 = tpu.matmul %323, %321, %cst_139 {dimension_numbers = #tpu.dot_dimension_numbers<[1], [0], [0], [1], [0, 0, 1, 1], [], []>} : vector<4x4xf32>, vector<4x256xf32>, vector<4x256xf32> -> vector<4x256xf32>
    %325 = arith.addf %316, %324 : vector<4x256xf32>
    %c1_i32_140 = arith.constant 1 : i32
    %326 = tpu.dynamic_rotate %299 by %c1_i32_140 dim 1 : vector<4x256xf32>, i32 -> vector<4x256xf32>
    %cst_141 = arith.constant 0.000000e+00 : f32
    %327 = vector.shape_cast %55 : vector<1x256xi1> to vector<1x256xi1>
    %328 = vector.broadcast %327 : vector<1x256xi1> to vector<4x256xi1>
    %329 = vector.broadcast %cst_141 : f32 to vector<4x256xf32>
    %330 = arith.select %328, %326, %329 : vector<4x256xi1>, vector<4x256xf32>
    %c3_142 = arith.constant 3 : index
    %c0_143 = arith.constant 0 : index
    %c0_144 = arith.constant 0 : index
    %331 = vector.load %arg9[%c3_142, %c0_143, %c0_144] : memref<9x4x4xf32, #tpu.memory_space<vmem>>, vector<1x4x4xf32>
    %332 = vector.shape_cast %331 : vector<1x4x4xf32> to vector<4x4xf32>
    %cst_145 = arith.constant dense<0.000000e+00> : vector<4x256xf32>
    %333 = tpu.matmul %332, %330, %cst_145 {dimension_numbers = #tpu.dot_dimension_numbers<[1], [0], [0], [1], [0, 0, 1, 1], [], []>} : vector<4x4xf32>, vector<4x256xf32>, vector<4x256xf32> -> vector<4x256xf32>
    %334 = arith.addf %325, %333 : vector<4x256xf32>
    %c4_146 = arith.constant 4 : index
    %c0_147 = arith.constant 0 : index
    %c0_148 = arith.constant 0 : index
    %335 = vector.load %arg9[%c4_146, %c0_147, %c0_148] : memref<9x4x4xf32, #tpu.memory_space<vmem>>, vector<1x4x4xf32>
    %336 = vector.shape_cast %335 : vector<1x4x4xf32> to vector<4x4xf32>
    %cst_149 = arith.constant dense<0.000000e+00> : vector<4x256xf32>
    %337 = tpu.matmul %336, %299, %cst_149 {dimension_numbers = #tpu.dot_dimension_numbers<[1], [0], [0], [1], [0, 0, 1, 1], [], []>} : vector<4x4xf32>, vector<4x256xf32>, vector<4x256xf32> -> vector<4x256xf32>
    %338 = arith.addf %334, %337 : vector<4x256xf32>
    %c255_i32_150 = arith.constant 255 : i32
    %339 = tpu.dynamic_rotate %299 by %c255_i32_150 dim 1 : vector<4x256xf32>, i32 -> vector<4x256xf32>
    %cst_151 = arith.constant 0.000000e+00 : f32
    %340 = vector.shape_cast %56 : vector<1x256xi1> to vector<1x256xi1>
    %341 = vector.broadcast %340 : vector<1x256xi1> to vector<4x256xi1>
    %342 = vector.broadcast %cst_151 : f32 to vector<4x256xf32>
    %343 = arith.select %341, %339, %342 : vector<4x256xi1>, vector<4x256xf32>
    %c5_152 = arith.constant 5 : index
    %c0_153 = arith.constant 0 : index
    %c0_154 = arith.constant 0 : index
    %344 = vector.load %arg9[%c5_152, %c0_153, %c0_154] : memref<9x4x4xf32, #tpu.memory_space<vmem>>, vector<1x4x4xf32>
    %345 = vector.shape_cast %344 : vector<1x4x4xf32> to vector<4x4xf32>
    %cst_155 = arith.constant dense<0.000000e+00> : vector<4x256xf32>
    %346 = tpu.matmul %345, %343, %cst_155 {dimension_numbers = #tpu.dot_dimension_numbers<[1], [0], [0], [1], [0, 0, 1, 1], [], []>} : vector<4x4xf32>, vector<4x256xf32>, vector<4x256xf32> -> vector<4x256xf32>
    %347 = arith.addf %338, %346 : vector<4x256xf32>
    %c241_i32_156 = arith.constant 241 : i32
    %348 = tpu.dynamic_rotate %299 by %c241_i32_156 dim 1 : vector<4x256xf32>, i32 -> vector<4x256xf32>
    %cst_157 = arith.constant 0.000000e+00 : f32
    %349 = vector.shape_cast %57 : vector<1x256xi1> to vector<1x256xi1>
    %350 = vector.broadcast %349 : vector<1x256xi1> to vector<4x256xi1>
    %351 = vector.broadcast %cst_157 : f32 to vector<4x256xf32>
    %352 = arith.select %350, %348, %351 : vector<4x256xi1>, vector<4x256xf32>
    %c6_158 = arith.constant 6 : index
    %c0_159 = arith.constant 0 : index
    %c0_160 = arith.constant 0 : index
    %353 = vector.load %arg9[%c6_158, %c0_159, %c0_160] : memref<9x4x4xf32, #tpu.memory_space<vmem>>, vector<1x4x4xf32>
    %354 = vector.shape_cast %353 : vector<1x4x4xf32> to vector<4x4xf32>
    %cst_161 = arith.constant dense<0.000000e+00> : vector<4x256xf32>
    %355 = tpu.matmul %354, %352, %cst_161 {dimension_numbers = #tpu.dot_dimension_numbers<[1], [0], [0], [1], [0, 0, 1, 1], [], []>} : vector<4x4xf32>, vector<4x256xf32>, vector<4x256xf32> -> vector<4x256xf32>
    %356 = arith.addf %347, %355 : vector<4x256xf32>
    %c240_i32_162 = arith.constant 240 : i32
    %357 = tpu.dynamic_rotate %299 by %c240_i32_162 dim 1 : vector<4x256xf32>, i32 -> vector<4x256xf32>
    %cst_163 = arith.constant 0.000000e+00 : f32
    %358 = vector.shape_cast %58 : vector<1x256xi1> to vector<1x256xi1>
    %359 = vector.broadcast %358 : vector<1x256xi1> to vector<4x256xi1>
    %360 = vector.broadcast %cst_163 : f32 to vector<4x256xf32>
    %361 = arith.select %359, %357, %360 : vector<4x256xi1>, vector<4x256xf32>
    %c7_164 = arith.constant 7 : index
    %c0_165 = arith.constant 0 : index
    %c0_166 = arith.constant 0 : index
    %362 = vector.load %arg9[%c7_164, %c0_165, %c0_166] : memref<9x4x4xf32, #tpu.memory_space<vmem>>, vector<1x4x4xf32>
    %363 = vector.shape_cast %362 : vector<1x4x4xf32> to vector<4x4xf32>
    %cst_167 = arith.constant dense<0.000000e+00> : vector<4x256xf32>
    %364 = tpu.matmul %363, %361, %cst_167 {dimension_numbers = #tpu.dot_dimension_numbers<[1], [0], [0], [1], [0, 0, 1, 1], [], []>} : vector<4x4xf32>, vector<4x256xf32>, vector<4x256xf32> -> vector<4x256xf32>
    %365 = arith.addf %356, %364 : vector<4x256xf32>
    %c239_i32_168 = arith.constant 239 : i32
    %366 = tpu.dynamic_rotate %299 by %c239_i32_168 dim 1 : vector<4x256xf32>, i32 -> vector<4x256xf32>
    %cst_169 = arith.constant 0.000000e+00 : f32
    %367 = vector.shape_cast %59 : vector<1x256xi1> to vector<1x256xi1>
    %368 = vector.broadcast %367 : vector<1x256xi1> to vector<4x256xi1>
    %369 = vector.broadcast %cst_169 : f32 to vector<4x256xf32>
    %370 = arith.select %368, %366, %369 : vector<4x256xi1>, vector<4x256xf32>
    %c8_170 = arith.constant 8 : index
    %c0_171 = arith.constant 0 : index
    %c0_172 = arith.constant 0 : index
    %371 = vector.load %arg9[%c8_170, %c0_171, %c0_172] : memref<9x4x4xf32, #tpu.memory_space<vmem>>, vector<1x4x4xf32>
    %372 = vector.shape_cast %371 : vector<1x4x4xf32> to vector<4x4xf32>
    %cst_173 = arith.constant dense<0.000000e+00> : vector<4x256xf32>
    %373 = tpu.matmul %372, %370, %cst_173 {dimension_numbers = #tpu.dot_dimension_numbers<[1], [0], [0], [1], [0, 0, 1, 1], [], []>} : vector<4x4xf32>, vector<4x256xf32>, vector<4x256xf32> -> vector<4x256xf32>
    %374 = arith.addf %365, %373 : vector<4x256xf32>
    %c0_174 = arith.constant 0 : index
    %c0_175 = arith.constant 0 : index
    %375 = vector.load %arg5[%c0_174, %c0_175] : memref<4x4xf32, #tpu.memory_space<vmem>>, vector<4x4xf32>
    %cst_176 = arith.constant dense<0.000000e+00> : vector<4x256xf32>
    %376 = tpu.matmul %375, %61, %cst_176 {dimension_numbers = #tpu.dot_dimension_numbers<[1], [0], [0], [1], [0, 0, 1, 1], [], []>} : vector<4x4xf32>, vector<4x256xf32>, vector<4x256xf32> -> vector<4x256xf32>
    %c0_177 = arith.constant 0 : index
    %c0_178 = arith.constant 0 : index
    %c0_179 = arith.constant 0 : index
    %377 = vector.load %arg10[%c0_177, %c0_178, %c0_179] : memref<2x4x4xf32, #tpu.memory_space<vmem>>, vector<1x4x4xf32>
    %378 = vector.shape_cast %377 : vector<1x4x4xf32> to vector<4x4xf32>
    %cst_180 = arith.constant dense<0.000000e+00> : vector<4x256xf32>
    %379 = tpu.matmul %378, %374, %cst_180 {dimension_numbers = #tpu.dot_dimension_numbers<[1], [0], [0], [1], [0, 0, 1, 1], [], []>} : vector<4x4xf32>, vector<4x256xf32>, vector<4x256xf32> -> vector<4x256xf32>
    %c1_181 = arith.constant 1 : index
    %c0_182 = arith.constant 0 : index
    %c0_183 = arith.constant 0 : index
    %380 = vector.load %arg10[%c1_181, %c0_182, %c0_183] : memref<2x4x4xf32, #tpu.memory_space<vmem>>, vector<1x4x4xf32>
    %381 = vector.shape_cast %380 : vector<1x4x4xf32> to vector<4x4xf32>
    %cst_184 = arith.constant dense<0.000000e+00> : vector<4x256xf32>
    %382 = tpu.matmul %381, %376, %cst_184 {dimension_numbers = #tpu.dot_dimension_numbers<[1], [0], [0], [1], [0, 0, 1, 1], [], []>} : vector<4x4xf32>, vector<4x256xf32>, vector<4x256xf32> -> vector<4x256xf32>
    %383 = arith.addf %379, %382 : vector<4x256xf32>
    %c0_185 = arith.constant 0 : index
    %c0_186 = arith.constant 0 : index
    %c0_187 = arith.constant 0 : index
    %384 = vector.load %arg11[%c0_185, %c0_186, %c0_187] : memref<1x4x256xf32, #tpu.memory_space<vmem>>, vector<1x4x256xf32>
    %385 = vector.shape_cast %384 : vector<1x4x256xf32> to vector<4x256xf32>
    %386 = vector.shape_cast %383 : vector<4x256xf32> to vector<1x4x256xf32>
    tpu.vector_store %arg11[%c0_185, %c0_186, %c0_187], %386 {strides = array<i32>} : memref<1x4x256xf32, #tpu.memory_space<vmem>>, vector<1x4x256xf32>,
    return
  }
  func.func @transform_0(%arg0: i32) -> (i32, i32) {
    %c0_i32 = arith.constant 0 : i32
    %c0_i32_0 = arith.constant 0 : i32
    %c0_i32_1 = arith.constant 0 : i32
    return %c0_i32, %c0_i32_0 : i32, i32
  }
  func.func @transform_1(%arg0: i32) -> (i32, i32) {
    %c0_i32 = arith.constant 0 : i32
    %c0_i32_0 = arith.constant 0 : i32
    %c0_i32_1 = arith.constant 0 : i32
    return %c0_i32, %c0_i32_0 : i32, i32
  }
  func.func @transform_2(%arg0: i32) -> (i32, i32, i32) {
    %c0_i32 = arith.constant 0 : i32
    %c0_i32_0 = arith.constant 0 : i32
    %c0_i32_1 = arith.constant 0 : i32
    return %arg0, %c0_i32, %c0_i32_0 : i32, i32, i32
  }
  func.func @transform_3(%arg0: i32) -> (i32, i32) {
    %c0_i32 = arith.constant 0 : i32
    %c0_i32_0 = arith.constant 0 : i32
    %c0_i32_1 = arith.constant 0 : i32
    return %c0_i32, %c0_i32_0 : i32, i32
  }
  func.func @transform_4(%arg0: i32) -> (i32, i32) {
    %c0_i32 = arith.constant 0 : i32
    %c0_i32_0 = arith.constant 0 : i32
    %c0_i32_1 = arith.constant 0 : i32
    return %c0_i32, %c0_i32_0 : i32, i32
  }
  func.func @transform_5(%arg0: i32) -> (i32, i32, i32) {
    %c0_i32 = arith.constant 0 : i32
    %c0_i32_0 = arith.constant 0 : i32
    %c0_i32_1 = arith.constant 0 : i32
    %c0_i32_2 = arith.constant 0 : i32
    return %c0_i32, %c0_i32_0, %c0_i32_1 : i32, i32, i32
  }
  func.func @transform_6(%arg0: i32) -> (i32, i32) {
    %c0_i32 = arith.constant 0 : i32
    %c0_i32_0 = arith.constant 0 : i32
    %c0_i32_1 = arith.constant 0 : i32
    return %c0_i32, %c0_i32_0 : i32, i32
  }
  func.func @transform_7(%arg0: i32) -> (i32, i32, i32) {
    %c0_i32 = arith.constant 0 : i32
    %c0_i32_0 = arith.constant 0 : i32
    %c0_i32_1 = arith.constant 0 : i32
    %c0_i32_2 = arith.constant 0 : i32
    return %c0_i32, %c0_i32_0, %c0_i32_1 : i32, i32, i32
  }
  func.func @transform_8(%arg0: i32) -> (i32, i32, i32) {
    %c0_i32 = arith.constant 0 : i32
    %c0_i32_0 = arith.constant 0 : i32
    %c0_i32_1 = arith.constant 0 : i32
    %c0_i32_2 = arith.constant 0 : i32
    return %c0_i32, %c0_i32_0, %c0_i32_1 : i32, i32, i32
  }
  func.func @transform_9(%arg0: i32) -> (i32, i32, i32) {
    %c0_i32 = arith.constant 0 : i32
    %c0_i32_0 = arith.constant 0 : i32
    %c0_i32_1 = arith.constant 0 : i32
    %c0_i32_2 = arith.constant 0 : i32
    return %c0_i32, %c0_i32_0, %c0_i32_1 : i32, i32, i32
  }
  func.func @transform_10(%arg0: i32) -> (i32, i32, i32) {
    %c0_i32 = arith.constant 0 : i32
    %c0_i32_0 = arith.constant 0 : i32
    %c0_i32_1 = arith.constant 0 : i32
    return %arg0, %c0_i32, %c0_i32_0 : i32, i32, i32
  }
}

</mosaic_0001>

<llo_original>
// kernel: sppfcspc_forward.1
$region0: #{sppfcspc_forward.1}
  #allocation0 [shape = 'u32[]', space=smem, size = 0x4, offset = 0x4, fixed_abs, tag = 'smem constant byte address 0x4 - core index']
  #allocation1 [shape = 'u32[144,128]{1,0:T(1,128)}', space=vmem, size = 0x12000, scoped, tag = 'internal scratch']
  %s0 = inlined_call_operand.vmem [shape: s32[1,256], index: 0, kind: input, shape index: {}]
  %s1 = inlined_call_operand.vmem [shape: s32[1,256], index: 1, kind: input, shape index: {}]
  %s2 = inlined_call_operand.vmem [shape: f32[2,4,256], index: 2, kind: input, shape index: {}]
  %s3 = inlined_call_operand.vmem [shape: f32[4,4], index: 3, kind: input, shape index: {}]
  %s4 = inlined_call_operand.vmem [shape: f32[4,4], index: 4, kind: input, shape index: {}]
  %s5 = inlined_call_operand.vmem [shape: f32[9,4,4], index: 5, kind: input, shape index: {}]
  %s6 = inlined_call_operand.vmem [shape: f32[4,4], index: 6, kind: input, shape index: {}]
  %s7 = inlined_call_operand.vmem [shape: f32[4,4,4], index: 7, kind: input, shape index: {}]
  %s8 = inlined_call_operand.vmem [shape: f32[9,4,4], index: 8, kind: input, shape index: {}]
  %s9 = inlined_call_operand.vmem [shape: f32[2,4,4], index: 9, kind: input, shape index: {}]
  %s10 = inlined_call_operand.vmem [shape: f32[2,4,256], index: 10, kind: output, shape index: {}]
  %s11 = sld [smem:[#allocation0]]
  $region73: #{sppfcspc_forward.1} parent=0
    _
  %s13 = ssub.s32 1, %s11
  %s14 = scalar_select 0, %s13, %s11
  loop: start=0, step=1, limit=4
  $region2: #{sppfcspc_forward.1} parent=0 // loop_pre_header
    _
  $region3: #{sppfcspc_forward.1} parent=0 // loop_header
    %s16 = sphi 0, %s20
    %p17 = scmp.ge.s32.totalorder %s16, 4
    %s24 = sphi 0, %s24
    %s26 = sphi 0, %s24
    %s27 = sphi 0, %s26
    %s41 = sphi 0, %s27
    %s45 = sphi 0, %s45
    %s47 = sphi 0, %s45
    %s48 = sphi 0, %s47
    %s62 = sphi 0, %s48
    %s68 = sphi 0, %s70
    %s71 = sphi 0, %s68
    %s72 = sphi 0, %s71
    %s88 = sphi 0, %s72
    %s92 = sphi 0, %s92
    %s94 = sphi 0, %s92
    %s95 = sphi 0, %s94
    %s109 = sphi 0, %s95
    %s113 = sphi 0, %s113
    %s115 = sphi 0, %s113
    %s116 = sphi 0, %s115
    %s130 = sphi 0, %s116
    %s134 = sphi 0, %s134
    %s136 = sphi 0, %s134
    %s137 = sphi 0, %s136
    %s151 = sphi 0, %s137
    %s155 = sphi 0, %s155
    %s157 = sphi 0, %s155
    %s158 = sphi 0, %s157
    %s172 = sphi 0, %s158
    %s176 = sphi 0, %s176
    %s178 = sphi 0, %s176
    %s179 = sphi 0, %s178
    %s193 = sphi 0, %s179
    %s197 = sphi 0, %s197
    %s199 = sphi 0, %s197
    %s200 = sphi 0, %s199
    %s214 = sphi 0, %s200
    %s218 = sphi 0, %s218
    %s220 = sphi 0, %s218
    %s221 = sphi 0, %s220
    %s235 = sphi 0, %s221
    %s241 = sphi 0, %s243
    %s244 = sphi 0, %s241
    %s245 = sphi 0, %s244
    %s261 = sphi 0, %s245
  $region4: #{sppfcspc_forward.1} parent=0 // loop_header_branch
    %19 = sbr.rel (%p17) target = $region8
  $region5: #{sppfcspc_forward.1} parent=0 // loop_body
    %s21 = ssub.s32 %s16, 1
    %s22 = ssub.s32 %s16, 2
    %s23 = sadd.s32 %s16, 1
    %s25 = sadd.s32 %s24, 1
    %p28 = scmp.eq.s32.totalorder %s16, 1
    %p29 = scmp.ne.s32.totalorder %s24, %s26
    %p30 = scmp.eq.s32.totalorder %s16, 0
    %p31 = por %p29, %p30
    %p32 = scmp.ne.s32.totalorder %s24, %s26
    %p33 = scmp.eq.s32.totalorder %s21, 1
    %p34 = por %p32, %p33
    %p35 = scmp.ne.s32.totalorder %s26, %s27
    %p36 = scmp.eq.s32.totalorder %s21, 0
    %p37 = por %p35, %p36
    %p38 = scmp.ne.s32.totalorder %s26, %s27
    %p39 = scmp.eq.s32.totalorder %s22, 1
    %p40 = por %p38, %p39
    %p42 = scmp.ne.s32.totalorder %s27, %s41
    %p43 = scmp.eq.s32.totalorder %s22, 0
    %p44 = por %p42, %p43
    %s46 = sadd.s32 %s45, 1
    %p49 = scmp.eq.s32.totalorder %s16, 1
    %p50 = scmp.ne.s32.totalorder %s45, %s47
    %p51 = scmp.eq.s32.totalorder %s16, 0
    %p52 = por %p50, %p51
    %p53 = scmp.ne.s32.totalorder %s45, %s47
    %p54 = scmp.eq.s32.totalorder %s21, 1
    %p55 = por %p53, %p54
    %p56 = scmp.ne.s32.totalorder %s47, %s48
    %p57 = scmp.eq.s32.totalorder %s21, 0
    %p58 = por %p56, %p57
    %p59 = scmp.ne.s32.totalorder %s47, %s48
    %p60 = scmp.eq.s32.totalorder %s22, 1
    %p61 = por %p59, %p60
    %p63 = scmp.ne.s32.totalorder %s48, %s62
    %p64 = scmp.eq.s32.totalorder %s22, 0
    %p65 = por %p63, %p64
    %s66 = ssub.s32 %s16, %s23
    %p67 = scmp.eq.s32.totalorder %s66, 0
    %s69 = sadd.s32 %s68, 1
    %s70 = scalar_select %p67, %s68, %s69
    %p73 = pneg %p67
    %p74 = scmp.eq.s32.totalorder %s16, 1
    %p75 = por %p73, %p74
    %p76 = scmp.ne.s32.totalorder %s68, %s71
    %p77 = scmp.eq.s32.totalorder %s16, 0
    %p78 = por %p76, %p77
    %p79 = scmp.ne.s32.totalorder %s68, %s71
    %p80 = scmp.eq.s32.totalorder %s21, 1
    %p81 = por %p79, %p80
    %p82 = scmp.ne.s32.totalorder %s71, %s72
    %p83 = scmp.eq.s32.totalorder %s21, 0
    %p84 = por %p82, %p83
    %p85 = scmp.ne.s32.totalorder %s71, %s72
    %p86 = scmp.eq.s32.totalorder %s22, 1
    %p87 = por %p85, %p86
    %p89 = scmp.ne.s32.totalorder %s72, %s88
    %p90 = scmp.eq.s32.totalorder %s22, 0
    %p91 = por %p89, %p90
    %s93 = sadd.s32 %s92, 1
    %p96 = scmp.eq.s32.totalorder %s16, 1
    %p97 = scmp.ne.s32.totalorder %s92, %s94
    %p98 = scmp.eq.s32.totalorder %s16, 0
    %p99 = por %p97, %p98
    %p100 = scmp.ne.s32.totalorder %s92, %s94
    %p101 = scmp.eq.s32.totalorder %s21, 1
    %p102 = por %p100, %p101
    %p103 = scmp.ne.s32.totalorder %s94, %s95
    %p104 = scmp.eq.s32.totalorder %s21, 0
    %p105 = por %p103, %p104
    %p106 = scmp.ne.s32.totalorder %s94, %s95
    %p107 = scmp.eq.s32.totalorder %s22, 1
    %p108 = por %p106, %p107
    %p110 = scmp.ne.s32.totalorder %s95, %s109
    %p111 = scmp.eq.s32.totalorder %s22, 0
    %p112 = por %p110, %p111
    %s114 = sadd.s32 %s113, 1
    %p117 = scmp.eq.s32.totalorder %s16, 1
    %p118 = scmp.ne.s32.totalorder %s113, %s115
    %p119 = scmp.eq.s32.totalorder %s16, 0
    %p120 = por %p118, %p119
    %p121 = scmp.ne.s32.totalorder %s113, %s115
    %p122 = scmp.eq.s32.totalorder %s21, 1
    %p123 = por %p121, %p122
    %p124 = scmp.ne.s32.totalorder %s115, %s116
    %p125 = scmp.eq.s32.totalorder %s21, 0
    %p126 = por %p124, %p125
    %p127 = scmp.ne.s32.totalorder %s115, %s116
    %p128 = scmp.eq.s32.totalorder %s22, 1
    %p129 = por %p127, %p128
    %p131 = scmp.ne.s32.totalorder %s116, %s130
    %p132 = scmp.eq.s32.totalorder %s22, 0
    %p133 = por %p131, %p132
    %s135 = sadd.s32 %s134, 1
    %p138 = scmp.eq.s32.totalorder %s16, 1
    %p139 = scmp.ne.s32.totalorder %s134, %s136
    %p140 = scmp.eq.s32.totalorder %s16, 0
    %p141 = por %p139, %p140
    %p142 = scmp.ne.s32.totalorder %s134, %s136
    %p143 = scmp.eq.s32.totalorder %s21, 1
    %p144 = por %p142, %p143
    %p145 = scmp.ne.s32.totalorder %s136, %s137
    %p146 = scmp.eq.s32.totalorder %s21, 0
    %p147 = por %p145, %p146
    %p148 = scmp.ne.s32.totalorder %s136, %s137
    %p149 = scmp.eq.s32.totalorder %s22, 1
    %p150 = por %p148, %p149
    %p152 = scmp.ne.s32.totalorder %s137, %s151
    %p153 = scmp.eq.s32.totalorder %s22, 0
    %p154 = por %p152, %p153
    %s156 = sadd.s32 %s155, 1
    %p159 = scmp.eq.s32.totalorder %s16, 1
    %p160 = scmp.ne.s32.totalorder %s155, %s157
    %p161 = scmp.eq.s32.totalorder %s16, 0
    %p162 = por %p160, %p161
    %p163 = scmp.ne.s32.totalorder %s155, %s157
    %p164 = scmp.eq.s32.totalorder %s21, 1
    %p165 = por %p163, %p164
    %p166 = scmp.ne.s32.totalorder %s157, %s158
    %p167 = scmp.eq.s32.totalorder %s21, 0
    %p168 = por %p166, %p167
    %p169 = scmp.ne.s32.totalorder %s157, %s158
    %p170 = scmp.eq.s32.totalorder %s22, 1
    %p171 = por %p169, %p170
    %p173 = scmp.ne.s32.totalorder %s158, %s172
    %p174 = scmp.eq.s32.totalorder %s22, 0
    %p175 = por %p173, %p174
    %s177 = sadd.s32 %s176, 1
    %p180 = scmp.eq.s32.totalorder %s16, 1
    %p181 = scmp.ne.s32.totalorder %s176, %s178
    %p182 = scmp.eq.s32.totalorder %s16, 0
    %p183 = por %p181, %p182
    %p184 = scmp.ne.s32.totalorder %s176, %s178
    %p185 = scmp.eq.s32.totalorder %s21, 1
    %p186 = por %p184, %p185
    %p187 = scmp.ne.s32.totalorder %s178, %s179
    %p188 = scmp.eq.s32.totalorder %s21, 0
    %p189 = por %p187, %p188
    %p190 = scmp.ne.s32.totalorder %s178, %s179
    %p191 = scmp.eq.s32.totalorder %s22, 1
    %p192 = por %p190, %p191
    %p194 = scmp.ne.s32.totalorder %s179, %s193
    %p195 = scmp.eq.s32.totalorder %s22, 0
    %p196 = por %p194, %p195
    %s198 = sadd.s32 %s197, 1
    %p201 = scmp.eq.s32.totalorder %s16, 1
    %p202 = scmp.ne.s32.totalorder %s197, %s199
    %p203 = scmp.eq.s32.totalorder %s16, 0
    %p204 = por %p202, %p203
    %p205 = scmp.ne.s32.totalorder %s197, %s199
    %p206 = scmp.eq.s32.totalorder %s21, 1
    %p207 = por %p205, %p206
    %p208 = scmp.ne.s32.totalorder %s199, %s200
    %p209 = scmp.eq.s32.totalorder %s21, 0
    %p210 = por %p208, %p209
    %p211 = scmp.ne.s32.totalorder %s199, %s200
    %p212 = scmp.eq.s32.totalorder %s22, 1
    %p213 = por %p211, %p212
    %p215 = scmp.ne.s32.totalorder %s200, %s214
    %p216 = scmp.eq.s32.totalorder %s22, 0
    %p217 = por %p215, %p216
    %s219 = sadd.s32 %s218, 1
    %p222 = scmp.eq.s32.totalorder %s16, 1
    %p223 = scmp.ne.s32.totalorder %s218, %s220
    %p224 = scmp.eq.s32.totalorder %s16, 0
    %p225 = por %p223, %p224
    %p226 = scmp.ne.s32.totalorder %s218, %s220
    %p227 = scmp.eq.s32.totalorder %s21, 1
    %p228 = por %p226, %p227
    %p229 = scmp.ne.s32.totalorder %s220, %s221
    %p230 = scmp.eq.s32.totalorder %s21, 0
    %p231 = por %p229, %p230
    %p232 = scmp.ne.s32.totalorder %s220, %s221
    %p233 = scmp.eq.s32.totalorder %s22, 1
    %p234 = por %p232, %p233
    %p236 = scmp.ne.s32.totalorder %s221, %s235
    %p237 = scmp.eq.s32.totalorder %s22, 0
    %p238 = por %p236, %p237
    %s239 = ssub.s32 %s16, %s23
    %p240 = scmp.eq.s32.totalorder %s239, 0
    %s242 = sadd.s32 %s241, 1
    %s243 = scalar_select %p240, %s241, %s242
    %p246 = pneg %p240
    %p247 = scmp.eq.s32.totalorder %s16, 1
    %p248 = por %p246, %p247
    %p249 = scmp.ne.s32.totalorder %s241, %s244
    %p250 = scmp.eq.s32.totalorder %s16, 0
    %p251 = por %p249, %p250
    %p252 = scmp.ne.s32.totalorder %s241, %s244
    %p253 = scmp.eq.s32.totalorder %s21, 1
    %p254 = por %p252, %p253
    %p255 = scmp.ne.s32.totalorder %s244, %s245
    %p256 = scmp.eq.s32.totalorder %s21, 0
    %p257 = por %p255, %p256
    %p258 = scmp.ne.s32.totalorder %s244, %s245
    %p259 = scmp.eq.s32.totalorder %s22, 1
    %p260 = por %p258, %p259
    %p262 = scmp.ne.s32.totalorder %s245, %s261
    %p263 = scmp.eq.s32.totalorder %s22, 0
    %p264 = por %p262, %p263
    %p265 = scmp.le.s32.totalorder 1, %s16
    %p266 = scmp.lt.s32.totalorder %s16, 3
    %p267 = pnand %p265, %p266
    %p268 = pneg %p267
    // Predicated region
    $region9: #{sppfcspc_forward.1} parent=5 // pred_check
      _
    $region10: #{sppfcspc_forward.1} parent=5 // pred_check_branch
      %270 = sbr.rel (%p267) target = $region12
    $region11: #{sppfcspc_forward.1} parent=5 // pred_region
      %s271 = ssub.s32 %s16, 1
      // Predicated region
      $region13: #{sppfcspc_forward.1} parent=11 // pred_check
        %p272 = pneg %p37
      $region14: #{sppfcspc_forward.1} parent=11 // pred_check_branch
        %274 = sbr.rel (%p272) target = $region16
      $region15: #{sppfcspc_forward.1} parent=11 // pred_region
        _
      $region16: #{sppfcspc_forward.1} parent=11 // pred_fallthru
        _
      // Predicated region
      $region17: #{sppfcspc_forward.1} parent=11 // pred_check
        %p275 = pneg %p58
      $region18: #{sppfcspc_forward.1} parent=11 // pred_check_branch
        %277 = sbr.rel (%p275) target = $region20
      $region19: #{sppfcspc_forward.1} parent=11 // pred_region
        _
      $region20: #{sppfcspc_forward.1} parent=11 // pred_fallthru
        _
      // Predicated region
      $region21: #{sppfcspc_forward.1} parent=11 // pred_check
        %p278 = pneg %p105
      $region22: #{sppfcspc_forward.1} parent=11 // pred_check_branch
        %280 = sbr.rel (%p278) target = $region24
      $region23: #{sppfcspc_forward.1} parent=11 // pred_region
        _
      $region24: #{sppfcspc_forward.1} parent=11 // pred_fallthru
        _
      // Predicated region
      $region25: #{sppfcspc_forward.1} parent=11 // pred_check
        %p281 = pneg %p126
      $region26: #{sppfcspc_forward.1} parent=11 // pred_check_branch
        %283 = sbr.rel (%p281) target = $region28
      $region27: #{sppfcspc_forward.1} parent=11 // pred_region
        _
      $region28: #{sppfcspc_forward.1} parent=11 // pred_fallthru
        _
      // Predicated region
      $region29: #{sppfcspc_forward.1} parent=11 // pred_check
        %p284 = pneg %p147
      $region30: #{sppfcspc_forward.1} parent=11 // pred_check_branch
        %286 = sbr.rel (%p284) target = $region32
      $region31: #{sppfcspc_forward.1} parent=11 // pred_region
        _
      $region32: #{sppfcspc_forward.1} parent=11 // pred_fallthru
        _
      // Predicated region
      $region33: #{sppfcspc_forward.1} parent=11 // pred_check
        %p287 = pneg %p168
      $region34: #{sppfcspc_forward.1} parent=11 // pred_check_branch
        %289 = sbr.rel (%p287) target = $region36
      $region35: #{sppfcspc_forward.1} parent=11 // pred_region
        _
      $region36: #{sppfcspc_forward.1} parent=11 // pred_fallthru
        _
      // Predicated region
      $region37: #{sppfcspc_forward.1} parent=11 // pred_check
        %p290 = pneg %p189
      $region38: #{sppfcspc_forward.1} parent=11 // pred_check_branch
        %292 = sbr.rel (%p290) target = $region40
      $region39: #{sppfcspc_forward.1} parent=11 // pred_region
        _
      $region40: #{sppfcspc_forward.1} parent=11 // pred_fallthru
        _
      // Predicated region
      $region41: #{sppfcspc_forward.1} parent=11 // pred_check
        %p293 = pneg %p210
      $region42: #{sppfcspc_forward.1} parent=11 // pred_check_branch
        %295 = sbr.rel (%p293) target = $region44
      $region43: #{sppfcspc_forward.1} parent=11 // pred_region
        _
      $region44: #{sppfcspc_forward.1} parent=11 // pred_fallthru
        _
      // Predicated region
      $region45: #{sppfcspc_forward.1} parent=11 // pred_check
        %p296 = pneg %p231
      $region46: #{sppfcspc_forward.1} parent=11 // pred_check_branch
        %298 = sbr.rel (%p296) target = $region48
      $region47: #{sppfcspc_forward.1} parent=11 // pred_region
        _
      $region48: #{sppfcspc_forward.1} parent=11 // pred_fallthru
        _
    $region12: #{sppfcspc_forward.1} parent=5 // pred_fallthru
      _
    %p299 = scmp.lt.s32.totalorder %s16, 2
    // Predicated region
    $region49: #{sppfcspc_forward.1} parent=5 // pred_check
      %p300 = pneg %p299
    $region50: #{sppfcspc_forward.1} parent=5 // pred_check_branch
      %302 = sbr.rel (%p300) target = $region52
    $region51: #{sppfcspc_forward.1} parent=5 // pred_region
      // Predicated region
      $region53: #{sppfcspc_forward.1} parent=51 // pred_check
        %p303 = pneg %p78
      $region54: #{sppfcspc_forward.1} parent=51 // pred_check_branch
        %305 = sbr.rel (%p303) target = $region56
      $region55: #{sppfcspc_forward.1} parent=51 // pred_region
        %p306 = scmp.lt.s32.totalorder %s16, 1
        %s307 = scalar_select %p306, %s16, 1
        %s308 = smul.addr %s307, 2
        %s309 = smul.addr %s308, 4
        %s310 = scalar_lea.vmem %s2, %s309
      $region56: #{sppfcspc_forward.1} parent=51 // pred_fallthru
        _
    $region52: #{sppfcspc_forward.1} parent=5 // pred_fallthru
      _
    %p311 = scmp.le.s32.totalorder 1, %s16
    %p312 = scmp.lt.s32.totalorder %s16, 3
    %p313 = pnand %p311, %p312
    %p314 = pneg %p313
    // Predicated region
    $region57: #{sppfcspc_forward.1} parent=5 // pred_check
      _
    $region58: #{sppfcspc_forward.1} parent=5 // pred_check_branch
      %316 = sbr.rel (%p313) target = $region60
    $region59: #{sppfcspc_forward.1} parent=5 // pred_region
      %s317 = ssub.s32 %s16, 1
      %p318 = pneg %p37
      %p319 = pneg %p34
      %p320 = pneg %p58
      %p321 = pneg %p55
      %p322 = scmp.lt.s32.totalorder %s21, 1
      %s323 = scalar_select %p322, %s21, 1
      %s324 = smul.addr %s323, 2
      %s325 = smul.addr %s324, 4
      %s326 = scalar_lea.vmem %s2, %s325
      %p327 = pneg %p84
      %p328 = pneg %p81
      %p329 = pneg %p105
      %p330 = pneg %p102
      %p331 = pneg %p126
      %p332 = pneg %p123
      %p333 = pneg %p147
      %p334 = pneg %p144
      %p335 = pneg %p168
      %p336 = pneg %p165
      %p337 = pneg %p189
      %p338 = pneg %p186
      %p339 = pneg %p210
      %p340 = pneg %p207
      %p341 = pneg %p231
      %p342 = pneg %p228
      %p343 = pneg %p257
      %p344 = pneg %p254
      %p345 = scmp.lt.s32.totalorder %s21, 1
      %s346 = scalar_select %p345, %s21, 1
      %s347 = smul.addr %s346, 2
      %s348 = smul.addr %s347, 4
      %s349 = scalar_lea.vmem %s10, %s348
      %p350 = scmp.lt.s32.totalorder %s21, 1
      %s351 = scalar_select %p350, %s21, 1
      %s352 = smul.addr %s351, 2
      %s353 = smul.addr %s352, 4
      %s354 = scalar_lea.vmem %s2, %s353
      %p355 = scmp.lt.s32.totalorder %s21, 1
      %s356 = scalar_select %p355, %s21, 1
      %s357 = smul.addr %s356, 2
      %s358 = smul.addr %s357, 4
      %s359 = scalar_lea.vmem %s10, %s358
      %v360 = vld [vmem:[%s0] sm:$0x3]
      %v361 = vld [vmem:[%s1] sm:$0x3]
      %vm362 = vcmp.ge.s32.totalorder %v360, 2
      %vm363 = vcmp.lt.s32.totalorder %v360, 18
      %vm364 = vmand %vm362, %vm363
      %vm365 = vcmp.ge.s32.totalorder %v360, 1
      %vm366 = vcmp.lt.s32.totalorder %v360, 17
      %vm367 = vmand %vm365, %vm366
      %vm368 = vcmp.ge.s32.totalorder %v360, 0
      %vm369 = vcmp.lt.s32.totalorder %v360, 16
      %vm370 = vmand %vm368, %vm369
      %vm371 = vcmp.ge.s32.totalorder %v360, 4294967295
      %vm372 = vcmp.lt.s32.totalorder %v360, 15
      %vm373 = vmand %vm371, %vm372
      %vm374 = vcmp.ge.s32.totalorder %v360, 4294967294
      %vm375 = vcmp.lt.s32.totalorder %v360, 14
      %vm376 = vmand %vm374, %vm375
      %vm377 = vcmp.ge.s32.totalorder %v361, 2
      %vm378 = vcmp.lt.s32.totalorder %v361, 18
      %vm379 = vmand %vm377, %vm378
      %vm380 = vcmp.ge.s32.totalorder %v361, 1
      %vm381 = vcmp.lt.s32.totalorder %v361, 17
      %vm382 = vmand %vm380, %vm381
      %vm383 = vcmp.ge.s32.totalorder %v361, 0
      %vm384 = vcmp.lt.s32.totalorder %v361, 16
      %vm385 = vmand %vm383, %vm384
      %vm386 = vcmp.ge.s32.totalorder %v361, 4294967295
      %vm387 = vcmp.lt.s32.totalorder %v361, 15
      %vm388 = vmand %vm386, %vm387
      %vm389 = vcmp.ge.s32.totalorder %v361, 4294967294
      %vm390 = vcmp.lt.s32.totalorder %v361, 14
      %vm391 = vmand %vm389, %vm390
      %vm392 = vmand %vm382, %vm367
      %vm393 = vmand %vm382, %vm370
      %vm394 = vmand %vm382, %vm373
      %vm395 = vmand %vm385, %vm367
      %vm396 = vmand %vm385, %vm373
      %vm397 = vmand %vm388, %vm367
      %vm398 = vmand %vm388, %vm370
      %vm399 = vmand %vm388, %vm373
      %v400 = vld [vmem:[%s354] sm:$0xff]
      %v401 = vld [vmem:[%s6] sm:$0xf]
      %v402 = vld [vmem:[%s3] sm:$0xf]
      %v404 = vcombine.high %v400, %v400
      %vm405 = vcmask 31744
      %v407 = vsel %vm405, %v402, 0
      %vm409 = vcmask 1043456
      %v410 = vsel %vm409, %v400, 0
      %v412 = vsel %vm409, %v404, 0
      %414 = vmatprep.subr.mxu0 %v412
      %415 = vmatpush1.msra.mxu0 %v410
      %416 = vmatprep.subr.mxu0 0.0
      %417 = vmatpush1.msra.mxu0 0.0
      %418 = vmatprep.subr.mxu0 0.0
      %419 = vmatpush1.msra.mxu0 0.0
      %420 = vmatprep.subr.mxu0 0.0
      %421 = vmatpush1.msra.mxu0 0.0
      %422 = vmatprep.subr.mxu0 0.0
      %423 = vmatpush1.msra.mxu0 0.0
      %424 = vmatprep.subr.mxu0 0.0
      %425 = vmatpush1.msra.mxu0 0.0
      %426 = vmatprep.subr.mxu0 0.0
      %427 = vmatpush1.msra.mxu0 0.0
      %428 = vmatprep.subr.mxu0 0.0
      %429 = vmatpush1.msra.mxu0 0.0
      %430 = vmatprep.subr.mxu0 0.0
      %431 = vmatpush1.msra.mxu0 0.0
      %432 = vmatprep.subr.mxu0 0.0
      %433 = vmatpush1.msra.mxu0 0.0
      %434 = vmatprep.subr.mxu0 0.0
      %435 = vmatpush1.msra.mxu0 0.0
      %436 = vmatprep.subr.mxu0 0.0
      %437 = vmatpush1.msra.mxu0 0.0
      %438 = vmatprep.subr.mxu0 0.0
      %439 = vmatpush1.msra.mxu0 0.0
      %440 = vmatprep.subr.mxu0 0.0
      %441 = vmatpush1.msra.mxu0 0.0
      %442 = vmatprep.subr.mxu0 0.0
      %443 = vmatpush1.msra.mxu0 0.0
      %444 = vmatprep.subr.mxu0 0.0
      %445 = vmatpush1.msra.mxu0 0.0
      %446 = vmatprep.subr.mxu0 0.0
      %447 = vmatpush1.msra.mxu0 0.0
      %448 = vmatprep.subr.mxu0 0.0
      %449 = vmatpush1.msra.mxu0 0.0
      %450 = vmatprep.subr.mxu0 0.0
      %451 = vmatpush1.msra.mxu0 0.0
      %452 = vmatprep.subr.mxu0 0.0
      %453 = vmatpush1.msra.mxu0 0.0
      %454 = vmatprep.subr.mxu0 0.0
      %455 = vmatpush1.msra.mxu0 0.0
      %456 = vmatprep.subr.mxu0 0.0
      %457 = vmatpush1.msra.mxu0 0.0
      %458 = vmatprep.subr.mxu0 0.0
      %459 = vmatpush1.msra.mxu0 0.0
      %460 = vmatprep.subr.mxu0 0.0
      %461 = vmatpush1.msra.mxu0 0.0
      %462 = vmatprep.subr.mxu0 0.0
      %463 = vmatpush1.msra.mxu0 0.0
      %464 = vmatprep.subr.mxu0 0.0
      %465 = vmatpush1.msra.mxu0 0.0
      %466 = vmatprep.subr.mxu0 0.0
      %467 = vmatpush1.msra.mxu0 0.0
      %468 = vmatprep.subr.mxu0 0.0
      %469 = vmatpush1.msra.mxu0 0.0
      %470 = vmatprep.subr.mxu0 0.0
      %471 = vmatpush1.msra.mxu0 0.0
      %472 = vmatprep.subr.mxu0 0.0
      %473 = vmatpush1.msra.mxu0 0.0
      %474 = vmatprep.subr.mxu0 0.0
      %475 = vmatpush1.msra.mxu0 0.0
      %476 = vmatprep.subr.mxu0 0.0
      %477 = vmatpush1.msra.mxu0 0.0
      %478 = vmatprep.mubr.f32.mxu0 0.0
      %479 = vmatmul.mubr.f32.gmra.mrb[0].mxu0 %v407
      %v480 = vpop.f32.mrb[0].mxu0
      %v481 = vadd.f32 0.0, %v480
      %v482 = vpop.f32.mrb[0].mxu0
      %v483 = vadd.f32 0.0, %v482
      %484 = vdwg.mxu0
      %485 = vrot.lane.b32.xlu0 %v481, 17
      %v486 = vpop.permute.xlu0 %485
      %487 = vrot.lane.b32.xlu0 %v483, 17
      %v488 = vpop.permute.xlu0 %487
      %v489 = vlaneseq
      %v490 = vand.u32 %v489, 127
      %vm491 = vcmp.lt.s32.totalorder %v490, 17
      %v492 = vsel %vm491, %v486, %v488
      %v493 = vsel %vm491, %v488, %v486
      %v494 = vsel %vm392, 1, 0
      %v495 = vlaneseq
      %v496 = vshrl.u32 %v495, 7
      %v497 = vsub.s32 0, %v496
      %v498 = vrot.slane %v494, %v497
      %v499 = vlaneseq
      %v500 = vshrl.u32 %v499, 7
      %v501 = vsub.s32 1, %v500
      %v502 = vrot.slane %v494, %v501
      %vm503 = vcmp.eq.s32.totalorder %v498, 1
      %vm504 = vcmp.eq.s32.totalorder %v502, 1
      %v505 = vsel %vm503, %v493, 0.0
      %v506 = vsel %vm504, %v492, 0.0
      %v507 = vld [vmem:[%s5] sm:$0xf]
      %508 = vrot.lane.b32.xlu0 %v481, 16
      %v509 = vpop.permute.xlu0 %508
      %510 = vrot.lane.b32.xlu0 %v483, 16
      %v511 = vpop.permute.xlu0 %510
      %vm512 = vcmp.lt.s32.totalorder %v490, 16
      %v513 = vsel %vm512, %v509, %v511
      %v514 = vsel %vm512, %v511, %v509
      %v515 = vsel %vm393, 1, 0
      %v516 = vlaneseq
      %v517 = vshrl.u32 %v516, 7
      %v518 = vsub.s32 0, %v517
      %v519 = vrot.slane %v515, %v518
      %v520 = vlaneseq
      %v521 = vshrl.u32 %v520, 7
      %v522 = vsub.s32 1, %v521
      %v523 = vrot.slane %v515, %v522
      %vm524 = vcmp.eq.s32.totalorder %v519, 1
      %vm525 = vcmp.eq.s32.totalorder %v523, 1
      %v526 = vsel %vm524, %v514, 0.0
      %v527 = vsel %vm525, %v513, 0.0
      %s528 = scalar_lea.vmem %s5, 4
      %v529 = vld [vmem:[%s528] sm:$0xf]
      %v531 = vsel %vm405, %v529, 0
      %v534 = vsel %vm409, %v526, 0
      %v537 = vsel %vm409, %v527, 0
      %539 = vmatprep.subr.mxu0 %v537
      %540 = vmatpush1.msra.mxu0 %v534
      %541 = vmatprep.subr.mxu0 0.0
      %542 = vmatpush1.msra.mxu0 0.0
      %543 = vmatprep.subr.mxu0 0.0
      %544 = vmatpush1.msra.mxu0 0.0
      %545 = vmatprep.subr.mxu0 0.0
      %546 = vmatpush1.msra.mxu0 0.0
      %547 = vmatprep.subr.mxu0 0.0
      %548 = vmatpush1.msra.mxu0 0.0
      %549 = vmatprep.subr.mxu0 0.0
      %550 = vmatpush1.msra.mxu0 0.0
      %551 = vmatprep.subr.mxu0 0.0
      %552 = vmatpush1.msra.mxu0 0.0
      %553 = vmatprep.subr.mxu0 0.0
      %554 = vmatpush1.msra.mxu0 0.0
      %555 = vmatprep.subr.mxu0 0.0
      %556 = vmatpush1.msra.mxu0 0.0
      %557 = vmatprep.subr.mxu0 0.0
      %558 = vmatpush1.msra.mxu0 0.0
      %559 = vmatprep.subr.mxu0 0.0
      %560 = vmatpush1.msra.mxu0 0.0
      %561 = vmatprep.subr.mxu0 0.0
      %562 = vmatpush1.msra.mxu0 0.0
      %563 = vmatprep.subr.mxu0 0.0
      %564 = vmatpush1.msra.mxu0 0.0
      %565 = vmatprep.subr.mxu0 0.0
      %566 = vmatpush1.msra.mxu0 0.0
      %567 = vmatprep.subr.mxu0 0.0
      %568 = vmatpush1.msra.mxu0 0.0
      %569 = vmatprep.subr.mxu0 0.0
      %570 = vmatpush1.msra.mxu0 0.0
      %571 = vmatprep.subr.mxu0 0.0
      %572 = vmatpush1.msra.mxu0 0.0
      %573 = vmatprep.subr.mxu0 0.0
      %574 = vmatpush1.msra.mxu0 0.0
      %575 = vmatprep.subr.mxu0 0.0
      %576 = vmatpush1.msra.mxu0 0.0
      %577 = vmatprep.subr.mxu0 0.0
      %578 = vmatpush1.msra.mxu0 0.0
      %579 = vmatprep.subr.mxu0 0.0
      %580 = vmatpush1.msra.mxu0 0.0
      %581 = vmatprep.subr.mxu0 0.0
      %582 = vmatpush1.msra.mxu0 0.0
      %583 = vmatprep.subr.mxu0 0.0
      %584 = vmatpush1.msra.mxu0 0.0
      %585 = vmatprep.subr.mxu0 0.0
      %586 = vmatpush1.msra.mxu0 0.0
      %587 = vmatprep.subr.mxu0 0.0
      %588 = vmatpush1.msra.mxu0 0.0
      %589 = vmatprep.subr.mxu0 0.0
      %590 = vmatpush1.msra.mxu0 0.0
      %591 = vmatprep.subr.mxu0 0.0
      %592 = vmatpush1.msra.mxu0 0.0
      %593 = vmatprep.subr.mxu0 0.0
      %594 = vmatpush1.msra.mxu0 0.0
      %595 = vmatprep.subr.mxu0 0.0
      %596 = vmatpush1.msra.mxu0 0.0
      %597 = vmatprep.subr.mxu0 0.0
      %598 = vmatpush1.msra.mxu0 0.0
      %599 = vmatprep.subr.mxu0 0.0
      %600 = vmatpush1.msra.mxu0 0.0
      %601 = vmatprep.subr.mxu0 0.0
      %602 = vmatpush1.msra.mxu0 0.0
      %603 = vmatprep.mubr.f32.mxu0 0.0
      %604 = vmatmul.mubr.f32.gmra.mrb[0].mxu0 %v531
      %v605 = vpop.f32.mrb[0].mxu0
      %v606 = vadd.f32 0.0, %v605
      %v607 = vpop.f32.mrb[0].mxu0
      %v608 = vadd.f32 0.0, %v607
      %609 = vdwg.mxu0
      %v611 = vsel %vm405, %v507, 0
      %v614 = vsel %vm409, %v505, 0
      %v617 = vsel %vm409, %v506, 0
      %619 = vmatprep.subr.mxu0 %v617
      %620 = vmatpush1.msra.mxu0 %v614
      %621 = vmatprep.subr.mxu0 0.0
      %622 = vmatpush1.msra.mxu0 0.0
      %623 = vmatprep.subr.mxu0 0.0
      %624 = vmatpush1.msra.mxu0 0.0
      %625 = vmatprep.subr.mxu0 0.0
      %626 = vmatpush1.msra.mxu0 0.0
      %627 = vmatprep.subr.mxu0 0.0
      %628 = vmatpush1.msra.mxu0 0.0
      %629 = vmatprep.subr.mxu0 0.0
      %630 = vmatpush1.msra.mxu0 0.0
      %631 = vmatprep.subr.mxu0 0.0
      %632 = vmatpush1.msra.mxu0 0.0
      %633 = vmatprep.subr.mxu0 0.0
      %634 = vmatpush1.msra.mxu0 0.0
      %635 = vmatprep.subr.mxu0 0.0
      %636 = vmatpush1.msra.mxu0 0.0
      %637 = vmatprep.subr.mxu0 0.0
      %638 = vmatpush1.msra.mxu0 0.0
      %639 = vmatprep.subr.mxu0 0.0
      %640 = vmatpush1.msra.mxu0 0.0
      %641 = vmatprep.subr.mxu0 0.0
      %642 = vmatpush1.msra.mxu0 0.0
      %643 = vmatprep.subr.mxu0 0.0
      %644 = vmatpush1.msra.mxu0 0.0
      %645 = vmatprep.subr.mxu0 0.0
      %646 = vmatpush1.msra.mxu0 0.0
      %647 = vmatprep.subr.mxu0 0.0
      %648 = vmatpush1.msra.mxu0 0.0
      %649 = vmatprep.subr.mxu0 0.0
      %650 = vmatpush1.msra.mxu0 0.0
      %651 = vmatprep.subr.mxu0 0.0
      %652 = vmatpush1.msra.mxu0 0.0
      %653 = vmatprep.subr.mxu0 0.0
      %654 = vmatpush1.msra.mxu0 0.0
      %655 = vmatprep.subr.mxu0 0.0
      %656 = vmatpush1.msra.mxu0 0.0
      %657 = vmatprep.subr.mxu0 0.0
      %658 = vmatpush1.msra.mxu0 0.0
      %659 = vmatprep.subr.mxu0 0.0
      %660 = vmatpush1.msra.mxu0 0.0
      %661 = vmatprep.subr.mxu0 0.0
      %662 = vmatpush1.msra.mxu0 0.0
      %663 = vmatprep.subr.mxu0 0.0
      %664 = vmatpush1.msra.mxu0 0.0
      %665 = vmatprep.subr.mxu0 0.0
      %666 = vmatpush1.msra.mxu0 0.0
      %667 = vmatprep.subr.mxu0 0.0
      %668 = vmatpush1.msra.mxu0 0.0
      %669 = vmatprep.subr.mxu0 0.0
      %670 = vmatpush1.msra.mxu0 0.0
      %671 = vmatprep.subr.mxu0 0.0
      %672 = vmatpush1.msra.mxu0 0.0
      %673 = vmatprep.subr.mxu0 0.0
      %674 = vmatpush1.msra.mxu0 0.0
      %675 = vmatprep.subr.mxu0 0.0
      %676 = vmatpush1.msra.mxu0 0.0
      %677 = vmatprep.subr.mxu0 0.0
      %678 = vmatpush1.msra.mxu0 0.0
      %679 = vmatprep.subr.mxu0 0.0
      %680 = vmatpush1.msra.mxu0 0.0
      %681 = vmatprep.subr.mxu0 0.0
      %682 = vmatpush1.msra.mxu0 0.0
      %683 = vmatprep.mubr.f32.mxu0 0.0
      %684 = vmatmul.mubr.f32.gmra.mrb[0].mxu0 %v611
      %v685 = vpop.f32.mrb[0].mxu0
      %v686 = vadd.f32 %v606, %v685
      %v687 = vpop.f32.mrb[0].mxu0
      %v688 = vadd.f32 %v608, %v687
      %689 = vdwg.mxu0
      %690 = vrot.lane.b32.xlu0 %v481, 15
      %v691 = vpop.permute.xlu0 %690
      %692 = vrot.lane.b32.xlu0 %v483, 15
      %v693 = vpop.permute.xlu0 %692
      %vm694 = vcmp.lt.s32.totalorder %v490, 15
      %v695 = vsel %vm694, %v691, %v693
      %v696 = vsel %vm694, %v693, %v691
      %v697 = vsel %vm394, 1, 0
      %v698 = vlaneseq
      %v699 = vshrl.u32 %v698, 7
      %v700 = vsub.s32 0, %v699
      %v701 = vrot.slane %v697, %v700
      %v702 = vlaneseq
      %v703 = vshrl.u32 %v702, 7
      %v704 = vsub.s32 1, %v703
      %v705 = vrot.slane %v697, %v704
      %vm706 = vcmp.eq.s32.totalorder %v701, 1
      %vm707 = vcmp.eq.s32.totalorder %v705, 1
      %v708 = vsel %vm706, %v696, 0.0
      %v709 = vsel %vm707, %v695, 0.0
      %s710 = scalar_lea.vmem %s5, 8
      %v711 = vld [vmem:[%s710] sm:$0xf]
      %v713 = vsel %vm405, %v711, 0
      %v716 = vsel %vm409, %v708, 0
      %v719 = vsel %vm409, %v709, 0
      %721 = vmatprep.subr.mxu0 %v719
      %722 = vmatpush1.msra.mxu0 %v716
      %723 = vmatprep.subr.mxu0 0.0
      %724 = vmatpush1.msra.mxu0 0.0
      %725 = vmatprep.subr.mxu0 0.0
      %726 = vmatpush1.msra.mxu0 0.0
      %727 = vmatprep.subr.mxu0 0.0
      %728 = vmatpush1.msra.mxu0 0.0
      %729 = vmatprep.subr.mxu0 0.0
      %730 = vmatpush1.msra.mxu0 0.0
      %731 = vmatprep.subr.mxu0 0.0
      %732 = vmatpush1.msra.mxu0 0.0
      %733 = vmatprep.subr.mxu0 0.0
      %734 = vmatpush1.msra.mxu0 0.0
      %735 = vmatprep.subr.mxu0 0.0
      %736 = vmatpush1.msra.mxu0 0.0
      %737 = vmatprep.subr.mxu0 0.0
      %738 = vmatpush1.msra.mxu0 0.0
      %739 = vmatprep.subr.mxu0 0.0
      %740 = vmatpush1.msra.mxu0 0.0
      %741 = vmatprep.subr.mxu0 0.0
      %742 = vmatpush1.msra.mxu0 0.0
      %743 = vmatprep.subr.mxu0 0.0
      %744 = vmatpush1.msra.mxu0 0.0
      %745 = vmatprep.subr.mxu0 0.0
      %746 = vmatpush1.msra.mxu0 0.0
      %747 = vmatprep.subr.mxu0 0.0
      %748 = vmatpush1.msra.mxu0 0.0
      %749 = vmatprep.subr.mxu0 0.0
      %750 = vmatpush1.msra.mxu0 0.0
      %751 = vmatprep.subr.mxu0 0.0
      %752 = vmatpush1.msra.mxu0 0.0
      %753 = vmatprep.subr.mxu0 0.0
      %754 = vmatpush1.msra.mxu0 0.0
      %755 = vmatprep.subr.mxu0 0.0
      %756 = vmatpush1.msra.mxu0 0.0
      %757 = vmatprep.subr.mxu0 0.0
      %758 = vmatpush1.msra.mxu0 0.0
      %759 = vmatprep.subr.mxu0 0.0
      %760 = vmatpush1.msra.mxu0 0.0
      %761 = vmatprep.subr.mxu0 0.0
      %762 = vmatpush1.msra.mxu0 0.0
      %763 = vmatprep.subr.mxu0 0.0
      %764 = vmatpush1.msra.mxu0 0.0
      %765 = vmatprep.subr.mxu0 0.0
      %766 = vmatpush1.msra.mxu0 0.0
      %767 = vmatprep.subr.mxu0 0.0
      %768 = vmatpush1.msra.mxu0 0.0
      %769 = vmatprep.subr.mxu0 0.0
      %770 = vmatpush1.msra.mxu0 0.0
      %771 = vmatprep.subr.mxu0 0.0
      %772 = vmatpush1.msra.mxu0 0.0
      %773 = vmatprep.subr.mxu0 0.0
      %774 = vmatpush1.msra.mxu0 0.0
      %775 = vmatprep.subr.mxu0 0.0
      %776 = vmatpush1.msra.mxu0 0.0
      %777 = vmatprep.subr.mxu0 0.0
      %778 = vmatpush1.msra.mxu0 0.0
      %779 = vmatprep.subr.mxu0 0.0
      %780 = vmatpush1.msra.mxu0 0.0
      %781 = vmatprep.subr.mxu0 0.0
      %782 = vmatpush1.msra.mxu0 0.0
      %783 = vmatprep.subr.mxu0 0.0
      %784 = vmatpush1.msra.mxu0 0.0
      %785 = vmatprep.mubr.f32.mxu0 0.0
      %786 = vmatmul.mubr.f32.gmra.mrb[0].mxu0 %v713
      %v787 = vpop.f32.mrb[0].mxu0
      %v788 = vadd.f32 0.0, %v787
      %v789 = vpop.f32.mrb[0].mxu0
      %v790 = vadd.f32 0.0, %v789
      %791 = vdwg.mxu0
      %v792 = vadd.f32 %v686, %v788
      %v793 = vadd.f32 %v688, %v790
      %794 = vrot.lane.b32.xlu0 %v481, 1
      %v795 = vpop.permute.xlu0 %794
      %796 = vrot.lane.b32.xlu0 %v483, 1
      %v797 = vpop.permute.xlu0 %796
      %vm798 = vcmp.lt.s32.totalorder %v490, 1
      %v799 = vsel %vm798, %v795, %v797
      %v800 = vsel %vm798, %v797, %v795
      %v801 = vsel %vm395, 1, 0
      %v802 = vlaneseq
      %v803 = vshrl.u32 %v802, 7
      %v804 = vsub.s32 0, %v803
      %v805 = vrot.slane %v801, %v804
      %v806 = vlaneseq
      %v807 = vshrl.u32 %v806, 7
      %v808 = vsub.s32 1, %v807
      %v809 = vrot.slane %v801, %v808
      %vm810 = vcmp.eq.s32.totalorder %v805, 1
      %vm811 = vcmp.eq.s32.totalorder %v809, 1
      %v812 = vsel %vm810, %v800, 0.0
      %v813 = vsel %vm811, %v799, 0.0
      %s814 = scalar_lea.vmem %s5, 12
      %v815 = vld [vmem:[%s814] sm:$0xf]
      %v817 = vsel %vm405, %v815, 0
      %v820 = vsel %vm409, %v812, 0
      %v823 = vsel %vm409, %v813, 0
      %825 = vmatprep.subr.mxu0 %v823
      %826 = vmatpush1.msra.mxu0 %v820
      %827 = vmatprep.subr.mxu0 0.0
      %828 = vmatpush1.msra.mxu0 0.0
      %829 = vmatprep.subr.mxu0 0.0
      %830 = vmatpush1.msra.mxu0 0.0
      %831 = vmatprep.subr.mxu0 0.0
      %832 = vmatpush1.msra.mxu0 0.0
      %833 = vmatprep.subr.mxu0 0.0
      %834 = vmatpush1.msra.mxu0 0.0
      %835 = vmatprep.subr.mxu0 0.0
      %836 = vmatpush1.msra.mxu0 0.0
      %837 = vmatprep.subr.mxu0 0.0
      %838 = vmatpush1.msra.mxu0 0.0
      %839 = vmatprep.subr.mxu0 0.0
      %840 = vmatpush1.msra.mxu0 0.0
      %841 = vmatprep.subr.mxu0 0.0
      %842 = vmatpush1.msra.mxu0 0.0
      %843 = vmatprep.subr.mxu0 0.0
      %844 = vmatpush1.msra.mxu0 0.0
      %845 = vmatprep.subr.mxu0 0.0
      %846 = vmatpush1.msra.mxu0 0.0
      %847 = vmatprep.subr.mxu0 0.0
      %848 = vmatpush1.msra.mxu0 0.0
      %849 = vmatprep.subr.mxu0 0.0
      %850 = vmatpush1.msra.mxu0 0.0
      %851 = vmatprep.subr.mxu0 0.0
      %852 = vmatpush1.msra.mxu0 0.0
      %853 = vmatprep.subr.mxu0 0.0
      %854 = vmatpush1.msra.mxu0 0.0
      %855 = vmatprep.subr.mxu0 0.0
      %856 = vmatpush1.msra.mxu0 0.0
      %857 = vmatprep.subr.mxu0 0.0
      %858 = vmatpush1.msra.mxu0 0.0
      %859 = vmatprep.subr.mxu0 0.0
      %860 = vmatpush1.msra.mxu0 0.0
      %861 = vmatprep.subr.mxu0 0.0
      %862 = vmatpush1.msra.mxu0 0.0
      %863 = vmatprep.subr.mxu0 0.0
      %864 = vmatpush1.msra.mxu0 0.0
      %865 = vmatprep.subr.mxu0 0.0
      %866 = vmatpush1.msra.mxu0 0.0
      %867 = vmatprep.subr.mxu0 0.0
      %868 = vmatpush1.msra.mxu0 0.0
      %869 = vmatprep.subr.mxu0 0.0
      %870 = vmatpush1.msra.mxu0 0.0
      %871 = vmatprep.subr.mxu0 0.0
      %872 = vmatpush1.msra.mxu0 0.0
      %873 = vmatprep.subr.mxu0 0.0
      %874 = vmatpush1.msra.mxu0 0.0
      %875 = vmatprep.subr.mxu0 0.0
      %876 = vmatpush1.msra.mxu0 0.0
      %877 = vmatprep.subr.mxu0 0.0
      %878 = vmatpush1.msra.mxu0 0.0
      %879 = vmatprep.subr.mxu0 0.0
      %880 = vmatpush1.msra.mxu0 0.0
      %881 = vmatprep.subr.mxu0 0.0
      %882 = vmatpush1.msra.mxu0 0.0
      %883 = vmatprep.subr.mxu0 0.0
      %884 = vmatpush1.msra.mxu0 0.0
      %885 = vmatprep.subr.mxu0 0.0
      %886 = vmatpush1.msra.mxu0 0.0
      %887 = vmatprep.subr.mxu0 0.0
      %888 = vmatpush1.msra.mxu0 0.0
      %889 = vmatprep.mubr.f32.mxu0 0.0
      %890 = vmatmul.mubr.f32.gmra.mrb[0].mxu0 %v817
      %v891 = vpop.f32.mrb[0].mxu0
      %v892 = vadd.f32 0.0, %v891
      %v893 = vpop.f32.mrb[0].mxu0
      %v894 = vadd.f32 0.0, %v893
      %895 = vdwg.mxu0
      %v896 = vadd.f32 %v792, %v892
      %v897 = vadd.f32 %v793, %v894
      %s898 = scalar_lea.vmem %s5, 16
      %v899 = vld [vmem:[%s898] sm:$0xf]
      %v901 = vsel %vm405, %v899, 0
      %v904 = vsel %vm409, %v481, 0
      %v907 = vsel %vm409, %v483, 0
      %909 = vmatprep.subr.mxu0 %v907
      %910 = vmatpush1.msra.mxu0 %v904
      %911 = vmatprep.subr.mxu0 0.0
      %912 = vmatpush1.msra.mxu0 0.0
      %913 = vmatprep.subr.mxu0 0.0
      %914 = vmatpush1.msra.mxu0 0.0
      %915 = vmatprep.subr.mxu0 0.0
      %916 = vmatpush1.msra.mxu0 0.0
      %917 = vmatprep.subr.mxu0 0.0
      %918 = vmatpush1.msra.mxu0 0.0
      %919 = vmatprep.subr.mxu0 0.0
      %920 = vmatpush1.msra.mxu0 0.0
      %921 = vmatprep.subr.mxu0 0.0
      %922 = vmatpush1.msra.mxu0 0.0
      %923 = vmatprep.subr.mxu0 0.0
      %924 = vmatpush1.msra.mxu0 0.0
      %925 = vmatprep.subr.mxu0 0.0
      %926 = vmatpush1.msra.mxu0 0.0
      %927 = vmatprep.subr.mxu0 0.0
      %928 = vmatpush1.msra.mxu0 0.0
      %929 = vmatprep.subr.mxu0 0.0
      %930 = vmatpush1.msra.mxu0 0.0
      %931 = vmatprep.subr.mxu0 0.0
      %932 = vmatpush1.msra.mxu0 0.0
      %933 = vmatprep.subr.mxu0 0.0
      %934 = vmatpush1.msra.mxu0 0.0
      %935 = vmatprep.subr.mxu0 0.0
      %936 = vmatpush1.msra.mxu0 0.0
      %937 = vmatprep.subr.mxu0 0.0
      %938 = vmatpush1.msra.mxu0 0.0
      %939 = vmatprep.subr.mxu0 0.0
      %940 = vmatpush1.msra.mxu0 0.0
      %941 = vmatprep.subr.mxu0 0.0
      %942 = vmatpush1.msra.mxu0 0.0
      %943 = vmatprep.subr.mxu0 0.0
      %944 = vmatpush1.msra.mxu0 0.0
      %945 = vmatprep.subr.mxu0 0.0
      %946 = vmatpush1.msra.mxu0 0.0
      %947 = vmatprep.subr.mxu0 0.0
      %948 = vmatpush1.msra.mxu0 0.0
      %949 = vmatprep.subr.mxu0 0.0
      %950 = vmatpush1.msra.mxu0 0.0
      %951 = vmatprep.subr.mxu0 0.0
      %952 = vmatpush1.msra.mxu0 0.0
      %953 = vmatprep.subr.mxu0 0.0
      %954 = vmatpush1.msra.mxu0 0.0
      %955 = vmatprep.subr.mxu0 0.0
      %956 = vmatpush1.msra.mxu0 0.0
      %957 = vmatprep.subr.mxu0 0.0
      %958 = vmatpush1.msra.mxu0 0.0
      %959 = vmatprep.subr.mxu0 0.0
      %960 = vmatpush1.msra.mxu0 0.0
      %961 = vmatprep.subr.mxu0 0.0
      %962 = vmatpush1.msra.mxu0 0.0
      %963 = vmatprep.subr.mxu0 0.0
      %964 = vmatpush1.msra.mxu0 0.0
      %965 = vmatprep.subr.mxu0 0.0
      %966 = vmatpush1.msra.mxu0 0.0
      %967 = vmatprep.subr.mxu0 0.0
      %968 = vmatpush1.msra.mxu0 0.0
      %969 = vmatprep.subr.mxu0 0.0
      %970 = vmatpush1.msra.mxu0 0.0
      %971 = vmatprep.subr.mxu0 0.0
      %972 = vmatpush1.msra.mxu0 0.0
      %973 = vmatprep.mubr.f32.mxu0 0.0
      %974 = vmatmul.mubr.f32.gmra.mrb[0].mxu0 %v901
      %v975 = vpop.f32.mrb[0].mxu0
      %v976 = vadd.f32 0.0, %v975
      %v977 = vpop.f32.mrb[0].mxu0
      %v978 = vadd.f32 0.0, %v977
      %979 = vdwg.mxu0
      %v980 = vadd.f32 %v896, %v976
      %v981 = vadd.f32 %v897, %v978
      %982 = vrot.lane.b32.xlu0 %v481, 127
      %v983 = vpop.permute.xlu0 %982
      %984 = vrot.lane.b32.xlu0 %v483, 127
      %v985 = vpop.permute.xlu0 %984
      %vm986 = vcmp.lt.s32.totalorder %v490, 127
      %v987 = vsel %vm986, %v983, %v985
      %v988 = vsel %vm986, %v985, %v983
      %v989 = vsel %vm396, 1, 0
      %v990 = vlaneseq
      %v991 = vshrl.u32 %v990, 7
      %v992 = vsub.s32 0, %v991
      %v993 = vrot.slane %v989, %v992
      %v994 = vlaneseq
      %v995 = vshrl.u32 %v994, 7
      %v996 = vsub.s32 1, %v995
      %v997 = vrot.slane %v989, %v996
      %vm998 = vcmp.eq.s32.totalorder %v993, 1
      %vm999 = vcmp.eq.s32.totalorder %v997, 1
      %v1000 = vsel %vm998, %v987, 0.0
      %v1001 = vsel %vm999, %v988, 0.0
      %s1002 = scalar_lea.vmem %s5, 20
      %v1003 = vld [vmem:[%s1002] sm:$0xf]
      %v1005 = vsel %vm405, %v1003, 0
      %v1008 = vsel %vm409, %v1000, 0
      %v1011 = vsel %vm409, %v1001, 0
      %1013 = vmatprep.subr.mxu0 %v1011
      %1014 = vmatpush1.msra.mxu0 %v1008
      %1015 = vmatprep.subr.mxu0 0.0
      %1016 = vmatpush1.msra.mxu0 0.0
      %1017 = vmatprep.subr.mxu0 0.0
      %1018 = vmatpush1.msra.mxu0 0.0
      %1019 = vmatprep.subr.mxu0 0.0
      %1020 = vmatpush1.msra.mxu0 0.0
      %1021 = vmatprep.subr.mxu0 0.0
      %1022 = vmatpush1.msra.mxu0 0.0
      %1023 = vmatprep.subr.mxu0 0.0
      %1024 = vmatpush1.msra.mxu0 0.0
      %1025 = vmatprep.subr.mxu0 0.0
      %1026 = vmatpush1.msra.mxu0 0.0
      %1027 = vmatprep.subr.mxu0 0.0
      %1028 = vmatpush1.msra.mxu0 0.0
      %1029 = vmatprep.subr.mxu0 0.0
      %1030 = vmatpush1.msra.mxu0 0.0
      %1031 = vmatprep.subr.mxu0 0.0
      %1032 = vmatpush1.msra.mxu0 0.0
      %1033 = vmatprep.subr.mxu0 0.0
      %1034 = vmatpush1.msra.mxu0 0.0
      %1035 = vmatprep.subr.mxu0 0.0
      %1036 = vmatpush1.msra.mxu0 0.0
      %1037 = vmatprep.subr.mxu0 0.0
      %1038 = vmatpush1.msra.mxu0 0.0
      %1039 = vmatprep.subr.mxu0 0.0
      %1040 = vmatpush1.msra.mxu0 0.0
      %1041 = vmatprep.subr.mxu0 0.0
      %1042 = vmatpush1.msra.mxu0 0.0
      %1043 = vmatprep.subr.mxu0 0.0
      %1044 = vmatpush1.msra.mxu0 0.0
      %1045 = vmatprep.subr.mxu0 0.0
      %1046 = vmatpush1.msra.mxu0 0.0
      %1047 = vmatprep.subr.mxu0 0.0
      %1048 = vmatpush1.msra.mxu0 0.0
      %1049 = vmatprep.subr.mxu0 0.0
      %1050 = vmatpush1.msra.mxu0 0.0
      %1051 = vmatprep.subr.mxu0 0.0
      %1052 = vmatpush1.msra.mxu0 0.0
      %1053 = vmatprep.subr.mxu0 0.0
      %1054 = vmatpush1.msra.mxu0 0.0
      %1055 = vmatprep.subr.mxu0 0.0
      %1056 = vmatpush1.msra.mxu0 0.0
      %1057 = vmatprep.subr.mxu0 0.0
      %1058 = vmatpush1.msra.mxu0 0.0
      %1059 = vmatprep.subr.mxu0 0.0
      %1060 = vmatpush1.msra.mxu0 0.0
      %1061 = vmatprep.subr.mxu0 0.0
      %1062 = vmatpush1.msra.mxu0 0.0
      %1063 = vmatprep.subr.mxu0 0.0
      %1064 = vmatpush1.msra.mxu0 0.0
      %1065 = vmatprep.subr.mxu0 0.0
      %1066 = vmatpush1.msra.mxu0 0.0
      %1067 = vmatprep.subr.mxu0 0.0
      %1068 = vmatpush1.msra.mxu0 0.0
      %1069 = vmatprep.subr.mxu0 0.0
      %1070 = vmatpush1.msra.mxu0 0.0
      %1071 = vmatprep.subr.mxu0 0.0
      %1072 = vmatpush1.msra.mxu0 0.0
      %1073 = vmatprep.subr.mxu0 0.0
      %1074 = vmatpush1.msra.mxu0 0.0
      %1075 = vmatprep.subr.mxu0 0.0
      %1076 = vmatpush1.msra.mxu0 0.0
      %1077 = vmatprep.mubr.f32.mxu0 0.0
      %1078 = vmatmul.mubr.f32.gmra.mrb[0].mxu0 %v1005
      %v1079 = vpop.f32.mrb[0].mxu0
      %v1080 = vadd.f32 0.0, %v1079
      %v1081 = vpop.f32.mrb[0].mxu0
      %v1082 = vadd.f32 0.0, %v1081
      %1083 = vdwg.mxu0
      %v1084 = vadd.f32 %v980, %v1080
      %v1085 = vadd.f32 %v981, %v1082
      %1086 = vrot.lane.b32.xlu0 %v481, 113
      %v1087 = vpop.permute.xlu0 %1086
      %1088 = vrot.lane.b32.xlu0 %v483, 113
      %v1089 = vpop.permute.xlu0 %1088
      %vm1090 = vcmp.lt.s32.totalorder %v490, 113
      %v1091 = vsel %vm1090, %v1087, %v1089
      %v1092 = vsel %vm1090, %v1089, %v1087
      %v1093 = vsel %vm397, 1, 0
      %v1094 = vlaneseq
      %v1095 = vshrl.u32 %v1094, 7
      %v1096 = vsub.s32 0, %v1095
      %v1097 = vrot.slane %v1093, %v1096
      %v1098 = vlaneseq
      %v1099 = vshrl.u32 %v1098, 7
      %v1100 = vsub.s32 1, %v1099
      %v1101 = vrot.slane %v1093, %v1100
      %vm1102 = vcmp.eq.s32.totalorder %v1097, 1
      %vm1103 = vcmp.eq.s32.totalorder %v1101, 1
      %v1104 = vsel %vm1102, %v1091, 0.0
      %v1105 = vsel %vm1103, %v1092, 0.0
      %s1106 = scalar_lea.vmem %s5, 24
      %v1107 = vld [vmem:[%s1106] sm:$0xf]
      %v1109 = vsel %vm405, %v1107, 0
      %v1112 = vsel %vm409, %v1104, 0
      %v1115 = vsel %vm409, %v1105, 0
      %1117 = vmatprep.subr.mxu0 %v1115
      %1118 = vmatpush1.msra.mxu0 %v1112
      %1119 = vmatprep.subr.mxu0 0.0
      %1120 = vmatpush1.msra.mxu0 0.0
      %1121 = vmatprep.subr.mxu0 0.0
      %1122 = vmatpush1.msra.mxu0 0.0
      %1123 = vmatprep.subr.mxu0 0.0
      %1124 = vmatpush1.msra.mxu0 0.0
      %1125 = vmatprep.subr.mxu0 0.0
      %1126 = vmatpush1.msra.mxu0 0.0
      %1127 = vmatprep.subr.mxu0 0.0
      %1128 = vmatpush1.msra.mxu0 0.0
      %1129 = vmatprep.subr.mxu0 0.0
      %1130 = vmatpush1.msra.mxu0 0.0
      %1131 = vmatprep.subr.mxu0 0.0
      %1132 = vmatpush1.msra.mxu0 0.0
      %1133 = vmatprep.subr.mxu0 0.0
      %1134 = vmatpush1.msra.mxu0 0.0
      %1135 = vmatprep.subr.mxu0 0.0
      %1136 = vmatpush1.msra.mxu0 0.0
      %1137 = vmatprep.subr.mxu0 0.0
      %1138 = vmatpush1.msra.mxu0 0.0
      %1139 = vmatprep.subr.mxu0 0.0
      %1140 = vmatpush1.msra.mxu0 0.0
      %1141 = vmatprep.subr.mxu0 0.0
      %1142 = vmatpush1.msra.mxu0 0.0
      %1143 = vmatprep.subr.mxu0 0.0
      %1144 = vmatpush1.msra.mxu0 0.0
      %1145 = vmatprep.subr.mxu0 0.0
      %1146 = vmatpush1.msra.mxu0 0.0
      %1147 = vmatprep.subr.mxu0 0.0
      %1148 = vmatpush1.msra.mxu0 0.0
      %1149 = vmatprep.subr.mxu0 0.0
      %1150 = vmatpush1.msra.mxu0 0.0
      %1151 = vmatprep.subr.mxu0 0.0
      %1152 = vmatpush1.msra.mxu0 0.0
      %1153 = vmatprep.subr.mxu0 0.0
      %1154 = vmatpush1.msra.mxu0 0.0
      %1155 = vmatprep.subr.mxu0 0.0
      %1156 = vmatpush1.msra.mxu0 0.0
      %1157 = vmatprep.subr.mxu0 0.0
      %1158 = vmatpush1.msra.mxu0 0.0
      %1159 = vmatprep.subr.mxu0 0.0
      %1160 = vmatpush1.msra.mxu0 0.0
      %1161 = vmatprep.subr.mxu0 0.0
      %1162 = vmatpush1.msra.mxu0 0.0
      %1163 = vmatprep.subr.mxu0 0.0
      %1164 = vmatpush1.msra.mxu0 0.0
      %1165 = vmatprep.subr.mxu0 0.0
      %1166 = vmatpush1.msra.mxu0 0.0
      %1167 = vmatprep.subr.mxu0 0.0
      %1168 = vmatpush1.msra.mxu0 0.0
      %1169 = vmatprep.subr.mxu0 0.0
      %1170 = vmatpush1.msra.mxu0 0.0
      %1171 = vmatprep.subr.mxu0 0.0
      %1172 = vmatpush1.msra.mxu0 0.0
      %1173 = vmatprep.subr.mxu0 0.0
      %1174 = vmatpush1.msra.mxu0 0.0
      %1175 = vmatprep.subr.mxu0 0.0
      %1176 = vmatpush1.msra.mxu0 0.0
      %1177 = vmatprep.subr.mxu0 0.0
      %1178 = vmatpush1.msra.mxu0 0.0
      %1179 = vmatprep.subr.mxu0 0.0
      %1180 = vmatpush1.msra.mxu0 0.0
      %1181 = vmatprep.mubr.f32.mxu0 0.0
      %1182 = vmatmul.mubr.f32.gmra.mrb[0].mxu0 %v1109
      %v1183 = vpop.f32.mrb[0].mxu0
      %v1184 = vadd.f32 0.0, %v1183
      %v1185 = vpop.f32.mrb[0].mxu0
      %v1186 = vadd.f32 0.0, %v1185
      %1187 = vdwg.mxu0
      %v1188 = vadd.f32 %v1084, %v1184
      %v1189 = vadd.f32 %v1085, %v1186
      %1190 = vrot.lane.b32.xlu0 %v481, 112
      %v1191 = vpop.permute.xlu0 %1190
      %1192 = vrot.lane.b32.xlu0 %v483, 112
      %v1193 = vpop.permute.xlu0 %1192
      %vm1194 = vcmp.lt.s32.totalorder %v490, 112
      %v1195 = vsel %vm1194, %v1191, %v1193
      %v1196 = vsel %vm1194, %v1193, %v1191
      %v1197 = vsel %vm398, 1, 0
      %v1198 = vlaneseq
      %v1199 = vshrl.u32 %v1198, 7
      %v1200 = vsub.s32 0, %v1199
      %v1201 = vrot.slane %v1197, %v1200
      %v1202 = vlaneseq
      %v1203 = vshrl.u32 %v1202, 7
      %v1204 = vsub.s32 1, %v1203
      %v1205 = vrot.slane %v1197, %v1204
      %vm1206 = vcmp.eq.s32.totalorder %v1201, 1
      %vm1207 = vcmp.eq.s32.totalorder %v1205, 1
      %v1208 = vsel %vm1206, %v1195, 0.0
      %v1209 = vsel %vm1207, %v1196, 0.0
      %s1210 = scalar_lea.vmem %s5, 28
      %v1211 = vld [vmem:[%s1210] sm:$0xf]
      %v1213 = vsel %vm405, %v1211, 0
      %v1216 = vsel %vm409, %v1208, 0
      %v1219 = vsel %vm409, %v1209, 0
      %1221 = vmatprep.subr.mxu0 %v1219
      %1222 = vmatpush1.msra.mxu0 %v1216
      %1223 = vmatprep.subr.mxu0 0.0
      %1224 = vmatpush1.msra.mxu0 0.0
      %1225 = vmatprep.subr.mxu0 0.0
      %1226 = vmatpush1.msra.mxu0 0.0
      %1227 = vmatprep.subr.mxu0 0.0
      %1228 = vmatpush1.msra.mxu0 0.0
      %1229 = vmatprep.subr.mxu0 0.0
      %1230 = vmatpush1.msra.mxu0 0.0
      %1231 = vmatprep.subr.mxu0 0.0
      %1232 = vmatpush1.msra.mxu0 0.0
      %1233 = vmatprep.subr.mxu0 0.0
      %1234 = vmatpush1.msra.mxu0 0.0
      %1235 = vmatprep.subr.mxu0 0.0
      %1236 = vmatpush1.msra.mxu0 0.0
      %1237 = vmatprep.subr.mxu0 0.0
      %1238 = vmatpush1.msra.mxu0 0.0
      %1239 = vmatprep.subr.mxu0 0.0
      %1240 = vmatpush1.msra.mxu0 0.0
      %1241 = vmatprep.subr.mxu0 0.0
      %1242 = vmatpush1.msra.mxu0 0.0
      %1243 = vmatprep.subr.mxu0 0.0
      %1244 = vmatpush1.msra.mxu0 0.0
      %1245 = vmatprep.subr.mxu0 0.0
      %1246 = vmatpush1.msra.mxu0 0.0
      %1247 = vmatprep.subr.mxu0 0.0
      %1248 = vmatpush1.msra.mxu0 0.0
      %1249 = vmatprep.subr.mxu0 0.0
      %1250 = vmatpush1.msra.mxu0 0.0
      %1251 = vmatprep.subr.mxu0 0.0
      %1252 = vmatpush1.msra.mxu0 0.0
      %1253 = vmatprep.subr.mxu0 0.0
      %1254 = vmatpush1.msra.mxu0 0.0
      %1255 = vmatprep.subr.mxu0 0.0
      %1256 = vmatpush1.msra.mxu0 0.0
      %1257 = vmatprep.subr.mxu0 0.0
      %1258 = vmatpush1.msra.mxu0 0.0
      %1259 = vmatprep.subr.mxu0 0.0
      %1260 = vmatpush1.msra.mxu0 0.0
      %1261 = vmatprep.subr.mxu0 0.0
      %1262 = vmatpush1.msra.mxu0 0.0
      %1263 = vmatprep.subr.mxu0 0.0
      %1264 = vmatpush1.msra.mxu0 0.0
      %1265 = vmatprep.subr.mxu0 0.0
      %1266 = vmatpush1.msra.mxu0 0.0
      %1267 = vmatprep.subr.mxu0 0.0
      %1268 = vmatpush1.msra.mxu0 0.0
      %1269 = vmatprep.subr.mxu0 0.0
      %1270 = vmatpush1.msra.mxu0 0.0
      %1271 = vmatprep.subr.mxu0 0.0
      %1272 = vmatpush1.msra.mxu0 0.0
      %1273 = vmatprep.subr.mxu0 0.0
      %1274 = vmatpush1.msra.mxu0 0.0
      %1275 = vmatprep.subr.mxu0 0.0
      %1276 = vmatpush1.msra.mxu0 0.0
      %1277 = vmatprep.subr.mxu0 0.0
      %1278 = vmatpush1.msra.mxu0 0.0
      %1279 = vmatprep.subr.mxu0 0.0
      %1280 = vmatpush1.msra.mxu0 0.0
      %1281 = vmatprep.subr.mxu0 0.0
      %1282 = vmatpush1.msra.mxu0 0.0
      %1283 = vmatprep.subr.mxu0 0.0
      %1284 = vmatpush1.msra.mxu0 0.0
      %1285 = vmatprep.mubr.f32.mxu0 0.0
      %1286 = vmatmul.mubr.f32.gmra.mrb[0].mxu0 %v1213
      %v1287 = vpop.f32.mrb[0].mxu0
      %v1288 = vadd.f32 0.0, %v1287
      %v1289 = vpop.f32.mrb[0].mxu0
      %v1290 = vadd.f32 0.0, %v1289
      %1291 = vdwg.mxu0
      %v1292 = vadd.f32 %v1188, %v1288
      %v1293 = vadd.f32 %v1189, %v1290
      %1294 = vrot.lane.b32.xlu0 %v481, 111
      %v1295 = vpop.permute.xlu0 %1294
      %1296 = vrot.lane.b32.xlu0 %v483, 111
      %v1297 = vpop.permute.xlu0 %1296
      %vm1298 = vcmp.lt.s32.totalorder %v490, 111
      %v1299 = vsel %vm1298, %v1295, %v1297
      %v1300 = vsel %vm1298, %v1297, %v1295
      %v1301 = vsel %vm399, 1, 0
      %v1302 = vlaneseq
      %v1303 = vshrl.u32 %v1302, 7
      %v1304 = vsub.s32 0, %v1303
      %v1305 = vrot.slane %v1301, %v1304
      %v1306 = vlaneseq
      %v1307 = vshrl.u32 %v1306, 7
      %v1308 = vsub.s32 1, %v1307
      %v1309 = vrot.slane %v1301, %v1308
      %vm1310 = vcmp.eq.s32.totalorder %v1305, 1
      %vm1311 = vcmp.eq.s32.totalorder %v1309, 1
      %v1312 = vsel %vm1310, %v1299, 0.0
      %v1313 = vsel %vm1311, %v1300, 0.0
      %s1314 = scalar_lea.vmem %s5, 32
      %v1315 = vld [vmem:[%s1314] sm:$0xf]
      %v1317 = vsel %vm405, %v1315, 0
      %v1320 = vsel %vm409, %v1312, 0
      %v1323 = vsel %vm409, %v1313, 0
      %1325 = vmatprep.subr.mxu0 %v1323
      %1326 = vmatpush1.msra.mxu0 %v1320
      %1327 = vmatprep.subr.mxu0 0.0
      %1328 = vmatpush1.msra.mxu0 0.0
      %1329 = vmatprep.subr.mxu0 0.0
      %1330 = vmatpush1.msra.mxu0 0.0
      %1331 = vmatprep.subr.mxu0 0.0
      %1332 = vmatpush1.msra.mxu0 0.0
      %1333 = vmatprep.subr.mxu0 0.0
      %1334 = vmatpush1.msra.mxu0 0.0
      %1335 = vmatprep.subr.mxu0 0.0
      %1336 = vmatpush1.msra.mxu0 0.0
      %1337 = vmatprep.subr.mxu0 0.0
      %1338 = vmatpush1.msra.mxu0 0.0
      %1339 = vmatprep.subr.mxu0 0.0
      %1340 = vmatpush1.msra.mxu0 0.0
      %1341 = vmatprep.subr.mxu0 0.0
      %1342 = vmatpush1.msra.mxu0 0.0
      %1343 = vmatprep.subr.mxu0 0.0
      %1344 = vmatpush1.msra.mxu0 0.0
      %1345 = vmatprep.subr.mxu0 0.0
      %1346 = vmatpush1.msra.mxu0 0.0
      %1347 = vmatprep.subr.mxu0 0.0
      %1348 = vmatpush1.msra.mxu0 0.0
      %1349 = vmatprep.subr.mxu0 0.0
      %1350 = vmatpush1.msra.mxu0 0.0
      %1351 = vmatprep.subr.mxu0 0.0
      %1352 = vmatpush1.msra.mxu0 0.0
      %1353 = vmatprep.subr.mxu0 0.0
      %1354 = vmatpush1.msra.mxu0 0.0
      %1355 = vmatprep.subr.mxu0 0.0
      %1356 = vmatpush1.msra.mxu0 0.0
      %1357 = vmatprep.subr.mxu0 0.0
      %1358 = vmatpush1.msra.mxu0 0.0
      %1359 = vmatprep.subr.mxu0 0.0
      %1360 = vmatpush1.msra.mxu0 0.0
      %1361 = vmatprep.subr.mxu0 0.0
      %1362 = vmatpush1.msra.mxu0 0.0
      %1363 = vmatprep.subr.mxu0 0.0
      %1364 = vmatpush1.msra.mxu0 0.0
      %1365 = vmatprep.subr.mxu0 0.0
      %1366 = vmatpush1.msra.mxu0 0.0
      %1367 = vmatprep.subr.mxu0 0.0
      %1368 = vmatpush1.msra.mxu0 0.0
      %1369 = vmatprep.subr.mxu0 0.0
      %1370 = vmatpush1.msra.mxu0 0.0
      %1371 = vmatprep.subr.mxu0 0.0
      %1372 = vmatpush1.msra.mxu0 0.0
      %1373 = vmatprep.subr.mxu0 0.0
      %1374 = vmatpush1.msra.mxu0 0.0
      %1375 = vmatprep.subr.mxu0 0.0
      %1376 = vmatpush1.msra.mxu0 0.0
      %1377 = vmatprep.subr.mxu0 0.0
      %1378 = vmatpush1.msra.mxu0 0.0
      %1379 = vmatprep.subr.mxu0 0.0
      %1380 = vmatpush1.msra.mxu0 0.0
      %1381 = vmatprep.subr.mxu0 0.0
      %1382 = vmatpush1.msra.mxu0 0.0
      %1383 = vmatprep.subr.mxu0 0.0
      %1384 = vmatpush1.msra.mxu0 0.0
      %1385 = vmatprep.subr.mxu0 0.0
      %1386 = vmatpush1.msra.mxu0 0.0
      %1387 = vmatprep.subr.mxu0 0.0
      %1388 = vmatpush1.msra.mxu0 0.0
      %1389 = vmatprep.mubr.f32.mxu0 0.0
      %1390 = vmatmul.mubr.f32.gmra.mrb[0].mxu0 %v1317
      %v1391 = vpop.f32.mrb[0].mxu0
      %v1392 = vadd.f32 0.0, %v1391
      %v1393 = vpop.f32.mrb[0].mxu0
      %v1394 = vadd.f32 0.0, %v1393
      %1395 = vdwg.mxu0
      %v1396 = vadd.f32 %v1292, %v1392
      %v1397 = vadd.f32 %v1293, %v1394
      %v1399 = vsel %vm405, %v401, 0
      %v1402 = vsel %vm409, %v1396, 0
      %v1405 = vsel %vm409, %v1397, 0
      %1407 = vmatprep.subr.mxu0 %v1405
      %1408 = vmatpush1.msra.mxu0 %v1402
      %1409 = vmatprep.subr.mxu0 0.0
      %1410 = vmatpush1.msra.mxu0 0.0
      %1411 = vmatprep.subr.mxu0 0.0
      %1412 = vmatpush1.msra.mxu0 0.0
      %1413 = vmatprep.subr.mxu0 0.0
      %1414 = vmatpush1.msra.mxu0 0.0
      %1415 = vmatprep.subr.mxu0 0.0
      %1416 = vmatpush1.msra.mxu0 0.0
      %1417 = vmatprep.subr.mxu0 0.0
      %1418 = vmatpush1.msra.mxu0 0.0
      %1419 = vmatprep.subr.mxu0 0.0
      %1420 = vmatpush1.msra.mxu0 0.0
      %1421 = vmatprep.subr.mxu0 0.0
      %1422 = vmatpush1.msra.mxu0 0.0
      %1423 = vmatprep.subr.mxu0 0.0
      %1424 = vmatpush1.msra.mxu0 0.0
      %1425 = vmatprep.subr.mxu0 0.0
      %1426 = vmatpush1.msra.mxu0 0.0
      %1427 = vmatprep.subr.mxu0 0.0
      %1428 = vmatpush1.msra.mxu0 0.0
      %1429 = vmatprep.subr.mxu0 0.0
      %1430 = vmatpush1.msra.mxu0 0.0
      %1431 = vmatprep.subr.mxu0 0.0
      %1432 = vmatpush1.msra.mxu0 0.0
      %1433 = vmatprep.subr.mxu0 0.0
      %1434 = vmatpush1.msra.mxu0 0.0
      %1435 = vmatprep.subr.mxu0 0.0
      %1436 = vmatpush1.msra.mxu0 0.0
      %1437 = vmatprep.subr.mxu0 0.0
      %1438 = vmatpush1.msra.mxu0 0.0
      %1439 = vmatprep.subr.mxu0 0.0
      %1440 = vmatpush1.msra.mxu0 0.0
      %1441 = vmatprep.subr.mxu0 0.0
      %1442 = vmatpush1.msra.mxu0 0.0
      %1443 = vmatprep.subr.mxu0 0.0
      %1444 = vmatpush1.msra.mxu0 0.0
      %1445 = vmatprep.subr.mxu0 0.0
      %1446 = vmatpush1.msra.mxu0 0.0
      %1447 = vmatprep.subr.mxu0 0.0
      %1448 = vmatpush1.msra.mxu0 0.0
      %1449 = vmatprep.subr.mxu0 0.0
      %1450 = vmatpush1.msra.mxu0 0.0
      %1451 = vmatprep.subr.mxu0 0.0
      %1452 = vmatpush1.msra.mxu0 0.0
      %1453 = vmatprep.subr.mxu0 0.0
      %1454 = vmatpush1.msra.mxu0 0.0
      %1455 = vmatprep.subr.mxu0 0.0
      %1456 = vmatpush1.msra.mxu0 0.0
      %1457 = vmatprep.subr.mxu0 0.0
      %1458 = vmatpush1.msra.mxu0 0.0
      %1459 = vmatprep.subr.mxu0 0.0
      %1460 = vmatpush1.msra.mxu0 0.0
      %1461 = vmatprep.subr.mxu0 0.0
      %1462 = vmatpush1.msra.mxu0 0.0
      %1463 = vmatprep.subr.mxu0 0.0
      %1464 = vmatpush1.msra.mxu0 0.0
      %1465 = vmatprep.subr.mxu0 0.0
      %1466 = vmatpush1.msra.mxu0 0.0
      %1467 = vmatprep.subr.mxu0 0.0
      %1468 = vmatpush1.msra.mxu0 0.0
      %1469 = vmatprep.subr.mxu0 0.0
      %1470 = vmatpush1.msra.mxu0 0.0
      %1471 = vmatprep.mubr.f32.mxu0 0.0
      %1472 = vmatmul.mubr.f32.gmra.mrb[0].mxu0 %v1399
      %v1473 = vpop.f32.mrb[0].mxu0
      %v1474 = vadd.f32 0.0, %v1473
      %v1475 = vpop.f32.mrb[0].mxu0
      %v1476 = vadd.f32 0.0, %v1475
      %1477 = vdwg.mxu0
      %v1478 = vld [vmem:[%s7] sm:$0xf]
      %1479 = vrot.lane.b32.xlu0 %v1474, 2
      %v1480 = vpop.permute.xlu0 %1479
      %1481 = vrot.lane.b32.xlu0 %v1476, 2
      %v1482 = vpop.permute.xlu0 %1481
      %vm1483 = vcmp.lt.s32.totalorder %v490, 2
      %v1484 = vsel %vm1483, %v1480, %v1482
      %v1485 = vsel %vm1483, %v1482, %v1480
      %v1486 = vsel %vm364, 1, 0
      %v1487 = vlaneseq
      %v1488 = vshrl.u32 %v1487, 7
      %v1489 = vsub.s32 0, %v1488
      %v1490 = vrot.slane %v1486, %v1489
      %v1491 = vlaneseq
      %v1492 = vshrl.u32 %v1491, 7
      %v1493 = vsub.s32 1, %v1492
      %v1494 = vrot.slane %v1486, %v1493
      %vm1495 = vcmp.eq.s32.totalorder %v1490, 1
      %vm1496 = vcmp.eq.s32.totalorder %v1494, 1
      %v1497 = vsel %vm1495, %v1485, -inf
      %v1498 = vsel %vm1496, %v1484, -inf
      %v1499 = vmax.f32 %v1474, %v1497
      %v1500 = vmax.f32 %v1476, %v1498
      %1501 = vrot.lane.b32.xlu0 %v1474, 1
      %v1502 = vpop.permute.xlu0 %1501
      %1503 = vrot.lane.b32.xlu0 %v1476, 1
      %v1504 = vpop.permute.xlu0 %1503
      %v1505 = vsel %vm798, %v1502, %v1504
      %v1506 = vsel %vm798, %v1504, %v1502
      %v1507 = vsel %vm367, 1, 0
      %v1508 = vlaneseq
      %v1509 = vshrl.u32 %v1508, 7
      %v1510 = vsub.s32 0, %v1509
      %v1511 = vrot.slane %v1507, %v1510
      %v1512 = vlaneseq
      %v1513 = vshrl.u32 %v1512, 7
      %v1514 = vsub.s32 1, %v1513
      %v1515 = vrot.slane %v1507, %v1514
      %vm1516 = vcmp.eq.s32.totalorder %v1511, 1
      %vm1517 = vcmp.eq.s32.totalorder %v1515, 1
      %v1518 = vsel %vm1516, %v1506, -inf
      %v1519 = vsel %vm1517, %v1505, -inf
      %v1520 = vmax.f32 %v1499, %v1518
      %v1521 = vmax.f32 %v1500, %v1519
      %1522 = vrot.lane.b32.xlu0 %v1474, 127
      %v1523 = vpop.permute.xlu0 %1522
      %1524 = vrot.lane.b32.xlu0 %v1476, 127
      %v1525 = vpop.permute.xlu0 %1524
      %v1526 = vsel %vm986, %v1523, %v1525
      %v1527 = vsel %vm986, %v1525, %v1523
      %v1528 = vsel %vm373, 1, 0
      %v1529 = vlaneseq
      %v1530 = vshrl.u32 %v1529, 7
      %v1531 = vsub.s32 0, %v1530
      %v1532 = vrot.slane %v1528, %v1531
      %v1533 = vlaneseq
      %v1534 = vshrl.u32 %v1533, 7
      %v1535 = vsub.s32 1, %v1534
      %v1536 = vrot.slane %v1528, %v1535
      %vm1537 = vcmp.eq.s32.totalorder %v1532, 1
      %vm1538 = vcmp.eq.s32.totalorder %v1536, 1
      %v1539 = vsel %vm1537, %v1526, -inf
      %v1540 = vsel %vm1538, %v1527, -inf
      %v1541 = vmax.f32 %v1520, %v1539
      %v1542 = vmax.f32 %v1521, %v1540
      %1543 = vrot.lane.b32.xlu0 %v1474, 126
      %v1544 = vpop.permute.xlu0 %1543
      %1545 = vrot.lane.b32.xlu0 %v1476, 126
      %v1546 = vpop.permute.xlu0 %1545
      %vm1547 = vcmp.lt.s32.totalorder %v490, 126
      %v1548 = vsel %vm1547, %v1544, %v1546
      %v1549 = vsel %vm1547, %v1546, %v1544
      %v1550 = vsel %vm376, 1, 0
      %v1551 = vlaneseq
      %v1552 = vshrl.u32 %v1551, 7
      %v1553 = vsub.s32 0, %v1552
      %v1554 = vrot.slane %v1550, %v1553
      %v1555 = vlaneseq
      %v1556 = vshrl.u32 %v1555, 7
      %v1557 = vsub.s32 1, %v1556
      %v1558 = vrot.slane %v1550, %v1557
      %vm1559 = vcmp.eq.s32.totalorder %v1554, 1
      %vm1560 = vcmp.eq.s32.totalorder %v1558, 1
      %v1561 = vsel %vm1559, %v1548, -inf
      %v1562 = vsel %vm1560, %v1549, -inf
      %v1563 = vmax.f32 %v1541, %v1561
      %v1564 = vmax.f32 %v1542, %v1562
      %1565 = vrot.lane.b32.xlu0 %v1563, 32
      %v1566 = vpop.permute.xlu0 %1565
      %1567 = vrot.lane.b32.xlu0 %v1564, 32
      %v1568 = vpop.permute.xlu0 %1567
      %vm1569 = vcmp.lt.s32.totalorder %v490, 32
      %v1570 = vsel %vm1569, %v1566, %v1568
      %v1571 = vsel %vm1569, %v1568, %v1566
      %v1572 = vsel %vm379, 1, 0
      %v1573 = vlaneseq
      %v1574 = vshrl.u32 %v1573, 7
      %v1575 = vsub.s32 0, %v1574
      %v1576 = vrot.slane %v1572, %v1575
      %v1577 = vlaneseq
      %v1578 = vshrl.u32 %v1577, 7
      %v1579 = vsub.s32 1, %v1578
      %v1580 = vrot.slane %v1572, %v1579
      %vm1581 = vcmp.eq.s32.totalorder %v1576, 1
      %vm1582 = vcmp.eq.s32.totalorder %v1580, 1
      %v1583 = vsel %vm1581, %v1571, -inf
      %v1584 = vsel %vm1582, %v1570, -inf
      %v1585 = vmax.f32 %v1563, %v1583
      %v1586 = vmax.f32 %v1564, %v1584
      %1587 = vrot.lane.b32.xlu0 %v1563, 16
      %v1588 = vpop.permute.xlu0 %1587
      %1589 = vrot.lane.b32.xlu0 %v1564, 16
      %v1590 = vpop.permute.xlu0 %1589
      %v1591 = vsel %vm512, %v1588, %v1590
      %v1592 = vsel %vm512, %v1590, %v1588
      %v1593 = vsel %vm382, 1, 0
      %v1594 = vlaneseq
      %v1595 = vshrl.u32 %v1594, 7
      %v1596 = vsub.s32 0, %v1595
      %v1597 = vrot.slane %v1593, %v1596
      %v1598 = vlaneseq
      %v1599 = vshrl.u32 %v1598, 7
      %v1600 = vsub.s32 1, %v1599
      %v1601 = vrot.slane %v1593, %v1600
      %vm1602 = vcmp.eq.s32.totalorder %v1597, 1
      %vm1603 = vcmp.eq.s32.totalorder %v1601, 1
      %v1604 = vsel %vm1602, %v1592, -inf
      %v1605 = vsel %vm1603, %v1591, -inf
      %v1606 = vmax.f32 %v1585, %v1604
      %v1607 = vmax.f32 %v1586, %v1605
      %1608 = vrot.lane.b32.xlu0 %v1563, 112
      %v1609 = vpop.permute.xlu0 %1608
      %1610 = vrot.lane.b32.xlu0 %v1564, 112
      %v1611 = vpop.permute.xlu0 %1610
      %v1612 = vsel %vm1194, %v1609, %v1611
      %v1613 = vsel %vm1194, %v1611, %v1609
      %v1614 = vsel %vm388, 1, 0
      %v1615 = vlaneseq
      %v1616 = vshrl.u32 %v1615, 7
      %v1617 = vsub.s32 0, %v1616
      %v1618 = vrot.slane %v1614, %v1617
      %v1619 = vlaneseq
      %v1620 = vshrl.u32 %v1619, 7
      %v1621 = vsub.s32 1, %v1620
      %v1622 = vrot.slane %v1614, %v1621
      %vm1623 = vcmp.eq.s32.totalorder %v1618, 1
      %vm1624 = vcmp.eq.s32.totalorder %v1622, 1
      %v1625 = vsel %vm1623, %v1612, -inf
      %v1626 = vsel %vm1624, %v1613, -inf
      %v1627 = vmax.f32 %v1606, %v1625
      %v1628 = vmax.f32 %v1607, %v1626
      %1629 = vrot.lane.b32.xlu0 %v1563, 96
      %v1630 = vpop.permute.xlu0 %1629
      %1631 = vrot.lane.b32.xlu0 %v1564, 96
      %v1632 = vpop.permute.xlu0 %1631
      %vm1633 = vcmp.lt.s32.totalorder %v490, 96
      %v1634 = vsel %vm1633, %v1630, %v1632
      %v1635 = vsel %vm1633, %v1632, %v1630
      %v1636 = vsel %vm391, 1, 0
      %v1637 = vlaneseq
      %v1638 = vshrl.u32 %v1637, 7
      %v1639 = vsub.s32 0, %v1638
      %v1640 = vrot.slane %v1636, %v1639
      %v1641 = vlaneseq
      %v1642 = vshrl.u32 %v1641, 7
      %v1643 = vsub.s32 1, %v1642
      %v1644 = vrot.slane %v1636, %v1643
      %vm1645 = vcmp.eq.s32.totalorder %v1640, 1
      %vm1646 = vcmp.eq.s32.totalorder %v1644, 1
      %v1647 = vsel %vm1645, %v1634, -inf
      %v1648 = vsel %vm1646, %v1635, -inf
      %v1649 = vmax.f32 %v1627, %v1647
      %v1650 = vmax.f32 %v1628, %v1648
      %s1651 = scalar_lea.vmem %s7, 4
      %v1652 = vld [vmem:[%s1651] sm:$0xf]
      %v1654 = vsel %vm405, %v1652, 0
      %v1657 = vsel %vm409, %v1649, 0
      %v1660 = vsel %vm409, %v1650, 0
      %1662 = vmatprep.subr.mxu0 %v1660
      %1663 = vmatpush1.msra.mxu0 %v1657
      %1664 = vmatprep.subr.mxu0 0.0
      %1665 = vmatpush1.msra.mxu0 0.0
      %1666 = vmatprep.subr.mxu0 0.0
      %1667 = vmatpush1.msra.mxu0 0.0
      %1668 = vmatprep.subr.mxu0 0.0
      %1669 = vmatpush1.msra.mxu0 0.0
      %1670 = vmatprep.subr.mxu0 0.0
      %1671 = vmatpush1.msra.mxu0 0.0
      %1672 = vmatprep.subr.mxu0 0.0
      %1673 = vmatpush1.msra.mxu0 0.0
      %1674 = vmatprep.subr.mxu0 0.0
      %1675 = vmatpush1.msra.mxu0 0.0
      %1676 = vmatprep.subr.mxu0 0.0
      %1677 = vmatpush1.msra.mxu0 0.0
      %1678 = vmatprep.subr.mxu0 0.0
      %1679 = vmatpush1.msra.mxu0 0.0
      %1680 = vmatprep.subr.mxu0 0.0
      %1681 = vmatpush1.msra.mxu0 0.0
      %1682 = vmatprep.subr.mxu0 0.0
      %1683 = vmatpush1.msra.mxu0 0.0
      %1684 = vmatprep.subr.mxu0 0.0
      %1685 = vmatpush1.msra.mxu0 0.0
      %1686 = vmatprep.subr.mxu0 0.0
      %1687 = vmatpush1.msra.mxu0 0.0
      %1688 = vmatprep.subr.mxu0 0.0
      %1689 = vmatpush1.msra.mxu0 0.0
      %1690 = vmatprep.subr.mxu0 0.0
      %1691 = vmatpush1.msra.mxu0 0.0
      %1692 = vmatprep.subr.mxu0 0.0
      %1693 = vmatpush1.msra.mxu0 0.0
      %1694 = vmatprep.subr.mxu0 0.0
      %1695 = vmatpush1.msra.mxu0 0.0
      %1696 = vmatprep.subr.mxu0 0.0
      %1697 = vmatpush1.msra.mxu0 0.0
      %1698 = vmatprep.subr.mxu0 0.0
      %1699 = vmatpush1.msra.mxu0 0.0
      %1700 = vmatprep.subr.mxu0 0.0
      %1701 = vmatpush1.msra.mxu0 0.0
      %1702 = vmatprep.subr.mxu0 0.0
      %1703 = vmatpush1.msra.mxu0 0.0
      %1704 = vmatprep.subr.mxu0 0.0
      %1705 = vmatpush1.msra.mxu0 0.0
      %1706 = vmatprep.subr.mxu0 0.0
      %1707 = vmatpush1.msra.mxu0 0.0
      %1708 = vmatprep.subr.mxu0 0.0
      %1709 = vmatpush1.msra.mxu0 0.0
      %1710 = vmatprep.subr.mxu0 0.0
      %1711 = vmatpush1.msra.mxu0 0.0
      %1712 = vmatprep.subr.mxu0 0.0
      %1713 = vmatpush1.msra.mxu0 0.0
      %1714 = vmatprep.subr.mxu0 0.0
      %1715 = vmatpush1.msra.mxu0 0.0
      %1716 = vmatprep.subr.mxu0 0.0
      %1717 = vmatpush1.msra.mxu0 0.0
      %1718 = vmatprep.subr.mxu0 0.0
      %1719 = vmatpush1.msra.mxu0 0.0
      %1720 = vmatprep.subr.mxu0 0.0
      %1721 = vmatpush1.msra.mxu0 0.0
      %1722 = vmatprep.subr.mxu0 0.0
      %1723 = vmatpush1.msra.mxu0 0.0
      %1724 = vmatprep.subr.mxu0 0.0
      %1725 = vmatpush1.msra.mxu0 0.0
      %1726 = vmatprep.mubr.f32.mxu0 0.0
      %1727 = vmatmul.mubr.f32.gmra.mrb[0].mxu0 %v1654
      %v1728 = vpop.f32.mrb[0].mxu0
      %v1729 = vadd.f32 0.0, %v1728
      %v1730 = vpop.f32.mrb[0].mxu0
      %v1731 = vadd.f32 0.0, %v1730
      %1732 = vdwg.mxu0
      %v1734 = vsel %vm405, %v1478, 0
      %v1737 = vsel %vm409, %v1474, 0
      %v1740 = vsel %vm409, %v1476, 0
      %1742 = vmatprep.subr.mxu0 %v1740
      %1743 = vmatpush1.msra.mxu0 %v1737
      %1744 = vmatprep.subr.mxu0 0.0
      %1745 = vmatpush1.msra.mxu0 0.0
      %1746 = vmatprep.subr.mxu0 0.0
      %1747 = vmatpush1.msra.mxu0 0.0
      %1748 = vmatprep.subr.mxu0 0.0
      %1749 = vmatpush1.msra.mxu0 0.0
      %1750 = vmatprep.subr.mxu0 0.0
      %1751 = vmatpush1.msra.mxu0 0.0
      %1752 = vmatprep.subr.mxu0 0.0
      %1753 = vmatpush1.msra.mxu0 0.0
      %1754 = vmatprep.subr.mxu0 0.0
      %1755 = vmatpush1.msra.mxu0 0.0
      %1756 = vmatprep.subr.mxu0 0.0
      %1757 = vmatpush1.msra.mxu0 0.0
      %1758 = vmatprep.subr.mxu0 0.0
      %1759 = vmatpush1.msra.mxu0 0.0
      %1760 = vmatprep.subr.mxu0 0.0
      %1761 = vmatpush1.msra.mxu0 0.0
      %1762 = vmatprep.subr.mxu0 0.0
      %1763 = vmatpush1.msra.mxu0 0.0
      %1764 = vmatprep.subr.mxu0 0.0
      %1765 = vmatpush1.msra.mxu0 0.0
      %1766 = vmatprep.subr.mxu0 0.0
      %1767 = vmatpush1.msra.mxu0 0.0
      %1768 = vmatprep.subr.mxu0 0.0
      %1769 = vmatpush1.msra.mxu0 0.0
      %1770 = vmatprep.subr.mxu0 0.0
      %1771 = vmatpush1.msra.mxu0 0.0
      %1772 = vmatprep.subr.mxu0 0.0
      %1773 = vmatpush1.msra.mxu0 0.0
      %1774 = vmatprep.subr.mxu0 0.0
      %1775 = vmatpush1.msra.mxu0 0.0
      %1776 = vmatprep.subr.mxu0 0.0
      %1777 = vmatpush1.msra.mxu0 0.0
      %1778 = vmatprep.subr.mxu0 0.0
      %1779 = vmatpush1.msra.mxu0 0.0
      %1780 = vmatprep.subr.mxu0 0.0
      %1781 = vmatpush1.msra.mxu0 0.0
      %1782 = vmatprep.subr.mxu0 0.0
      %1783 = vmatpush1.msra.mxu0 0.0
      %1784 = vmatprep.subr.mxu0 0.0
      %1785 = vmatpush1.msra.mxu0 0.0
      %1786 = vmatprep.subr.mxu0 0.0
      %1787 = vmatpush1.msra.mxu0 0.0
      %1788 = vmatprep.subr.mxu0 0.0
      %1789 = vmatpush1.msra.mxu0 0.0
      %1790 = vmatprep.subr.mxu0 0.0
      %1791 = vmatpush1.msra.mxu0 0.0
      %1792 = vmatprep.subr.mxu0 0.0
      %1793 = vmatpush1.msra.mxu0 0.0
      %1794 = vmatprep.subr.mxu0 0.0
      %1795 = vmatpush1.msra.mxu0 0.0
      %1796 = vmatprep.subr.mxu0 0.0
      %1797 = vmatpush1.msra.mxu0 0.0
      %1798 = vmatprep.subr.mxu0 0.0
      %1799 = vmatpush1.msra.mxu0 0.0
      %1800 = vmatprep.subr.mxu0 0.0
      %1801 = vmatpush1.msra.mxu0 0.0
      %1802 = vmatprep.subr.mxu0 0.0
      %1803 = vmatpush1.msra.mxu0 0.0
      %1804 = vmatprep.subr.mxu0 0.0
      %1805 = vmatpush1.msra.mxu0 0.0
      %1806 = vmatprep.mubr.f32.mxu0 0.0
      %1807 = vmatmul.mubr.f32.gmra.mrb[0].mxu0 %v1734
      %v1808 = vpop.f32.mrb[0].mxu0
      %v1809 = vadd.f32 %v1729, %v1808
      %v1810 = vpop.f32.mrb[0].mxu0
      %v1811 = vadd.f32 %v1731, %v1810
      %1812 = vdwg.mxu0
      %1813 = vrot.lane.b32.xlu0 %v1649, 2
      %v1814 = vpop.permute.xlu0 %1813
      %1815 = vrot.lane.b32.xlu0 %v1650, 2
      %v1816 = vpop.permute.xlu0 %1815
      %v1817 = vsel %vm1483, %v1814, %v1816
      %v1818 = vsel %vm1483, %v1816, %v1814
      %v1819 = vsel %vm1495, %v1818, -inf
      %v1820 = vsel %vm1496, %v1817, -inf
      %v1821 = vmax.f32 %v1649, %v1819
      %v1822 = vmax.f32 %v1650, %v1820
      %1823 = vrot.lane.b32.xlu0 %v1649, 1
      %v1824 = vpop.permute.xlu0 %1823
      %1825 = vrot.lane.b32.xlu0 %v1650, 1
      %v1826 = vpop.permute.xlu0 %1825
      %v1827 = vsel %vm798, %v1824, %v1826
      %v1828 = vsel %vm798, %v1826, %v1824
      %v1829 = vsel %vm1516, %v1828, -inf
      %v1830 = vsel %vm1517, %v1827, -inf
      %v1831 = vmax.f32 %v1821, %v1829
      %v1832 = vmax.f32 %v1822, %v1830
      %1833 = vrot.lane.b32.xlu0 %v1649, 127
      %v1834 = vpop.permute.xlu0 %1833
      %1835 = vrot.lane.b32.xlu0 %v1650, 127
      %v1836 = vpop.permute.xlu0 %1835
      %v1837 = vsel %vm986, %v1834, %v1836
      %v1838 = vsel %vm986, %v1836, %v1834
      %v1839 = vsel %vm1537, %v1837, -inf
      %v1840 = vsel %vm1538, %v1838, -inf
      %v1841 = vmax.f32 %v1831, %v1839
      %v1842 = vmax.f32 %v1832, %v1840
      %1843 = vrot.lane.b32.xlu0 %v1649, 126
      %v1844 = vpop.permute.xlu0 %1843
      %1845 = vrot.lane.b32.xlu0 %v1650, 126
      %v1846 = vpop.permute.xlu0 %1845
      %v1847 = vsel %vm1547, %v1844, %v1846
      %v1848 = vsel %vm1547, %v1846, %v1844
      %v1849 = vsel %vm1559, %v1847, -inf
      %v1850 = vsel %vm1560, %v1848, -inf
      %v1851 = vmax.f32 %v1841, %v1849
      %v1852 = vmax.f32 %v1842, %v1850
      %1853 = vrot.lane.b32.xlu0 %v1851, 32
      %v1854 = vpop.permute.xlu0 %1853
      %1855 = vrot.lane.b32.xlu0 %v1852, 32
      %v1856 = vpop.permute.xlu0 %1855
      %v1857 = vsel %vm1569, %v1854, %v1856
      %v1858 = vsel %vm1569, %v1856, %v1854
      %v1859 = vsel %vm1581, %v1858, -inf
      %v1860 = vsel %vm1582, %v1857, -inf
      %v1861 = vmax.f32 %v1851, %v1859
      %v1862 = vmax.f32 %v1852, %v1860
      %1863 = vrot.lane.b32.xlu0 %v1851, 16
      %v1864 = vpop.permute.xlu0 %1863
      %1865 = vrot.lane.b32.xlu0 %v1852, 16
      %v1866 = vpop.permute.xlu0 %1865
      %v1867 = vsel %vm512, %v1864, %v1866
      %v1868 = vsel %vm512, %v1866, %v1864
      %v1869 = vsel %vm1602, %v1868, -inf
      %v1870 = vsel %vm1603, %v1867, -inf
      %v1871 = vmax.f32 %v1861, %v1869
      %v1872 = vmax.f32 %v1862, %v1870
      %1873 = vrot.lane.b32.xlu0 %v1851, 112
      %v1874 = vpop.permute.xlu0 %1873
      %1875 = vrot.lane.b32.xlu0 %v1852, 112
      %v1876 = vpop.permute.xlu0 %1875
      %v1877 = vsel %vm1194, %v1874, %v1876
      %v1878 = vsel %vm1194, %v1876, %v1874
      %v1879 = vsel %vm1623, %v1877, -inf
      %v1880 = vsel %vm1624, %v1878, -inf
      %v1881 = vmax.f32 %v1871, %v1879
      %v1882 = vmax.f32 %v1872, %v1880
      %1883 = vrot.lane.b32.xlu0 %v1851, 96
      %v1884 = vpop.permute.xlu0 %1883
      %1885 = vrot.lane.b32.xlu0 %v1852, 96
      %v1886 = vpop.permute.xlu0 %1885
      %v1887 = vsel %vm1633, %v1884, %v1886
      %v1888 = vsel %vm1633, %v1886, %v1884
      %v1889 = vsel %vm1645, %v1887, -inf
      %v1890 = vsel %vm1646, %v1888, -inf
      %v1891 = vmax.f32 %v1881, %v1889
      %v1892 = vmax.f32 %v1882, %v1890
      %s1893 = scalar_lea.vmem %s7, 8
      %v1894 = vld [vmem:[%s1893] sm:$0xf]
      %v1896 = vsel %vm405, %v1894, 0
      %v1899 = vsel %vm409, %v1891, 0
      %v1902 = vsel %vm409, %v1892, 0
      %1904 = vmatprep.subr.mxu0 %v1902
      %1905 = vmatpush1.msra.mxu0 %v1899
      %1906 = vmatprep.subr.mxu0 0.0
      %1907 = vmatpush1.msra.mxu0 0.0
      %1908 = vmatprep.subr.mxu0 0.0
      %1909 = vmatpush1.msra.mxu0 0.0
      %1910 = vmatprep.subr.mxu0 0.0
      %1911 = vmatpush1.msra.mxu0 0.0
      %1912 = vmatprep.subr.mxu0 0.0
      %1913 = vmatpush1.msra.mxu0 0.0
      %1914 = vmatprep.subr.mxu0 0.0
      %1915 = vmatpush1.msra.mxu0 0.0
      %1916 = vmatprep.subr.mxu0 0.0
      %1917 = vmatpush1.msra.mxu0 0.0
      %1918 = vmatprep.subr.mxu0 0.0
      %1919 = vmatpush1.msra.mxu0 0.0
      %1920 = vmatprep.subr.mxu0 0.0
      %1921 = vmatpush1.msra.mxu0 0.0
      %1922 = vmatprep.subr.mxu0 0.0
      %1923 = vmatpush1.msra.mxu0 0.0
      %1924 = vmatprep.subr.mxu0 0.0
      %1925 = vmatpush1.msra.mxu0 0.0
      %1926 = vmatprep.subr.mxu0 0.0
      %1927 = vmatpush1.msra.mxu0 0.0
      %1928 = vmatprep.subr.mxu0 0.0
      %1929 = vmatpush1.msra.mxu0 0.0
      %1930 = vmatprep.subr.mxu0 0.0
      %1931 = vmatpush1.msra.mxu0 0.0
      %1932 = vmatprep.subr.mxu0 0.0
      %1933 = vmatpush1.msra.mxu0 0.0
      %1934 = vmatprep.subr.mxu0 0.0
      %1935 = vmatpush1.msra.mxu0 0.0
      %1936 = vmatprep.subr.mxu0 0.0
      %1937 = vmatpush1.msra.mxu0 0.0
      %1938 = vmatprep.subr.mxu0 0.0
      %1939 = vmatpush1.msra.mxu0 0.0
      %1940 = vmatprep.subr.mxu0 0.0
      %1941 = vmatpush1.msra.mxu0 0.0
      %1942 = vmatprep.subr.mxu0 0.0
      %1943 = vmatpush1.msra.mxu0 0.0
      %1944 = vmatprep.subr.mxu0 0.0
      %1945 = vmatpush1.msra.mxu0 0.0
      %1946 = vmatprep.subr.mxu0 0.0
      %1947 = vmatpush1.msra.mxu0 0.0
      %1948 = vmatprep.subr.mxu0 0.0
      %1949 = vmatpush1.msra.mxu0 0.0
      %1950 = vmatprep.subr.mxu0 0.0
      %1951 = vmatpush1.msra.mxu0 0.0
      %1952 = vmatprep.subr.mxu0 0.0
      %1953 = vmatpush1.msra.mxu0 0.0
      %1954 = vmatprep.subr.mxu0 0.0
      %1955 = vmatpush1.msra.mxu0 0.0
      %1956 = vmatprep.subr.mxu0 0.0
      %1957 = vmatpush1.msra.mxu0 0.0
      %1958 = vmatprep.subr.mxu0 0.0
      %1959 = vmatpush1.msra.mxu0 0.0
      %1960 = vmatprep.subr.mxu0 0.0
      %1961 = vmatpush1.msra.mxu0 0.0
      %1962 = vmatprep.subr.mxu0 0.0
      %1963 = vmatpush1.msra.mxu0 0.0
      %1964 = vmatprep.subr.mxu0 0.0
      %1965 = vmatpush1.msra.mxu0 0.0
      %1966 = vmatprep.subr.mxu0 0.0
      %1967 = vmatpush1.msra.mxu0 0.0
      %1968 = vmatprep.mubr.f32.mxu0 0.0
      %1969 = vmatmul.mubr.f32.gmra.mrb[0].mxu0 %v1896
      %v1970 = vpop.f32.mrb[0].mxu0
      %v1971 = vadd.f32 0.0, %v1970
      %v1972 = vpop.f32.mrb[0].mxu0
      %v1973 = vadd.f32 0.0, %v1972
      %1974 = vdwg.mxu0
      %v1975 = vadd.f32 %v1809, %v1971
      %v1976 = vadd.f32 %v1811, %v1973
      %1977 = vrot.lane.b32.xlu0 %v1891, 2
      %v1978 = vpop.permute.xlu0 %1977
      %1979 = vrot.lane.b32.xlu0 %v1892, 2
      %v1980 = vpop.permute.xlu0 %1979
      %v1981 = vsel %vm1483, %v1978, %v1980
      %v1982 = vsel %vm1483, %v1980, %v1978
      %v1983 = vsel %vm1495, %v1982, -inf
      %v1984 = vsel %vm1496, %v1981, -inf
      %v1985 = vmax.f32 %v1891, %v1983
      %v1986 = vmax.f32 %v1892, %v1984
      %1987 = vrot.lane.b32.xlu0 %v1891, 1
      %v1988 = vpop.permute.xlu0 %1987
      %1989 = vrot.lane.b32.xlu0 %v1892, 1
      %v1990 = vpop.permute.xlu0 %1989
      %v1991 = vsel %vm798, %v1988, %v1990
      %v1992 = vsel %vm798, %v1990, %v1988
      %v1993 = vsel %vm1516, %v1992, -inf
      %v1994 = vsel %vm1517, %v1991, -inf
      %v1995 = vmax.f32 %v1985, %v1993
      %v1996 = vmax.f32 %v1986, %v1994
      %1997 = vrot.lane.b32.xlu0 %v1891, 127
      %v1998 = vpop.permute.xlu0 %1997
      %1999 = vrot.lane.b32.xlu0 %v1892, 127
      %v2000 = vpop.permute.xlu0 %1999
      %v2001 = vsel %vm986, %v1998, %v2000
      %v2002 = vsel %vm986, %v2000, %v1998
      %v2003 = vsel %vm1537, %v2001, -inf
      %v2004 = vsel %vm1538, %v2002, -inf
      %v2005 = vmax.f32 %v1995, %v2003
      %v2006 = vmax.f32 %v1996, %v2004
      %2007 = vrot.lane.b32.xlu0 %v1891, 126
      %v2008 = vpop.permute.xlu0 %2007
      %2009 = vrot.lane.b32.xlu0 %v1892, 126
      %v2010 = vpop.permute.xlu0 %2009
      %v2011 = vsel %vm1547, %v2008, %v2010
      %v2012 = vsel %vm1547, %v2010, %v2008
      %v2013 = vsel %vm1559, %v2011, -inf
      %v2014 = vsel %vm1560, %v2012, -inf
      %v2015 = vmax.f32 %v2005, %v2013
      %v2016 = vmax.f32 %v2006, %v2014
      %2017 = vrot.lane.b32.xlu0 %v2015, 32
      %v2018 = vpop.permute.xlu0 %2017
      %2019 = vrot.lane.b32.xlu0 %v2016, 32
      %v2020 = vpop.permute.xlu0 %2019
      %v2021 = vsel %vm1569, %v2018, %v2020
      %v2022 = vsel %vm1569, %v2020, %v2018
      %v2023 = vsel %vm1581, %v2022, -inf
      %v2024 = vsel %vm1582, %v2021, -inf
      %v2025 = vmax.f32 %v2015, %v2023
      %v2026 = vmax.f32 %v2016, %v2024
      %2027 = vrot.lane.b32.xlu0 %v2015, 16
      %v2028 = vpop.permute.xlu0 %2027
      %2029 = vrot.lane.b32.xlu0 %v2016, 16
      %v2030 = vpop.permute.xlu0 %2029
      %v2031 = vsel %vm512, %v2028, %v2030
      %v2032 = vsel %vm512, %v2030, %v2028
      %v2033 = vsel %vm1602, %v2032, -inf
      %v2034 = vsel %vm1603, %v2031, -inf
      %v2035 = vmax.f32 %v2025, %v2033
      %v2036 = vmax.f32 %v2026, %v2034
      %2037 = vrot.lane.b32.xlu0 %v2015, 112
      %v2038 = vpop.permute.xlu0 %2037
      %2039 = vrot.lane.b32.xlu0 %v2016, 112
      %v2040 = vpop.permute.xlu0 %2039
      %v2041 = vsel %vm1194, %v2038, %v2040
      %v2042 = vsel %vm1194, %v2040, %v2038
      %v2043 = vsel %vm1623, %v2041, -inf
      %v2044 = vsel %vm1624, %v2042, -inf
      %v2045 = vmax.f32 %v2035, %v2043
      %v2046 = vmax.f32 %v2036, %v2044
      %2047 = vrot.lane.b32.xlu0 %v2015, 96
      %v2048 = vpop.permute.xlu0 %2047
      %2049 = vrot.lane.b32.xlu0 %v2016, 96
      %v2050 = vpop.permute.xlu0 %2049
      %v2051 = vsel %vm1633, %v2048, %v2050
      %v2052 = vsel %vm1633, %v2050, %v2048
      %v2053 = vsel %vm1645, %v2051, -inf
      %v2054 = vsel %vm1646, %v2052, -inf
      %v2055 = vmax.f32 %v2045, %v2053
      %v2056 = vmax.f32 %v2046, %v2054
      %s2057 = scalar_lea.vmem %s7, 12
      %v2058 = vld [vmem:[%s2057] sm:$0xf]
      %v2060 = vsel %vm405, %v2058, 0
      %v2063 = vsel %vm409, %v2055, 0
      %v2066 = vsel %vm409, %v2056, 0
      %2068 = vmatprep.subr.mxu0 %v2066
      %2069 = vmatpush1.msra.mxu0 %v2063
      %2070 = vmatprep.subr.mxu0 0.0
      %2071 = vmatpush1.msra.mxu0 0.0
      %2072 = vmatprep.subr.mxu0 0.0
      %2073 = vmatpush1.msra.mxu0 0.0
      %2074 = vmatprep.subr.mxu0 0.0
      %2075 = vmatpush1.msra.mxu0 0.0
      %2076 = vmatprep.subr.mxu0 0.0
      %2077 = vmatpush1.msra.mxu0 0.0
      %2078 = vmatprep.subr.mxu0 0.0
      %2079 = vmatpush1.msra.mxu0 0.0
      %2080 = vmatprep.subr.mxu0 0.0
      %2081 = vmatpush1.msra.mxu0 0.0
      %2082 = vmatprep.subr.mxu0 0.0
      %2083 = vmatpush1.msra.mxu0 0.0
      %2084 = vmatprep.subr.mxu0 0.0
      %2085 = vmatpush1.msra.mxu0 0.0
      %2086 = vmatprep.subr.mxu0 0.0
      %2087 = vmatpush1.msra.mxu0 0.0
      %2088 = vmatprep.subr.mxu0 0.0
      %2089 = vmatpush1.msra.mxu0 0.0
      %2090 = vmatprep.subr.mxu0 0.0
      %2091 = vmatpush1.msra.mxu0 0.0
      %2092 = vmatprep.subr.mxu0 0.0
      %2093 = vmatpush1.msra.mxu0 0.0
      %2094 = vmatprep.subr.mxu0 0.0
      %2095 = vmatpush1.msra.mxu0 0.0
      %2096 = vmatprep.subr.mxu0 0.0
      %2097 = vmatpush1.msra.mxu0 0.0
      %2098 = vmatprep.subr.mxu0 0.0
      %2099 = vmatpush1.msra.mxu0 0.0
      %2100 = vmatprep.subr.mxu0 0.0
      %2101 = vmatpush1.msra.mxu0 0.0
      %2102 = vmatprep.subr.mxu0 0.0
      %2103 = vmatpush1.msra.mxu0 0.0
      %2104 = vmatprep.subr.mxu0 0.0
      %2105 = vmatpush1.msra.mxu0 0.0
      %2106 = vmatprep.subr.mxu0 0.0
      %2107 = vmatpush1.msra.mxu0 0.0
      %2108 = vmatprep.subr.mxu0 0.0
      %2109 = vmatpush1.msra.mxu0 0.0
      %2110 = vmatprep.subr.mxu0 0.0
      %2111 = vmatpush1.msra.mxu0 0.0
      %2112 = vmatprep.subr.mxu0 0.0
      %2113 = vmatpush1.msra.mxu0 0.0
      %2114 = vmatprep.subr.mxu0 0.0
      %2115 = vmatpush1.msra.mxu0 0.0
      %2116 = vmatprep.subr.mxu0 0.0
      %2117 = vmatpush1.msra.mxu0 0.0
      %2118 = vmatprep.subr.mxu0 0.0
      %2119 = vmatpush1.msra.mxu0 0.0
      %2120 = vmatprep.subr.mxu0 0.0
      %2121 = vmatpush1.msra.mxu0 0.0
      %2122 = vmatprep.subr.mxu0 0.0
      %2123 = vmatpush1.msra.mxu0 0.0
      %2124 = vmatprep.subr.mxu0 0.0
      %2125 = vmatpush1.msra.mxu0 0.0
      %2126 = vmatprep.subr.mxu0 0.0
      %2127 = vmatpush1.msra.mxu0 0.0
      %2128 = vmatprep.subr.mxu0 0.0
      %2129 = vmatpush1.msra.mxu0 0.0
      %2130 = vmatprep.subr.mxu0 0.0
      %2131 = vmatpush1.msra.mxu0 0.0
      %2132 = vmatprep.mubr.f32.mxu0 0.0
      %2133 = vmatmul.mubr.f32.gmra.mrb[0].mxu0 %v2060
      %v2134 = vpop.f32.mrb[0].mxu0
      %v2135 = vadd.f32 0.0, %v2134
      %v2136 = vpop.f32.mrb[0].mxu0
      %v2137 = vadd.f32 0.0, %v2136
      %2138 = vdwg.mxu0
      %v2139 = vadd.f32 %v1975, %v2135
      %v2140 = vadd.f32 %v1976, %v2137
      %2141 = vrot.lane.b32.xlu0 %v2139, 17
      %v2142 = vpop.permute.xlu0 %2141
      %2143 = vrot.lane.b32.xlu0 %v2140, 17
      %v2144 = vpop.permute.xlu0 %2143
      %v2145 = vsel %vm491, %v2142, %v2144
      %v2146 = vsel %vm491, %v2144, %v2142
      %v2147 = vsel %vm503, %v2146, 0.0
      %v2148 = vsel %vm504, %v2145, 0.0
      %v2149 = vld [vmem:[%s8] sm:$0xf]
      %2150 = vrot.lane.b32.xlu0 %v2139, 16
      %v2151 = vpop.permute.xlu0 %2150
      %2152 = vrot.lane.b32.xlu0 %v2140, 16
      %v2153 = vpop.permute.xlu0 %2152
      %v2154 = vsel %vm512, %v2151, %v2153
      %v2155 = vsel %vm512, %v2153, %v2151
      %v2156 = vsel %vm524, %v2155, 0.0
      %v2157 = vsel %vm525, %v2154, 0.0
      %s2158 = scalar_lea.vmem %s8, 4
      %v2159 = vld [vmem:[%s2158] sm:$0xf]
      %v2161 = vsel %vm405, %v2159, 0
      %v2164 = vsel %vm409, %v2156, 0
      %v2167 = vsel %vm409, %v2157, 0
      %2169 = vmatprep.subr.mxu0 %v2167
      %2170 = vmatpush1.msra.mxu0 %v2164
      %2171 = vmatprep.subr.mxu0 0.0
      %2172 = vmatpush1.msra.mxu0 0.0
      %2173 = vmatprep.subr.mxu0 0.0
      %2174 = vmatpush1.msra.mxu0 0.0
      %2175 = vmatprep.subr.mxu0 0.0
      %2176 = vmatpush1.msra.mxu0 0.0
      %2177 = vmatprep.subr.mxu0 0.0
      %2178 = vmatpush1.msra.mxu0 0.0
      %2179 = vmatprep.subr.mxu0 0.0
      %2180 = vmatpush1.msra.mxu0 0.0
      %2181 = vmatprep.subr.mxu0 0.0
      %2182 = vmatpush1.msra.mxu0 0.0
      %2183 = vmatprep.subr.mxu0 0.0
      %2184 = vmatpush1.msra.mxu0 0.0
      %2185 = vmatprep.subr.mxu0 0.0
      %2186 = vmatpush1.msra.mxu0 0.0
      %2187 = vmatprep.subr.mxu0 0.0
      %2188 = vmatpush1.msra.mxu0 0.0
      %2189 = vmatprep.subr.mxu0 0.0
      %2190 = vmatpush1.msra.mxu0 0.0
      %2191 = vmatprep.subr.mxu0 0.0
      %2192 = vmatpush1.msra.mxu0 0.0
      %2193 = vmatprep.subr.mxu0 0.0
      %2194 = vmatpush1.msra.mxu0 0.0
      %2195 = vmatprep.subr.mxu0 0.0
      %2196 = vmatpush1.msra.mxu0 0.0
      %2197 = vmatprep.subr.mxu0 0.0
      %2198 = vmatpush1.msra.mxu0 0.0
      %2199 = vmatprep.subr.mxu0 0.0
      %2200 = vmatpush1.msra.mxu0 0.0
      %2201 = vmatprep.subr.mxu0 0.0
      %2202 = vmatpush1.msra.mxu0 0.0
      %2203 = vmatprep.subr.mxu0 0.0
      %2204 = vmatpush1.msra.mxu0 0.0
      %2205 = vmatprep.subr.mxu0 0.0
      %2206 = vmatpush1.msra.mxu0 0.0
      %2207 = vmatprep.subr.mxu0 0.0
      %2208 = vmatpush1.msra.mxu0 0.0
      %2209 = vmatprep.subr.mxu0 0.0
      %2210 = vmatpush1.msra.mxu0 0.0
      %2211 = vmatprep.subr.mxu0 0.0
      %2212 = vmatpush1.msra.mxu0 0.0
      %2213 = vmatprep.subr.mxu0 0.0
      %2214 = vmatpush1.msra.mxu0 0.0
      %2215 = vmatprep.subr.mxu0 0.0
      %2216 = vmatpush1.msra.mxu0 0.0
      %2217 = vmatprep.subr.mxu0 0.0
      %2218 = vmatpush1.msra.mxu0 0.0
      %2219 = vmatprep.subr.mxu0 0.0
      %2220 = vmatpush1.msra.mxu0 0.0
      %2221 = vmatprep.subr.mxu0 0.0
      %2222 = vmatpush1.msra.mxu0 0.0
      %2223 = vmatprep.subr.mxu0 0.0
      %2224 = vmatpush1.msra.mxu0 0.0
      %2225 = vmatprep.subr.mxu0 0.0
      %2226 = vmatpush1.msra.mxu0 0.0
      %2227 = vmatprep.subr.mxu0 0.0
      %2228 = vmatpush1.msra.mxu0 0.0
      %2229 = vmatprep.subr.mxu0 0.0
      %2230 = vmatpush1.msra.mxu0 0.0
      %2231 = vmatprep.subr.mxu0 0.0
      %2232 = vmatpush1.msra.mxu0 0.0
      %2233 = vmatprep.mubr.f32.mxu0 0.0
      %2234 = vmatmul.mubr.f32.gmra.mrb[0].mxu0 %v2161
      %v2235 = vpop.f32.mrb[0].mxu0
      %v2236 = vadd.f32 0.0, %v2235
      %v2237 = vpop.f32.mrb[0].mxu0
      %v2238 = vadd.f32 0.0, %v2237
      %2239 = vdwg.mxu0
      %v2241 = vsel %vm405, %v2149, 0
      %v2244 = vsel %vm409, %v2147, 0
      %v2247 = vsel %vm409, %v2148, 0
      %2249 = vmatprep.subr.mxu0 %v2247
      %2250 = vmatpush1.msra.mxu0 %v2244
      %2251 = vmatprep.subr.mxu0 0.0
      %2252 = vmatpush1.msra.mxu0 0.0
      %2253 = vmatprep.subr.mxu0 0.0
      %2254 = vmatpush1.msra.mxu0 0.0
      %2255 = vmatprep.subr.mxu0 0.0
      %2256 = vmatpush1.msra.mxu0 0.0
      %2257 = vmatprep.subr.mxu0 0.0
      %2258 = vmatpush1.msra.mxu0 0.0
      %2259 = vmatprep.subr.mxu0 0.0
      %2260 = vmatpush1.msra.mxu0 0.0
      %2261 = vmatprep.subr.mxu0 0.0
      %2262 = vmatpush1.msra.mxu0 0.0
      %2263 = vmatprep.subr.mxu0 0.0
      %2264 = vmatpush1.msra.mxu0 0.0
      %2265 = vmatprep.subr.mxu0 0.0
      %2266 = vmatpush1.msra.mxu0 0.0
      %2267 = vmatprep.subr.mxu0 0.0
      %2268 = vmatpush1.msra.mxu0 0.0
      %2269 = vmatprep.subr.mxu0 0.0
      %2270 = vmatpush1.msra.mxu0 0.0
      %2271 = vmatprep.subr.mxu0 0.0
      %2272 = vmatpush1.msra.mxu0 0.0
      %2273 = vmatprep.subr.mxu0 0.0
      %2274 = vmatpush1.msra.mxu0 0.0
      %2275 = vmatprep.subr.mxu0 0.0
      %2276 = vmatpush1.msra.mxu0 0.0
      %2277 = vmatprep.subr.mxu0 0.0
      %2278 = vmatpush1.msra.mxu0 0.0
      %2279 = vmatprep.subr.mxu0 0.0
      %2280 = vmatpush1.msra.mxu0 0.0
      %2281 = vmatprep.subr.mxu0 0.0
      %2282 = vmatpush1.msra.mxu0 0.0
      %2283 = vmatprep.subr.mxu0 0.0
      %2284 = vmatpush1.msra.mxu0 0.0
      %2285 = vmatprep.subr.mxu0 0.0
      %2286 = vmatpush1.msra.mxu0 0.0
      %2287 = vmatprep.subr.mxu0 0.0
      %2288 = vmatpush1.msra.mxu0 0.0
      %2289 = vmatprep.subr.mxu0 0.0
      %2290 = vmatpush1.msra.mxu0 0.0
      %2291 = vmatprep.subr.mxu0 0.0
      %2292 = vmatpush1.msra.mxu0 0.0
      %2293 = vmatprep.subr.mxu0 0.0
      %2294 = vmatpush1.msra.mxu0 0.0
      %2295 = vmatprep.subr.mxu0 0.0
      %2296 = vmatpush1.msra.mxu0 0.0
      %2297 = vmatprep.subr.mxu0 0.0
      %2298 = vmatpush1.msra.mxu0 0.0
      %2299 = vmatprep.subr.mxu0 0.0
      %2300 = vmatpush1.msra.mxu0 0.0
      %2301 = vmatprep.subr.mxu0 0.0
      %2302 = vmatpush1.msra.mxu0 0.0
      %2303 = vmatprep.subr.mxu0 0.0
      %2304 = vmatpush1.msra.mxu0 0.0
      %2305 = vmatprep.subr.mxu0 0.0
      %2306 = vmatpush1.msra.mxu0 0.0
      %2307 = vmatprep.subr.mxu0 0.0
      %2308 = vmatpush1.msra.mxu0 0.0
      %2309 = vmatprep.subr.mxu0 0.0
      %2310 = vmatpush1.msra.mxu0 0.0
      %2311 = vmatprep.subr.mxu0 0.0
      %2312 = vmatpush1.msra.mxu0 0.0
      %2313 = vmatprep.mubr.f32.mxu0 0.0
      %2314 = vmatmul.mubr.f32.gmra.mrb[0].mxu0 %v2241
      %v2315 = vpop.f32.mrb[0].mxu0
      %v2316 = vadd.f32 %v2236, %v2315
      %v2317 = vpop.f32.mrb[0].mxu0
      %v2318 = vadd.f32 %v2238, %v2317
      %2319 = vdwg.mxu0
      %2320 = vrot.lane.b32.xlu0 %v2139, 15
      %v2321 = vpop.permute.xlu0 %2320
      %2322 = vrot.lane.b32.xlu0 %v2140, 15
      %v2323 = vpop.permute.xlu0 %2322
      %v2324 = vsel %vm694, %v2321, %v2323
      %v2325 = vsel %vm694, %v2323, %v2321
      %v2326 = vsel %vm706, %v2325, 0.0
      %v2327 = vsel %vm707, %v2324, 0.0
      %s2328 = scalar_lea.vmem %s8, 8
      %v2329 = vld [vmem:[%s2328] sm:$0xf]
      %v2331 = vsel %vm405, %v2329, 0
      %v2334 = vsel %vm409, %v2326, 0
      %v2337 = vsel %vm409, %v2327, 0
      %2339 = vmatprep.subr.mxu0 %v2337
      %2340 = vmatpush1.msra.mxu0 %v2334
      %2341 = vmatprep.subr.mxu0 0.0
      %2342 = vmatpush1.msra.mxu0 0.0
      %2343 = vmatprep.subr.mxu0 0.0
      %2344 = vmatpush1.msra.mxu0 0.0
      %2345 = vmatprep.subr.mxu0 0.0
      %2346 = vmatpush1.msra.mxu0 0.0
      %2347 = vmatprep.subr.mxu0 0.0
      %2348 = vmatpush1.msra.mxu0 0.0
      %2349 = vmatprep.subr.mxu0 0.0
      %2350 = vmatpush1.msra.mxu0 0.0
      %2351 = vmatprep.subr.mxu0 0.0
      %2352 = vmatpush1.msra.mxu0 0.0
      %2353 = vmatprep.subr.mxu0 0.0
      %2354 = vmatpush1.msra.mxu0 0.0
      %2355 = vmatprep.subr.mxu0 0.0
      %2356 = vmatpush1.msra.mxu0 0.0
      %2357 = vmatprep.subr.mxu0 0.0
      %2358 = vmatpush1.msra.mxu0 0.0
      %2359 = vmatprep.subr.mxu0 0.0
      %2360 = vmatpush1.msra.mxu0 0.0
      %2361 = vmatprep.subr.mxu0 0.0
      %2362 = vmatpush1.msra.mxu0 0.0
      %2363 = vmatprep.subr.mxu0 0.0
      %2364 = vmatpush1.msra.mxu0 0.0
      %2365 = vmatprep.subr.mxu0 0.0
      %2366 = vmatpush1.msra.mxu0 0.0
      %2367 = vmatprep.subr.mxu0 0.0
      %2368 = vmatpush1.msra.mxu0 0.0
      %2369 = vmatprep.subr.mxu0 0.0
      %2370 = vmatpush1.msra.mxu0 0.0
      %2371 = vmatprep.subr.mxu0 0.0
      %2372 = vmatpush1.msra.mxu0 0.0
      %2373 = vmatprep.subr.mxu0 0.0
      %2374 = vmatpush1.msra.mxu0 0.0
      %2375 = vmatprep.subr.mxu0 0.0
      %2376 = vmatpush1.msra.mxu0 0.0
      %2377 = vmatprep.subr.mxu0 0.0
      %2378 = vmatpush1.msra.mxu0 0.0
      %2379 = vmatprep.subr.mxu0 0.0
      %2380 = vmatpush1.msra.mxu0 0.0
      %2381 = vmatprep.subr.mxu0 0.0
      %2382 = vmatpush1.msra.mxu0 0.0
      %2383 = vmatprep.subr.mxu0 0.0
      %2384 = vmatpush1.msra.mxu0 0.0
      %2385 = vmatprep.subr.mxu0 0.0
      %2386 = vmatpush1.msra.mxu0 0.0
      %2387 = vmatprep.subr.mxu0 0.0
      %2388 = vmatpush1.msra.mxu0 0.0
      %2389 = vmatprep.subr.mxu0 0.0
      %2390 = vmatpush1.msra.mxu0 0.0
      %2391 = vmatprep.subr.mxu0 0.0
      %2392 = vmatpush1.msra.mxu0 0.0
      %2393 = vmatprep.subr.mxu0 0.0
      %2394 = vmatpush1.msra.mxu0 0.0
      %2395 = vmatprep.subr.mxu0 0.0
      %2396 = vmatpush1.msra.mxu0 0.0
      %2397 = vmatprep.subr.mxu0 0.0
      %2398 = vmatpush1.msra.mxu0 0.0
      %2399 = vmatprep.subr.mxu0 0.0
      %2400 = vmatpush1.msra.mxu0 0.0
      %2401 = vmatprep.subr.mxu0 0.0
      %2402 = vmatpush1.msra.mxu0 0.0
      %2403 = vmatprep.mubr.f32.mxu0 0.0
      %2404 = vmatmul.mubr.f32.gmra.mrb[0].mxu0 %v2331
      %v2405 = vpop.f32.mrb[0].mxu0
      %v2406 = vadd.f32 0.0, %v2405
      %v2407 = vpop.f32.mrb[0].mxu0
      %v2408 = vadd.f32 0.0, %v2407
      %2409 = vdwg.mxu0
      %v2410 = vadd.f32 %v2316, %v2406
      %v2411 = vadd.f32 %v2318, %v2408
      %2412 = vrot.lane.b32.xlu0 %v2139, 1
      %v2413 = vpop.permute.xlu0 %2412
      %2414 = vrot.lane.b32.xlu0 %v2140, 1
      %v2415 = vpop.permute.xlu0 %2414
      %v2416 = vsel %vm798, %v2413, %v2415
      %v2417 = vsel %vm798, %v2415, %v2413
      %v2418 = vsel %vm810, %v2417, 0.0
      %v2419 = vsel %vm811, %v2416, 0.0
      %s2420 = scalar_lea.vmem %s8, 12
      %v2421 = vld [vmem:[%s2420] sm:$0xf]
      %v2423 = vsel %vm405, %v2421, 0
      %v2426 = vsel %vm409, %v2418, 0
      %v2429 = vsel %vm409, %v2419, 0
      %2431 = vmatprep.subr.mxu0 %v2429
      %2432 = vmatpush1.msra.mxu0 %v2426
      %2433 = vmatprep.subr.mxu0 0.0
      %2434 = vmatpush1.msra.mxu0 0.0
      %2435 = vmatprep.subr.mxu0 0.0
      %2436 = vmatpush1.msra.mxu0 0.0
      %2437 = vmatprep.subr.mxu0 0.0
      %2438 = vmatpush1.msra.mxu0 0.0
      %2439 = vmatprep.subr.mxu0 0.0
      %2440 = vmatpush1.msra.mxu0 0.0
      %2441 = vmatprep.subr.mxu0 0.0
      %2442 = vmatpush1.msra.mxu0 0.0
      %2443 = vmatprep.subr.mxu0 0.0
      %2444 = vmatpush1.msra.mxu0 0.0
      %2445 = vmatprep.subr.mxu0 0.0
      %2446 = vmatpush1.msra.mxu0 0.0
      %2447 = vmatprep.subr.mxu0 0.0
      %2448 = vmatpush1.msra.mxu0 0.0
      %2449 = vmatprep.subr.mxu0 0.0
      %2450 = vmatpush1.msra.mxu0 0.0
      %2451 = vmatprep.subr.mxu0 0.0
      %2452 = vmatpush1.msra.mxu0 0.0
      %2453 = vmatprep.subr.mxu0 0.0
      %2454 = vmatpush1.msra.mxu0 0.0
      %2455 = vmatprep.subr.mxu0 0.0
      %2456 = vmatpush1.msra.mxu0 0.0
      %2457 = vmatprep.subr.mxu0 0.0
      %2458 = vmatpush1.msra.mxu0 0.0
      %2459 = vmatprep.subr.mxu0 0.0
      %2460 = vmatpush1.msra.mxu0 0.0
      %2461 = vmatprep.subr.mxu0 0.0
      %2462 = vmatpush1.msra.mxu0 0.0
      %2463 = vmatprep.subr.mxu0 0.0
      %2464 = vmatpush1.msra.mxu0 0.0
      %2465 = vmatprep.subr.mxu0 0.0
      %2466 = vmatpush1.msra.mxu0 0.0
      %2467 = vmatprep.subr.mxu0 0.0
      %2468 = vmatpush1.msra.mxu0 0.0
      %2469 = vmatprep.subr.mxu0 0.0
      %2470 = vmatpush1.msra.mxu0 0.0
      %2471 = vmatprep.subr.mxu0 0.0
      %2472 = vmatpush1.msra.mxu0 0.0
      %2473 = vmatprep.subr.mxu0 0.0
      %2474 = vmatpush1.msra.mxu0 0.0
      %2475 = vmatprep.subr.mxu0 0.0
      %2476 = vmatpush1.msra.mxu0 0.0
      %2477 = vmatprep.subr.mxu0 0.0
      %2478 = vmatpush1.msra.mxu0 0.0
      %2479 = vmatprep.subr.mxu0 0.0
      %2480 = vmatpush1.msra.mxu0 0.0
      %2481 = vmatprep.subr.mxu0 0.0
      %2482 = vmatpush1.msra.mxu0 0.0
      %2483 = vmatprep.subr.mxu0 0.0
      %2484 = vmatpush1.msra.mxu0 0.0
      %2485 = vmatprep.subr.mxu0 0.0
      %2486 = vmatpush1.msra.mxu0 0.0
      %2487 = vmatprep.subr.mxu0 0.0
      %2488 = vmatpush1.msra.mxu0 0.0
      %2489 = vmatprep.subr.mxu0 0.0
      %2490 = vmatpush1.msra.mxu0 0.0
      %2491 = vmatprep.subr.mxu0 0.0
      %2492 = vmatpush1.msra.mxu0 0.0
      %2493 = vmatprep.subr.mxu0 0.0
      %2494 = vmatpush1.msra.mxu0 0.0
      %2495 = vmatprep.mubr.f32.mxu0 0.0
      %2496 = vmatmul.mubr.f32.gmra.mrb[0].mxu0 %v2423
      %v2497 = vpop.f32.mrb[0].mxu0
      %v2498 = vadd.f32 0.0, %v2497
      %v2499 = vpop.f32.mrb[0].mxu0
      %v2500 = vadd.f32 0.0, %v2499
      %2501 = vdwg.mxu0
      %v2502 = vadd.f32 %v2410, %v2498
      %v2503 = vadd.f32 %v2411, %v2500
      %s2504 = scalar_lea.vmem %s8, 16
      %v2505 = vld [vmem:[%s2504] sm:$0xf]
      %v2507 = vsel %vm405, %v2505, 0
      %v2510 = vsel %vm409, %v2139, 0
      %v2513 = vsel %vm409, %v2140, 0
      %2515 = vmatprep.subr.mxu0 %v2513
      %2516 = vmatpush1.msra.mxu0 %v2510
      %2517 = vmatprep.subr.mxu0 0.0
      %2518 = vmatpush1.msra.mxu0 0.0
      %2519 = vmatprep.subr.mxu0 0.0
      %2520 = vmatpush1.msra.mxu0 0.0
      %2521 = vmatprep.subr.mxu0 0.0
      %2522 = vmatpush1.msra.mxu0 0.0
      %2523 = vmatprep.subr.mxu0 0.0
      %2524 = vmatpush1.msra.mxu0 0.0
      %2525 = vmatprep.subr.mxu0 0.0
      %2526 = vmatpush1.msra.mxu0 0.0
      %2527 = vmatprep.subr.mxu0 0.0
      %2528 = vmatpush1.msra.mxu0 0.0
      %2529 = vmatprep.subr.mxu0 0.0
      %2530 = vmatpush1.msra.mxu0 0.0
      %2531 = vmatprep.subr.mxu0 0.0
      %2532 = vmatpush1.msra.mxu0 0.0
      %2533 = vmatprep.subr.mxu0 0.0
      %2534 = vmatpush1.msra.mxu0 0.0
      %2535 = vmatprep.subr.mxu0 0.0
      %2536 = vmatpush1.msra.mxu0 0.0
      %2537 = vmatprep.subr.mxu0 0.0
      %2538 = vmatpush1.msra.mxu0 0.0
      %2539 = vmatprep.subr.mxu0 0.0
      %2540 = vmatpush1.msra.mxu0 0.0
      %2541 = vmatprep.subr.mxu0 0.0
      %2542 = vmatpush1.msra.mxu0 0.0
      %2543 = vmatprep.subr.mxu0 0.0
      %2544 = vmatpush1.msra.mxu0 0.0
      %2545 = vmatprep.subr.mxu0 0.0
      %2546 = vmatpush1.msra.mxu0 0.0
      %2547 = vmatprep.subr.mxu0 0.0
      %2548 = vmatpush1.msra.mxu0 0.0
      %2549 = vmatprep.subr.mxu0 0.0
      %2550 = vmatpush1.msra.mxu0 0.0
      %2551 = vmatprep.subr.mxu0 0.0
      %2552 = vmatpush1.msra.mxu0 0.0
      %2553 = vmatprep.subr.mxu0 0.0
      %2554 = vmatpush1.msra.mxu0 0.0
      %2555 = vmatprep.subr.mxu0 0.0
      %2556 = vmatpush1.msra.mxu0 0.0
      %2557 = vmatprep.subr.mxu0 0.0
      %2558 = vmatpush1.msra.mxu0 0.0
      %2559 = vmatprep.subr.mxu0 0.0
      %2560 = vmatpush1.msra.mxu0 0.0
      %2561 = vmatprep.subr.mxu0 0.0
      %2562 = vmatpush1.msra.mxu0 0.0
      %2563 = vmatprep.subr.mxu0 0.0
      %2564 = vmatpush1.msra.mxu0 0.0
      %2565 = vmatprep.subr.mxu0 0.0
      %2566 = vmatpush1.msra.mxu0 0.0
      %2567 = vmatprep.subr.mxu0 0.0
      %2568 = vmatpush1.msra.mxu0 0.0
      %2569 = vmatprep.subr.mxu0 0.0
      %2570 = vmatpush1.msra.mxu0 0.0
      %2571 = vmatprep.subr.mxu0 0.0
      %2572 = vmatpush1.msra.mxu0 0.0
      %2573 = vmatprep.subr.mxu0 0.0
      %2574 = vmatpush1.msra.mxu0 0.0
      %2575 = vmatprep.subr.mxu0 0.0
      %2576 = vmatpush1.msra.mxu0 0.0
      %2577 = vmatprep.subr.mxu0 0.0
      %2578 = vmatpush1.msra.mxu0 0.0
      %2579 = vmatprep.mubr.f32.mxu0 0.0
      %2580 = vmatmul.mubr.f32.gmra.mrb[0].mxu0 %v2507
      %v2581 = vpop.f32.mrb[0].mxu0
      %v2582 = vadd.f32 0.0, %v2581
      %v2583 = vpop.f32.mrb[0].mxu0
      %v2584 = vadd.f32 0.0, %v2583
      %2585 = vdwg.mxu0
      %v2586 = vadd.f32 %v2502, %v2582
      %v2587 = vadd.f32 %v2503, %v2584
      %2588 = vrot.lane.b32.xlu0 %v2139, 127
      %v2589 = vpop.permute.xlu0 %2588
      %2590 = vrot.lane.b32.xlu0 %v2140, 127
      %v2591 = vpop.permute.xlu0 %2590
      %v2592 = vsel %vm986, %v2589, %v2591
      %v2593 = vsel %vm986, %v2591, %v2589
      %v2594 = vsel %vm998, %v2592, 0.0
      %v2595 = vsel %vm999, %v2593, 0.0
      %s2596 = scalar_lea.vmem %s8, 20
      %v2597 = vld [vmem:[%s2596] sm:$0xf]
      %v2599 = vsel %vm405, %v2597, 0
      %v2602 = vsel %vm409, %v2594, 0
      %v2605 = vsel %vm409, %v2595, 0
      %2607 = vmatprep.subr.mxu0 %v2605
      %2608 = vmatpush1.msra.mxu0 %v2602
      %2609 = vmatprep.subr.mxu0 0.0
      %2610 = vmatpush1.msra.mxu0 0.0
      %2611 = vmatprep.subr.mxu0 0.0
      %2612 = vmatpush1.msra.mxu0 0.0
      %2613 = vmatprep.subr.mxu0 0.0
      %2614 = vmatpush1.msra.mxu0 0.0
      %2615 = vmatprep.subr.mxu0 0.0
      %2616 = vmatpush1.msra.mxu0 0.0
      %2617 = vmatprep.subr.mxu0 0.0
      %2618 = vmatpush1.msra.mxu0 0.0
      %2619 = vmatprep.subr.mxu0 0.0
      %2620 = vmatpush1.msra.mxu0 0.0
      %2621 = vmatprep.subr.mxu0 0.0
      %2622 = vmatpush1.msra.mxu0 0.0
      %2623 = vmatprep.subr.mxu0 0.0
      %2624 = vmatpush1.msra.mxu0 0.0
      %2625 = vmatprep.subr.mxu0 0.0
      %2626 = vmatpush1.msra.mxu0 0.0
      %2627 = vmatprep.subr.mxu0 0.0
      %2628 = vmatpush1.msra.mxu0 0.0
      %2629 = vmatprep.subr.mxu0 0.0
      %2630 = vmatpush1.msra.mxu0 0.0
      %2631 = vmatprep.subr.mxu0 0.0
      %2632 = vmatpush1.msra.mxu0 0.0
      %2633 = vmatprep.subr.mxu0 0.0
      %2634 = vmatpush1.msra.mxu0 0.0
      %2635 = vmatprep.subr.mxu0 0.0
      %2636 = vmatpush1.msra.mxu0 0.0
      %2637 = vmatprep.subr.mxu0 0.0
      %2638 = vmatpush1.msra.mxu0 0.0
      %2639 = vmatprep.subr.mxu0 0.0
      %2640 = vmatpush1.msra.mxu0 0.0
      %2641 = vmatprep.subr.mxu0 0.0
      %2642 = vmatpush1.msra.mxu0 0.0
      %2643 = vmatprep.subr.mxu0 0.0
      %2644 = vmatpush1.msra.mxu0 0.0
      %2645 = vmatprep.subr.mxu0 0.0
      %2646 = vmatpush1.msra.mxu0 0.0
      %2647 = vmatprep.subr.mxu0 0.0
      %2648 = vmatpush1.msra.mxu0 0.0
      %2649 = vmatprep.subr.mxu0 0.0
      %2650 = vmatpush1.msra.mxu0 0.0
      %2651 = vmatprep.subr.mxu0 0.0
      %2652 = vmatpush1.msra.mxu0 0.0
      %2653 = vmatprep.subr.mxu0 0.0
      %2654 = vmatpush1.msra.mxu0 0.0
      %2655 = vmatprep.subr.mxu0 0.0
      %2656 = vmatpush1.msra.mxu0 0.0
      %2657 = vmatprep.subr.mxu0 0.0
      %2658 = vmatpush1.msra.mxu0 0.0
      %2659 = vmatprep.subr.mxu0 0.0
      %2660 = vmatpush1.msra.mxu0 0.0
      %2661 = vmatprep.subr.mxu0 0.0
      %2662 = vmatpush1.msra.mxu0 0.0
      %2663 = vmatprep.subr.mxu0 0.0
      %2664 = vmatpush1.msra.mxu0 0.0
      %2665 = vmatprep.subr.mxu0 0.0
      %2666 = vmatpush1.msra.mxu0 0.0
      %2667 = vmatprep.subr.mxu0 0.0
      %2668 = vmatpush1.msra.mxu0 0.0
      %2669 = vmatprep.subr.mxu0 0.0
      %2670 = vmatpush1.msra.mxu0 0.0
      %2671 = vmatprep.mubr.f32.mxu0 0.0
      %2672 = vmatmul.mubr.f32.gmra.mrb[0].mxu0 %v2599
      %v2673 = vpop.f32.mrb[0].mxu0
      %v2674 = vadd.f32 0.0, %v2673
      %v2675 = vpop.f32.mrb[0].mxu0
      %v2676 = vadd.f32 0.0, %v2675
      %2677 = vdwg.mxu0
      %v2678 = vadd.f32 %v2586, %v2674
      %v2679 = vadd.f32 %v2587, %v2676
      %2680 = vrot.lane.b32.xlu0 %v2139, 113
      %v2681 = vpop.permute.xlu0 %2680
      %2682 = vrot.lane.b32.xlu0 %v2140, 113
      %v2683 = vpop.permute.xlu0 %2682
      %v2684 = vsel %vm1090, %v2681, %v2683
      %v2685 = vsel %vm1090, %v2683, %v2681
      %v2686 = vsel %vm1102, %v2684, 0.0
      %v2687 = vsel %vm1103, %v2685, 0.0
      %s2688 = scalar_lea.vmem %s8, 24
      %v2689 = vld [vmem:[%s2688] sm:$0xf]
      %v2691 = vsel %vm405, %v2689, 0
      %v2694 = vsel %vm409, %v2686, 0
      %v2697 = vsel %vm409, %v2687, 0
      %2699 = vmatprep.subr.mxu0 %v2697
      %2700 = vmatpush1.msra.mxu0 %v2694
      %2701 = vmatprep.subr.mxu0 0.0
      %2702 = vmatpush1.msra.mxu0 0.0
      %2703 = vmatprep.subr.mxu0 0.0
      %2704 = vmatpush1.msra.mxu0 0.0
      %2705 = vmatprep.subr.mxu0 0.0
      %2706 = vmatpush1.msra.mxu0 0.0
      %2707 = vmatprep.subr.mxu0 0.0
      %2708 = vmatpush1.msra.mxu0 0.0
      %2709 = vmatprep.subr.mxu0 0.0
      %2710 = vmatpush1.msra.mxu0 0.0
      %2711 = vmatprep.subr.mxu0 0.0
      %2712 = vmatpush1.msra.mxu0 0.0
      %2713 = vmatprep.subr.mxu0 0.0
      %2714 = vmatpush1.msra.mxu0 0.0
      %2715 = vmatprep.subr.mxu0 0.0
      %2716 = vmatpush1.msra.mxu0 0.0
      %2717 = vmatprep.subr.mxu0 0.0
      %2718 = vmatpush1.msra.mxu0 0.0
      %2719 = vmatprep.subr.mxu0 0.0
      %2720 = vmatpush1.msra.mxu0 0.0
      %2721 = vmatprep.subr.mxu0 0.0
      %2722 = vmatpush1.msra.mxu0 0.0
      %2723 = vmatprep.subr.mxu0 0.0
      %2724 = vmatpush1.msra.mxu0 0.0
      %2725 = vmatprep.subr.mxu0 0.0
      %2726 = vmatpush1.msra.mxu0 0.0
      %2727 = vmatprep.subr.mxu0 0.0
      %2728 = vmatpush1.msra.mxu0 0.0
      %2729 = vmatprep.subr.mxu0 0.0
      %2730 = vmatpush1.msra.mxu0 0.0
      %2731 = vmatprep.subr.mxu0 0.0
      %2732 = vmatpush1.msra.mxu0 0.0
      %2733 = vmatprep.subr.mxu0 0.0
      %2734 = vmatpush1.msra.mxu0 0.0
      %2735 = vmatprep.subr.mxu0 0.0
      %2736 = vmatpush1.msra.mxu0 0.0
      %2737 = vmatprep.subr.mxu0 0.0
      %2738 = vmatpush1.msra.mxu0 0.0
      %2739 = vmatprep.subr.mxu0 0.0
      %2740 = vmatpush1.msra.mxu0 0.0
      %2741 = vmatprep.subr.mxu0 0.0
      %2742 = vmatpush1.msra.mxu0 0.0
      %2743 = vmatprep.subr.mxu0 0.0
      %2744 = vmatpush1.msra.mxu0 0.0
      %2745 = vmatprep.subr.mxu0 0.0
      %2746 = vmatpush1.msra.mxu0 0.0
      %2747 = vmatprep.subr.mxu0 0.0
      %2748 = vmatpush1.msra.mxu0 0.0
      %2749 = vmatprep.subr.mxu0 0.0
      %2750 = vmatpush1.msra.mxu0 0.0
      %2751 = vmatprep.subr.mxu0 0.0
      %2752 = vmatpush1.msra.mxu0 0.0
      %2753 = vmatprep.subr.mxu0 0.0
      %2754 = vmatpush1.msra.mxu0 0.0
      %2755 = vmatprep.subr.mxu0 0.0
      %2756 = vmatpush1.msra.mxu0 0.0
      %2757 = vmatprep.subr.mxu0 0.0
      %2758 = vmatpush1.msra.mxu0 0.0
      %2759 = vmatprep.subr.mxu0 0.0
      %2760 = vmatpush1.msra.mxu0 0.0
      %2761 = vmatprep.subr.mxu0 0.0
      %2762 = vmatpush1.msra.mxu0 0.0
      %2763 = vmatprep.mubr.f32.mxu0 0.0
      %2764 = vmatmul.mubr.f32.gmra.mrb[0].mxu0 %v2691
      %v2765 = vpop.f32.mrb[0].mxu0
      %v2766 = vadd.f32 0.0, %v2765
      %v2767 = vpop.f32.mrb[0].mxu0
      %v2768 = vadd.f32 0.0, %v2767
      %2769 = vdwg.mxu0
      %v2770 = vadd.f32 %v2678, %v2766
      %v2771 = vadd.f32 %v2679, %v2768
      %2772 = vrot.lane.b32.xlu0 %v2139, 112
      %v2773 = vpop.permute.xlu0 %2772
      %2774 = vrot.lane.b32.xlu0 %v2140, 112
      %v2775 = vpop.permute.xlu0 %2774
      %v2776 = vsel %vm1194, %v2773, %v2775
      %v2777 = vsel %vm1194, %v2775, %v2773
      %v2778 = vsel %vm1206, %v2776, 0.0
      %v2779 = vsel %vm1207, %v2777, 0.0
      %s2780 = scalar_lea.vmem %s8, 28
      %v2781 = vld [vmem:[%s2780] sm:$0xf]
      %v2783 = vsel %vm405, %v2781, 0
      %v2786 = vsel %vm409, %v2778, 0
      %v2789 = vsel %vm409, %v2779, 0
      %2791 = vmatprep.subr.mxu0 %v2789
      %2792 = vmatpush1.msra.mxu0 %v2786
      %2793 = vmatprep.subr.mxu0 0.0
      %2794 = vmatpush1.msra.mxu0 0.0
      %2795 = vmatprep.subr.mxu0 0.0
      %2796 = vmatpush1.msra.mxu0 0.0
      %2797 = vmatprep.subr.mxu0 0.0
      %2798 = vmatpush1.msra.mxu0 0.0
      %2799 = vmatprep.subr.mxu0 0.0
      %2800 = vmatpush1.msra.mxu0 0.0
      %2801 = vmatprep.subr.mxu0 0.0
      %2802 = vmatpush1.msra.mxu0 0.0
      %2803 = vmatprep.subr.mxu0 0.0
      %2804 = vmatpush1.msra.mxu0 0.0
      %2805 = vmatprep.subr.mxu0 0.0
      %2806 = vmatpush1.msra.mxu0 0.0
      %2807 = vmatprep.subr.mxu0 0.0
      %2808 = vmatpush1.msra.mxu0 0.0
      %2809 = vmatprep.subr.mxu0 0.0
      %2810 = vmatpush1.msra.mxu0 0.0
      %2811 = vmatprep.subr.mxu0 0.0
      %2812 = vmatpush1.msra.mxu0 0.0
      %2813 = vmatprep.subr.mxu0 0.0
      %2814 = vmatpush1.msra.mxu0 0.0
      %2815 = vmatprep.subr.mxu0 0.0
      %2816 = vmatpush1.msra.mxu0 0.0
      %2817 = vmatprep.subr.mxu0 0.0
      %2818 = vmatpush1.msra.mxu0 0.0
      %2819 = vmatprep.subr.mxu0 0.0
      %2820 = vmatpush1.msra.mxu0 0.0
      %2821 = vmatprep.subr.mxu0 0.0
      %2822 = vmatpush1.msra.mxu0 0.0
      %2823 = vmatprep.subr.mxu0 0.0
      %2824 = vmatpush1.msra.mxu0 0.0
      %2825 = vmatprep.subr.mxu0 0.0
      %2826 = vmatpush1.msra.mxu0 0.0
      %2827 = vmatprep.subr.mxu0 0.0
      %2828 = vmatpush1.msra.mxu0 0.0
      %2829 = vmatprep.subr.mxu0 0.0
      %2830 = vmatpush1.msra.mxu0 0.0
      %2831 = vmatprep.subr.mxu0 0.0
      %2832 = vmatpush1.msra.mxu0 0.0
      %2833 = vmatprep.subr.mxu0 0.0
      %2834 = vmatpush1.msra.mxu0 0.0
      %2835 = vmatprep.subr.mxu0 0.0
      %2836 = vmatpush1.msra.mxu0 0.0
      %2837 = vmatprep.subr.mxu0 0.0
      %2838 = vmatpush1.msra.mxu0 0.0
      %2839 = vmatprep.subr.mxu0 0.0
      %2840 = vmatpush1.msra.mxu0 0.0
      %2841 = vmatprep.subr.mxu0 0.0
      %2842 = vmatpush1.msra.mxu0 0.0
      %2843 = vmatprep.subr.mxu0 0.0
      %2844 = vmatpush1.msra.mxu0 0.0
      %2845 = vmatprep.subr.mxu0 0.0
      %2846 = vmatpush1.msra.mxu0 0.0
      %2847 = vmatprep.subr.mxu0 0.0
      %2848 = vmatpush1.msra.mxu0 0.0
      %2849 = vmatprep.subr.mxu0 0.0
      %2850 = vmatpush1.msra.mxu0 0.0
      %2851 = vmatprep.subr.mxu0 0.0
      %2852 = vmatpush1.msra.mxu0 0.0
      %2853 = vmatprep.subr.mxu0 0.0
      %2854 = vmatpush1.msra.mxu0 0.0
      %2855 = vmatprep.mubr.f32.mxu0 0.0
      %2856 = vmatmul.mubr.f32.gmra.mrb[0].mxu0 %v2783
      %v2857 = vpop.f32.mrb[0].mxu0
      %v2858 = vadd.f32 0.0, %v2857
      %v2859 = vpop.f32.mrb[0].mxu0
      %v2860 = vadd.f32 0.0, %v2859
      %2861 = vdwg.mxu0
      %v2862 = vadd.f32 %v2770, %v2858
      %v2863 = vadd.f32 %v2771, %v2860
      %2864 = vrot.lane.b32.xlu0 %v2139, 111
      %v2865 = vpop.permute.xlu0 %2864
      %2866 = vrot.lane.b32.xlu0 %v2140, 111
      %v2867 = vpop.permute.xlu0 %2866
      %v2868 = vsel %vm1298, %v2865, %v2867
      %v2869 = vsel %vm1298, %v2867, %v2865
      %v2870 = vsel %vm1310, %v2868, 0.0
      %v2871 = vsel %vm1311, %v2869, 0.0
      %s2872 = scalar_lea.vmem %s8, 32
      %v2873 = vld [vmem:[%s2872] sm:$0xf]
      %v2875 = vsel %vm405, %v2873, 0
      %v2878 = vsel %vm409, %v2870, 0
      %v2881 = vsel %vm409, %v2871, 0
      %2883 = vmatprep.subr.mxu0 %v2881
      %2884 = vmatpush1.msra.mxu0 %v2878
      %2885 = vmatprep.subr.mxu0 0.0
      %2886 = vmatpush1.msra.mxu0 0.0
      %2887 = vmatprep.subr.mxu0 0.0
      %2888 = vmatpush1.msra.mxu0 0.0
      %2889 = vmatprep.subr.mxu0 0.0
      %2890 = vmatpush1.msra.mxu0 0.0
      %2891 = vmatprep.subr.mxu0 0.0
      %2892 = vmatpush1.msra.mxu0 0.0
      %2893 = vmatprep.subr.mxu0 0.0
      %2894 = vmatpush1.msra.mxu0 0.0
      %2895 = vmatprep.subr.mxu0 0.0
      %2896 = vmatpush1.msra.mxu0 0.0
      %2897 = vmatprep.subr.mxu0 0.0
      %2898 = vmatpush1.msra.mxu0 0.0
      %2899 = vmatprep.subr.mxu0 0.0
      %2900 = vmatpush1.msra.mxu0 0.0
      %2901 = vmatprep.subr.mxu0 0.0
      %2902 = vmatpush1.msra.mxu0 0.0
      %2903 = vmatprep.subr.mxu0 0.0
      %2904 = vmatpush1.msra.mxu0 0.0
      %2905 = vmatprep.subr.mxu0 0.0
      %2906 = vmatpush1.msra.mxu0 0.0
      %2907 = vmatprep.subr.mxu0 0.0
      %2908 = vmatpush1.msra.mxu0 0.0
      %2909 = vmatprep.subr.mxu0 0.0
      %2910 = vmatpush1.msra.mxu0 0.0
      %2911 = vmatprep.subr.mxu0 0.0
      %2912 = vmatpush1.msra.mxu0 0.0
      %2913 = vmatprep.subr.mxu0 0.0
      %2914 = vmatpush1.msra.mxu0 0.0
      %2915 = vmatprep.subr.mxu0 0.0
      %2916 = vmatpush1.msra.mxu0 0.0
      %2917 = vmatprep.subr.mxu0 0.0
      %2918 = vmatpush1.msra.mxu0 0.0
      %2919 = vmatprep.subr.mxu0 0.0
      %2920 = vmatpush1.msra.mxu0 0.0
      %2921 = vmatprep.subr.mxu0 0.0
      %2922 = vmatpush1.msra.mxu0 0.0
      %2923 = vmatprep.subr.mxu0 0.0
      %2924 = vmatpush1.msra.mxu0 0.0
      %2925 = vmatprep.subr.mxu0 0.0
      %2926 = vmatpush1.msra.mxu0 0.0
      %2927 = vmatprep.subr.mxu0 0.0
      %2928 = vmatpush1.msra.mxu0 0.0
      %2929 = vmatprep.subr.mxu0 0.0
      %2930 = vmatpush1.msra.mxu0 0.0
      %2931 = vmatprep.subr.mxu0 0.0
      %2932 = vmatpush1.msra.mxu0 0.0
      %2933 = vmatprep.subr.mxu0 0.0
      %2934 = vmatpush1.msra.mxu0 0.0
      %2935 = vmatprep.subr.mxu0 0.0
      %2936 = vmatpush1.msra.mxu0 0.0
      %2937 = vmatprep.subr.mxu0 0.0
      %2938 = vmatpush1.msra.mxu0 0.0
      %2939 = vmatprep.subr.mxu0 0.0
      %2940 = vmatpush1.msra.mxu0 0.0
      %2941 = vmatprep.subr.mxu0 0.0
      %2942 = vmatpush1.msra.mxu0 0.0
      %2943 = vmatprep.subr.mxu0 0.0
      %2944 = vmatpush1.msra.mxu0 0.0
      %2945 = vmatprep.subr.mxu0 0.0
      %2946 = vmatpush1.msra.mxu0 0.0
      %2947 = vmatprep.mubr.f32.mxu0 0.0
      %2948 = vmatmul.mubr.f32.gmra.mrb[0].mxu0 %v2875
      %v2949 = vpop.f32.mrb[0].mxu0
      %v2950 = vadd.f32 0.0, %v2949
      %v2951 = vpop.f32.mrb[0].mxu0
      %v2952 = vadd.f32 0.0, %v2951
      %2953 = vdwg.mxu0
      %v2954 = vadd.f32 %v2862, %v2950
      %v2955 = vadd.f32 %v2863, %v2952
      %v2956 = vld [vmem:[%s4] sm:$0xf]
      %v2958 = vsel %vm405, %v2956, 0
      %2960 = vmatprep.subr.mxu0 %v412
      %2961 = vmatpush1.msra.mxu0 %v410
      %2962 = vmatprep.subr.mxu0 0.0
      %2963 = vmatpush1.msra.mxu0 0.0
      %2964 = vmatprep.subr.mxu0 0.0
      %2965 = vmatpush1.msra.mxu0 0.0
      %2966 = vmatprep.subr.mxu0 0.0
      %2967 = vmatpush1.msra.mxu0 0.0
      %2968 = vmatprep.subr.mxu0 0.0
      %2969 = vmatpush1.msra.mxu0 0.0
      %2970 = vmatprep.subr.mxu0 0.0
      %2971 = vmatpush1.msra.mxu0 0.0
      %2972 = vmatprep.subr.mxu0 0.0
      %2973 = vmatpush1.msra.mxu0 0.0
      %2974 = vmatprep.subr.mxu0 0.0
      %2975 = vmatpush1.msra.mxu0 0.0
      %2976 = vmatprep.subr.mxu0 0.0
      %2977 = vmatpush1.msra.mxu0 0.0
      %2978 = vmatprep.subr.mxu0 0.0
      %2979 = vmatpush1.msra.mxu0 0.0
      %2980 = vmatprep.subr.mxu0 0.0
      %2981 = vmatpush1.msra.mxu0 0.0
      %2982 = vmatprep.subr.mxu0 0.0
      %2983 = vmatpush1.msra.mxu0 0.0
      %2984 = vmatprep.subr.mxu0 0.0
      %2985 = vmatpush1.msra.mxu0 0.0
      %2986 = vmatprep.subr.mxu0 0.0
      %2987 = vmatpush1.msra.mxu0 0.0
      %2988 = vmatprep.subr.mxu0 0.0
      %2989 = vmatpush1.msra.mxu0 0.0
      %2990 = vmatprep.subr.mxu0 0.0
      %2991 = vmatpush1.msra.mxu0 0.0
      %2992 = vmatprep.subr.mxu0 0.0
      %2993 = vmatpush1.msra.mxu0 0.0
      %2994 = vmatprep.subr.mxu0 0.0
      %2995 = vmatpush1.msra.mxu0 0.0
      %2996 = vmatprep.subr.mxu0 0.0
      %2997 = vmatpush1.msra.mxu0 0.0
      %2998 = vmatprep.subr.mxu0 0.0
      %2999 = vmatpush1.msra.mxu0 0.0
      %3000 = vmatprep.subr.mxu0 0.0
      %3001 = vmatpush1.msra.mxu0 0.0
      %3002 = vmatprep.subr.mxu0 0.0
      %3003 = vmatpush1.msra.mxu0 0.0
      %3004 = vmatprep.subr.mxu0 0.0
      %3005 = vmatpush1.msra.mxu0 0.0
      %3006 = vmatprep.subr.mxu0 0.0
      %3007 = vmatpush1.msra.mxu0 0.0
      %3008 = vmatprep.subr.mxu0 0.0
      %3009 = vmatpush1.msra.mxu0 0.0
      %3010 = vmatprep.subr.mxu0 0.0
      %3011 = vmatpush1.msra.mxu0 0.0
      %3012 = vmatprep.subr.mxu0 0.0
      %3013 = vmatpush1.msra.mxu0 0.0
      %3014 = vmatprep.subr.mxu0 0.0
      %3015 = vmatpush1.msra.mxu0 0.0
      %3016 = vmatprep.subr.mxu0 0.0
      %3017 = vmatpush1.msra.mxu0 0.0
      %3018 = vmatprep.subr.mxu0 0.0
      %3019 = vmatpush1.msra.mxu0 0.0
      %3020 = vmatprep.subr.mxu0 0.0
      %3021 = vmatpush1.msra.mxu0 0.0
      %3022 = vmatprep.subr.mxu0 0.0
      %3023 = vmatpush1.msra.mxu0 0.0
      %3024 = vmatprep.mubr.f32.mxu0 0.0
      %3025 = vmatmul.mubr.f32.gmra.mrb[0].mxu0 %v2958
      %v3026 = vpop.f32.mrb[0].mxu0
      %v3027 = vadd.f32 0.0, %v3026
      %v3028 = vpop.f32.mrb[0].mxu0
      %v3029 = vadd.f32 0.0, %v3028
      %3030 = vdwg.mxu0
      %v3031 = vld [vmem:[%s9] sm:$0xf]
      %s3032 = scalar_lea.vmem %s9, 4
      %v3033 = vld [vmem:[%s3032] sm:$0xf]
      %v3035 = vsel %vm405, %v3033, 0
      %v3038 = vsel %vm409, %v3027, 0
      %v3041 = vsel %vm409, %v3029, 0
      %3043 = vmatprep.subr.mxu0 %v3041
      %3044 = vmatpush1.msra.mxu0 %v3038
      %3045 = vmatprep.subr.mxu0 0.0
      %3046 = vmatpush1.msra.mxu0 0.0
      %3047 = vmatprep.subr.mxu0 0.0
      %3048 = vmatpush1.msra.mxu0 0.0
      %3049 = vmatprep.subr.mxu0 0.0
      %3050 = vmatpush1.msra.mxu0 0.0
      %3051 = vmatprep.subr.mxu0 0.0
      %3052 = vmatpush1.msra.mxu0 0.0
      %3053 = vmatprep.subr.mxu0 0.0
      %3054 = vmatpush1.msra.mxu0 0.0
      %3055 = vmatprep.subr.mxu0 0.0
      %3056 = vmatpush1.msra.mxu0 0.0
      %3057 = vmatprep.subr.mxu0 0.0
      %3058 = vmatpush1.msra.mxu0 0.0
      %3059 = vmatprep.subr.mxu0 0.0
      %3060 = vmatpush1.msra.mxu0 0.0
      %3061 = vmatprep.subr.mxu0 0.0
      %3062 = vmatpush1.msra.mxu0 0.0
      %3063 = vmatprep.subr.mxu0 0.0
      %3064 = vmatpush1.msra.mxu0 0.0
      %3065 = vmatprep.subr.mxu0 0.0
      %3066 = vmatpush1.msra.mxu0 0.0
      %3067 = vmatprep.subr.mxu0 0.0
      %3068 = vmatpush1.msra.mxu0 0.0
      %3069 = vmatprep.subr.mxu0 0.0
      %3070 = vmatpush1.msra.mxu0 0.0
      %3071 = vmatprep.subr.mxu0 0.0
      %3072 = vmatpush1.msra.mxu0 0.0
      %3073 = vmatprep.subr.mxu0 0.0
      %3074 = vmatpush1.msra.mxu0 0.0
      %3075 = vmatprep.subr.mxu0 0.0
      %3076 = vmatpush1.msra.mxu0 0.0
      %3077 = vmatprep.subr.mxu0 0.0
      %3078 = vmatpush1.msra.mxu0 0.0
      %3079 = vmatprep.subr.mxu0 0.0
      %3080 = vmatpush1.msra.mxu0 0.0
      %3081 = vmatprep.subr.mxu0 0.0
      %3082 = vmatpush1.msra.mxu0 0.0
      %3083 = vmatprep.subr.mxu0 0.0
      %3084 = vmatpush1.msra.mxu0 0.0
      %3085 = vmatprep.subr.mxu0 0.0
      %3086 = vmatpush1.msra.mxu0 0.0
      %3087 = vmatprep.subr.mxu0 0.0
      %3088 = vmatpush1.msra.mxu0 0.0
      %3089 = vmatprep.subr.mxu0 0.0
      %3090 = vmatpush1.msra.mxu0 0.0
      %3091 = vmatprep.subr.mxu0 0.0
      %3092 = vmatpush1.msra.mxu0 0.0
      %3093 = vmatprep.subr.mxu0 0.0
      %3094 = vmatpush1.msra.mxu0 0.0
      %3095 = vmatprep.subr.mxu0 0.0
      %3096 = vmatpush1.msra.mxu0 0.0
      %3097 = vmatprep.subr.mxu0 0.0
      %3098 = vmatpush1.msra.mxu0 0.0
      %3099 = vmatprep.subr.mxu0 0.0
      %3100 = vmatpush1.msra.mxu0 0.0
      %3101 = vmatprep.subr.mxu0 0.0
      %3102 = vmatpush1.msra.mxu0 0.0
      %3103 = vmatprep.subr.mxu0 0.0
      %3104 = vmatpush1.msra.mxu0 0.0
      %3105 = vmatprep.subr.mxu0 0.0
      %3106 = vmatpush1.msra.mxu0 0.0
      %3107 = vmatprep.mubr.f32.mxu0 0.0
      %3108 = vmatmul.mubr.f32.gmra.mrb[0].mxu0 %v3035
      %v3109 = vpop.f32.mrb[0].mxu0
      %v3110 = vadd.f32 0.0, %v3109
      %v3111 = vpop.f32.mrb[0].mxu0
      %v3112 = vadd.f32 0.0, %v3111
      %3113 = vdwg.mxu0
      %v3115 = vsel %vm405, %v3031, 0
      %v3118 = vsel %vm409, %v2954, 0
      %v3121 = vsel %vm409, %v2955, 0
      %3123 = vmatprep.subr.mxu0 %v3121
      %3124 = vmatpush1.msra.mxu0 %v3118
      %3125 = vmatprep.subr.mxu0 0.0
      %3126 = vmatpush1.msra.mxu0 0.0
      %3127 = vmatprep.subr.mxu0 0.0
      %3128 = vmatpush1.msra.mxu0 0.0
      %3129 = vmatprep.subr.mxu0 0.0
      %3130 = vmatpush1.msra.mxu0 0.0
      %3131 = vmatprep.subr.mxu0 0.0
      %3132 = vmatpush1.msra.mxu0 0.0
      %3133 = vmatprep.subr.mxu0 0.0
      %3134 = vmatpush1.msra.mxu0 0.0
      %3135 = vmatprep.subr.mxu0 0.0
      %3136 = vmatpush1.msra.mxu0 0.0
      %3137 = vmatprep.subr.mxu0 0.0
      %3138 = vmatpush1.msra.mxu0 0.0
      %3139 = vmatprep.subr.mxu0 0.0
      %3140 = vmatpush1.msra.mxu0 0.0
      %3141 = vmatprep.subr.mxu0 0.0
      %3142 = vmatpush1.msra.mxu0 0.0
      %3143 = vmatprep.subr.mxu0 0.0
      %3144 = vmatpush1.msra.mxu0 0.0
      %3145 = vmatprep.subr.mxu0 0.0
      %3146 = vmatpush1.msra.mxu0 0.0
      %3147 = vmatprep.subr.mxu0 0.0
      %3148 = vmatpush1.msra.mxu0 0.0
      %3149 = vmatprep.subr.mxu0 0.0
      %3150 = vmatpush1.msra.mxu0 0.0
      %3151 = vmatprep.subr.mxu0 0.0
      %3152 = vmatpush1.msra.mxu0 0.0
      %3153 = vmatprep.subr.mxu0 0.0
      %3154 = vmatpush1.msra.mxu0 0.0
      %3155 = vmatprep.subr.mxu0 0.0
      %3156 = vmatpush1.msra.mxu0 0.0
      %3157 = vmatprep.subr.mxu0 0.0
      %3158 = vmatpush1.msra.mxu0 0.0
      %3159 = vmatprep.subr.mxu0 0.0
      %3160 = vmatpush1.msra.mxu0 0.0
      %3161 = vmatprep.subr.mxu0 0.0
      %3162 = vmatpush1.msra.mxu0 0.0
      %3163 = vmatprep.subr.mxu0 0.0
      %3164 = vmatpush1.msra.mxu0 0.0
      %3165 = vmatprep.subr.mxu0 0.0
      %3166 = vmatpush1.msra.mxu0 0.0
      %3167 = vmatprep.subr.mxu0 0.0
      %3168 = vmatpush1.msra.mxu0 0.0
      %3169 = vmatprep.subr.mxu0 0.0
      %3170 = vmatpush1.msra.mxu0 0.0
      %3171 = vmatprep.subr.mxu0 0.0
      %3172 = vmatpush1.msra.mxu0 0.0
      %3173 = vmatprep.subr.mxu0 0.0
      %3174 = vmatpush1.msra.mxu0 0.0
      %3175 = vmatprep.subr.mxu0 0.0
      %3176 = vmatpush1.msra.mxu0 0.0
      %3177 = vmatprep.subr.mxu0 0.0
      %3178 = vmatpush1.msra.mxu0 0.0
      %3179 = vmatprep.subr.mxu0 0.0
      %3180 = vmatpush1.msra.mxu0 0.0
      %3181 = vmatprep.subr.mxu0 0.0
      %3182 = vmatpush1.msra.mxu0 0.0
      %3183 = vmatprep.subr.mxu0 0.0
      %3184 = vmatpush1.msra.mxu0 0.0
      %3185 = vmatprep.subr.mxu0 0.0
      %3186 = vmatpush1.msra.mxu0 0.0
      %3187 = vmatprep.mubr.f32.mxu0 0.0
      %3188 = vmatmul.mubr.f32.gmra.mrb[0].mxu0 %v3115
      %v3189 = vpop.f32.mrb[0].mxu0
      %v3190 = vadd.f32 %v3110, %v3189
      %v3191 = vpop.f32.mrb[0].mxu0
      %v3192 = vadd.f32 %v3112, %v3191
      %3193 = vdwg.mxu0
      %v3196 = vcombine.low %v3190, %v3192
      %3198 = vst [vmem:[%s359] sm:$0xff] %v3196
      %p3199 = scmp.lt.s32.totalorder %s21, 1
      %s3200 = scalar_select %p3199, %s21, 1
      %s3201 = smul.addr %s3200, 2
      %s3202 = smul.addr %s3201, 4
      %s3203 = scalar_lea.vmem %s10, %s3202
      // Predicated region
      $region61: #{sppfcspc_forward.1} parent=59 // pred_check
        %p3204 = pneg %p254
      $region62: #{sppfcspc_forward.1} parent=59 // pred_check_branch
        %3206 = sbr.rel (%p3204) target = $region64
      $region63: #{sppfcspc_forward.1} parent=59 // pred_region
        _
      $region64: #{sppfcspc_forward.1} parent=59 // pred_fallthru
        _
    $region60: #{sppfcspc_forward.1} parent=5 // pred_fallthru
      _
    %p3207 = scmp.le.s32.totalorder 2, %s16
    // Predicated region
    $region65: #{sppfcspc_forward.1} parent=5 // pred_check
      %p3208 = pneg %p3207
    $region66: #{sppfcspc_forward.1} parent=5 // pred_check_branch
      %3210 = sbr.rel (%p3208) target = $region68
    $region67: #{sppfcspc_forward.1} parent=5 // pred_region
      %s3211 = ssub.s32 %s16, 2
      // Predicated region
      $region69: #{sppfcspc_forward.1} parent=67 // pred_check
        %p3212 = pneg %p260
      $region70: #{sppfcspc_forward.1} parent=67 // pred_check_branch
        %3214 = sbr.rel (%p3212) target = $region72
      $region71: #{sppfcspc_forward.1} parent=67 // pred_region
        %p3215 = scmp.lt.s32.totalorder %s22, 1
        %s3216 = scalar_select %p3215, %s22, 1
        %s3217 = smul.addr %s3216, 2
        %s3218 = smul.addr %s3217, 4
        %s3219 = scalar_lea.vmem %s10, %s3218
      $region72: #{sppfcspc_forward.1} parent=67 // pred_fallthru
        _
    $region68: #{sppfcspc_forward.1} parent=5 // pred_fallthru
      _
  $region6: #{sppfcspc_forward.1} parent=0 // loop_footer
    %s20 = sadd.s32 1, %s16
  $region7: #{sppfcspc_forward.1} parent=0 // loop_footer_branch
    %15 = sbr.rel target = $region3
  $region8: #{sppfcspc_forward.1} parent=0 // loop_exit
    _

</llo_original>
